<compile_context>
chip_gen: v6e
topology: v6e:2x2x1
jax: 0.10.0
libtpu: 0.0.40
codegen_flags: <defaults>
</compile_context>

<pallas_src>
import math

import jax
import jax.numpy as jnp
from jax.experimental import pallas as pl
from jax.experimental.pallas import tpu as pltpu


# ----------------------------------------------------------------------------
# Fused BasicBlock kernel: one grid step == one batch image
# ----------------------------------------------------------------------------
def _basic_block_kernel(x_ref, w1_ref, w2_ref, s1_ref, b1_ref, s2_ref, b2_ref,
                        o_ref, mid_ref, patch_ref):
    """Refs:
      x_ref     : (1, H+2, W+2, C) bf16  zero-padded NHWC input (also residual)
      w1_ref    : (9*C, C)         bf16  conv1 weights, im2col order (dh,dw,cin)
      w2_ref    : (9*C, C)         bf16  conv2 weights
      s1/b1/s2/b2 : (1, C)         f32   folded BN scale / shift
      o_ref     : (1, H*W, C)      f32   block output
      mid_ref   : (H+2, W+2, C)    f32   VMEM scratch: padded conv1 output
      patch_ref : (H*W, 9*C)       f32 -> bf16 im2col slab (reused by both convs)
    """
    _, Hp, Wp, C = x_ref.shape
    H, W = Hp - 2, Wp - 2

    def fill_patches(slab_f32):
        # Scatter the 9 shifted taps of a padded (H+2, W+2, C) f32 slab along K.
        t = 0
        for dh in range(3):
            for dw in range(3):
                piece = slab_f32[dh:dh + H, dw:dw + W, :].reshape(H * W, C)
                patch_ref[:, pl.ds(t * C, C)] = piece.astype(jnp.bfloat16)
                t += 1

    xpad = x_ref[0].astype(jnp.float32)                     # (H+2, W+2, C)

    # ---- conv1 (3x3, stride 1, pad 1) + bn1 + ReLU: single K=9*C MXU dot ----
    fill_patches(xpad)
    y1 = jnp.dot(patch_ref[...], w1_ref[...], preferred_element_type=jnp.float32)
    y1 = jnp.maximum(y1 * s1_ref[...] + b1_ref[...], 0.0)   # (H*W, C)

    # ---- stage conv1 output as a zero-padded slab resident in VMEM ----------
    mid_ref[...] = jnp.zeros_like(mid_ref)
    mid_ref[pl.ds(1, H), pl.ds(1, W), :] = y1.reshape(H, W, C)

    # ---- conv2 + bn2 + residual (resident input block) + ReLU ---------------
    fill_patches(mid_ref[...])
    y2 = jnp.dot(patch_ref[...], w2_ref[...], preferred_element_type=jnp.float32)
    y2 = y2 * s2_ref[...] + b2_ref[...]
    identity = xpad[1:H + 1, 1:W + 1, :].reshape(H * W, C)
    o_ref[0, :, :] = jnp.maximum(y2 + identity, 0.0).astype(o_ref.dtype)


# ----------------------------------------------------------------------------
# Wrapper: BasicBlock forward (stride=1, downsample=None, BN inference mode)
# ----------------------------------------------------------------------------
def fold_bn(gamma, beta, mean, var, eps=1e-5):
    scale = gamma / jnp.sqrt(var + eps)
    return scale, beta - mean * scale


def basic_block_forward(params, x_nchw):
    N, Cin, H, W = x_nchw.shape
    w1, w2 = params["conv1_w"], params["conv2_w"]
    Cout = w1.shape[0]
    assert w1.shape == (Cout, Cin, 3, 3) and w2.shape == (Cout, Cout, 3, 3)
    assert Cin == Cout, "identity residual requires inplanes == planes"
    C = Cout

    # NCHW -> padded NHWC bf16 (single wrapper layout pass; XLA fuses it).
    x_pad = jnp.pad(jnp.transpose(x_nchw, (0, 2, 3, 1)),
                    ((0, 0), (1, 1), (1, 1), (0, 0))).astype(jnp.bfloat16)

    # (Cout, Cin, 3, 3) -> (kh, kw, Cin, Cout) -> (9*C, C) bf16 for the MXU.
    def im2col_w(w):
        return jnp.transpose(w, (2, 3, 1, 0)).reshape(9 * C, C).astype(jnp.bfloat16)

    w1m, w2m = im2col_w(w1), im2col_w(w2)
    s1, b1 = fold_bn(*params["bn1"])
    s2, b2 = fold_bn(*params["bn2"])
    s1 = s1.reshape(1, C).astype(jnp.float32)
    b1 = b1.reshape(1, C).astype(jnp.float32)
    s2 = s2.reshape(1, C).astype(jnp.float32)
    b2 = b2.reshape(1, C).astype(jnp.float32)

    cost = pl.CostEstimate(
        flops=4 * N * H * W * 9 * C * C,                     # two 3x3 convs
        transcendentals=0,
        bytes_accessed=(x_pad.size * 2 + w1m.size * 2 + w2m.size * 2
                        + 4 * C * 4 + N * H * W * C * 4),
    )

    out = pl.pallas_call(
        _basic_block_kernel,
        out_shape=jax.ShapeDtypeStruct((N, H * W, C), jnp.float32),
        grid_spec=pltpu.PrefetchScalarGridSpec(
            num_scalar_prefetch=0,
            grid=(N,),                                       # one image per step
            in_specs=[
                pl.BlockSpec((1, H + 2, W + 2, C), lambda n: (n, 0, 0, 0)),
                pl.BlockSpec((9 * C, C), lambda n: (0, 0)),  # resident weights
                pl.BlockSpec((9 * C, C), lambda n: (0, 0)),
                pl.BlockSpec((1, C), lambda n: (0, 0)),
                pl.BlockSpec((1, C), lambda n: (0, 0)),
                pl.BlockSpec((1, C), lambda n: (0, 0)),
                pl.BlockSpec((1, C), lambda n: (0, 0)),
            ],
            out_specs=pl.BlockSpec((1, H * W, C), lambda n: (n, 0, 0)),
            scratch_shapes=[
                pltpu.VMEM((H + 2, W + 2, C), jnp.float32),   # padded conv1 out
                pltpu.VMEM((H * W, 9 * C), jnp.bfloat16),     # im2col slab
            ],
        ),
        compiler_params=pltpu.CompilerParams(
            dimension_semantics=("parallel",),                # v7x: 1 image/core
        ),
        cost_estimate=cost,
    )(x_pad, w1m, w2m, s1, b1, s2, b2)

    return jnp.transpose(out.reshape(N, H, W, C), (0, 3, 1, 2))   # NHWC -> NCHW


# ----------------------------------------------------------------------------
# Parameter init (kaiming for convs, plausible BN running stats)
# ----------------------------------------------------------------------------
def init_params(key, inplanes=64, planes=64):
    k1, k2, k3, k4 = jax.random.split(key, 4)
    std = math.sqrt(2.0 / (planes * 9))          # kaiming_normal, fan_out, relu
    conv1_w = std * jax.random.normal(k1, (planes, inplanes, 3, 3), jnp.float32)
    conv2_w = std * jax.random.normal(k2, (planes, planes, 3, 3), jnp.float32)

    def bn_params(k, c):
        kg, kb, km, kv = jax.random.split(k, 4)
        gamma = jax.random.uniform(kg, (c,), jnp.float32, 0.5, 1.5)
        beta = 0.1 * jax.random.normal(kb, (c,), jnp.float32)
        mean = 0.1 * jax.random.normal(km, (c,), jnp.float32)
        var = jax.random.uniform(kv, (c,), jnp.float32, 0.5, 1.5)
        return (gamma, beta, mean, var)

    return {"conv1_w": conv1_w, "bn1": bn_params(k3, planes),
            "conv2_w": conv2_w, "bn2": bn_params(k4, planes)}


# ----------------------------------------------------------------------------
# Pure-JAX f32 reference for validation
# ----------------------------------------------------------------------------
def reference_forward(params, x_nchw):
    def conv(x, w):
        return jax.lax.conv_general_dilated(
            x, w, window_strides=(1, 1), padding=((1, 1), (1, 1)),
            dimension_numbers=("NCHW", "OIHW", "NCHW"))

    def bn(x, p, eps=1e-5):
        gamma, beta, mean, var = p
        s = (gamma / jnp.sqrt(var + eps))[None, :, None, None]
        return (x - mean[None, :, None, None]) * s + beta[None, :, None, None]

    out = jax.nn.relu(bn(conv(x_nchw, params["conv1_w"]), params["bn1"]))
    out = bn(conv(out, params["conv2_w"]), params["bn2"])
    return jax.nn.relu(out + x_nchw)


if __name__ == "__main__":
    key = jax.random.PRNGKey(0)
    pkey, xkey = jax.random.split(key)
    N, C, H, W = 2, 64, 16, 16                   # BasicBlock(inplanes=64, planes=64)
    params = init_params(pkey, inplanes=C, planes=C)
    x = jax.random.normal(xkey, (N, C, H, W), jnp.float32)

    out = jax.block_until_ready(jax.jit(basic_block_forward)(params, x))

    assert out.shape == (N, C, H, W), out.shape
    assert out.dtype == jnp.float32
    assert bool(jnp.all(jnp.isfinite(out)))
    assert bool(jnp.all(out >= 0.0))             # final ReLU

    ref = reference_forward(params, x)
    rel = float(jnp.linalg.norm(out - ref) / (jnp.linalg.norm(ref) + 1e-12))
    assert rel < 2.5e-2, f"relative L2 error vs reference: {rel}"

    print("KERNEL_OK")
</pallas_src>

<mosaic_0001>
module attributes {stable_mosaic.version = 11 : i64} {
  func.func @_basic_block_kernel(%arg0: i32, %arg1: memref<1x18x18x64xbf16, #tpu.memory_space<vmem>>, %arg2: memref<576x64xbf16, #tpu.memory_space<vmem>>, %arg3: memref<576x64xbf16, #tpu.memory_space<vmem>>, %arg4: memref<1x64xf32, #tpu.memory_space<vmem>>, %arg5: memref<1x64xf32, #tpu.memory_space<vmem>>, %arg6: memref<1x64xf32, #tpu.memory_space<vmem>>, %arg7: memref<1x64xf32, #tpu.memory_space<vmem>>, %arg8: memref<1x256x64xf32, #tpu.memory_space<vmem>>, %arg9: memref<18x18x64xf32, #tpu.memory_space<vmem>>, %arg10: memref<256x576xbf16, #tpu.memory_space<vmem>>) attributes {dimension_semantics = [#tpu.dimension_semantics<parallel>], iteration_bounds = array<i64: 2>, scalar_prefetch = 0 : i64, scratch_operands = 2 : i64, tpu.core_type = #tpu.core_type<tc>, window_params = [{transform_indices = @transform_0, window_bounds = array<i64: 1, 18, 18, 64>}, {pipeline_mode = #tpu.pipeline_mode<synchronous>, transform_indices = @transform_1, window_bounds = array<i64: 576, 64>}, {pipeline_mode = #tpu.pipeline_mode<synchronous>, transform_indices = @transform_2, window_bounds = array<i64: 576, 64>}, {pipeline_mode = #tpu.pipeline_mode<synchronous>, transform_indices = @transform_3, window_bounds = array<i64: 1, 64>}, {pipeline_mode = #tpu.pipeline_mode<synchronous>, transform_indices = @transform_4, window_bounds = array<i64: 1, 64>}, {pipeline_mode = #tpu.pipeline_mode<synchronous>, transform_indices = @transform_5, window_bounds = array<i64: 1, 64>}, {pipeline_mode = #tpu.pipeline_mode<synchronous>, transform_indices = @transform_6, window_bounds = array<i64: 1, 64>}, {transform_indices = @transform_7, window_bounds = array<i64: 1, 256, 64>}]} {
    %c0 = arith.constant 0 : index
    %c0_0 = arith.constant 0 : index
    %c0_1 = arith.constant 0 : index
    %c0_2 = arith.constant 0 : index
    %0 = vector.load %arg1[%c0, %c0_0, %c0_1, %c0_2] : memref<1x18x18x64xbf16, #tpu.memory_space<vmem>>, vector<1x18x18x64xbf16>
    %1 = vector.shape_cast %0 : vector<1x18x18x64xbf16> to vector<18x18x64xbf16>
    %2 = arith.extf %1 : vector<18x18x64xbf16> to vector<18x18x64xf32>
    %3 = vector.extract_strided_slice %2 {offsets = [0, 0, 0], sizes = [16, 16, 64], strides = [1, 1, 1]} : vector<18x18x64xf32> to vector<16x16x64xf32>
    %4 = vector.shape_cast %3 : vector<16x16x64xf32> to vector<256x64xf32>
    %5 = arith.truncf %4 : vector<256x64xf32> to vector<256x64xbf16>
    %c0_3 = arith.constant 0 : index
    %c0_4 = arith.constant 0 : index
    %6 = vector.load %arg10[%c0_3, %c0_4] : memref<256x576xbf16, #tpu.memory_space<vmem>>, vector<256x64xbf16>
    tpu.vector_store %arg10[%c0_3, %c0_4], %5 {strides = array<i32>} : memref<256x576xbf16, #tpu.memory_space<vmem>>, vector<256x64xbf16>,
    %7 = vector.extract_strided_slice %2 {offsets = [0, 1, 0], sizes = [16, 16, 64], strides = [1, 1, 1]} : vector<18x18x64xf32> to vector<16x16x64xf32>
    %8 = vector.shape_cast %7 : vector<16x16x64xf32> to vector<256x64xf32>
    %9 = arith.truncf %8 : vector<256x64xf32> to vector<256x64xbf16>
    %c0_5 = arith.constant 0 : index
    %c64 = arith.constant 64 : index
    %10 = vector.load %arg10[%c0_5, %c64] : memref<256x576xbf16, #tpu.memory_space<vmem>>, vector<256x64xbf16>
    tpu.vector_store %arg10[%c0_5, %c64], %9 {strides = array<i32>} : memref<256x576xbf16, #tpu.memory_space<vmem>>, vector<256x64xbf16>,
    %11 = vector.extract_strided_slice %2 {offsets = [0, 2, 0], sizes = [16, 16, 64], strides = [1, 1, 1]} : vector<18x18x64xf32> to vector<16x16x64xf32>
    %12 = vector.shape_cast %11 : vector<16x16x64xf32> to vector<256x64xf32>
    %13 = arith.truncf %12 : vector<256x64xf32> to vector<256x64xbf16>
    %c0_6 = arith.constant 0 : index
    %c128 = arith.constant 128 : index
    %14 = vector.load %arg10[%c0_6, %c128] : memref<256x576xbf16, #tpu.memory_space<vmem>>, vector<256x64xbf16>
    tpu.vector_store %arg10[%c0_6, %c128], %13 {strides = array<i32>} : memref<256x576xbf16, #tpu.memory_space<vmem>>, vector<256x64xbf16>,
    %15 = vector.extract_strided_slice %2 {offsets = [1, 0, 0], sizes = [16, 16, 64], strides = [1, 1, 1]} : vector<18x18x64xf32> to vector<16x16x64xf32>
    %16 = vector.shape_cast %15 : vector<16x16x64xf32> to vector<256x64xf32>
    %17 = arith.truncf %16 : vector<256x64xf32> to vector<256x64xbf16>
    %c0_7 = arith.constant 0 : index
    %c192 = arith.constant 192 : index
    %18 = vector.load %arg10[%c0_7, %c192] : memref<256x576xbf16, #tpu.memory_space<vmem>>, vector<256x64xbf16>
    tpu.vector_store %arg10[%c0_7, %c192], %17 {strides = array<i32>} : memref<256x576xbf16, #tpu.memory_space<vmem>>, vector<256x64xbf16>,
    %19 = vector.extract_strided_slice %2 {offsets = [1, 1, 0], sizes = [16, 16, 64], strides = [1, 1, 1]} : vector<18x18x64xf32> to vector<16x16x64xf32>
    %20 = vector.shape_cast %19 : vector<16x16x64xf32> to vector<256x64xf32>
    %21 = arith.truncf %20 : vector<256x64xf32> to vector<256x64xbf16>
    %c0_8 = arith.constant 0 : index
    %c256 = arith.constant 256 : index
    %22 = vector.load %arg10[%c0_8, %c256] : memref<256x576xbf16, #tpu.memory_space<vmem>>, vector<256x64xbf16>
    tpu.vector_store %arg10[%c0_8, %c256], %21 {strides = array<i32>} : memref<256x576xbf16, #tpu.memory_space<vmem>>, vector<256x64xbf16>,
    %23 = vector.extract_strided_slice %2 {offsets = [1, 2, 0], sizes = [16, 16, 64], strides = [1, 1, 1]} : vector<18x18x64xf32> to vector<16x16x64xf32>
    %24 = vector.shape_cast %23 : vector<16x16x64xf32> to vector<256x64xf32>
    %25 = arith.truncf %24 : vector<256x64xf32> to vector<256x64xbf16>
    %c0_9 = arith.constant 0 : index
    %c320 = arith.constant 320 : index
    %26 = vector.load %arg10[%c0_9, %c320] : memref<256x576xbf16, #tpu.memory_space<vmem>>, vector<256x64xbf16>
    tpu.vector_store %arg10[%c0_9, %c320], %25 {strides = array<i32>} : memref<256x576xbf16, #tpu.memory_space<vmem>>, vector<256x64xbf16>,
    %27 = vector.extract_strided_slice %2 {offsets = [2, 0, 0], sizes = [16, 16, 64], strides = [1, 1, 1]} : vector<18x18x64xf32> to vector<16x16x64xf32>
    %28 = vector.shape_cast %27 : vector<16x16x64xf32> to vector<256x64xf32>
    %29 = arith.truncf %28 : vector<256x64xf32> to vector<256x64xbf16>
    %c0_10 = arith.constant 0 : index
    %c384 = arith.constant 384 : index
    %30 = vector.load %arg10[%c0_10, %c384] : memref<256x576xbf16, #tpu.memory_space<vmem>>, vector<256x64xbf16>
    tpu.vector_store %arg10[%c0_10, %c384], %29 {strides = array<i32>} : memref<256x576xbf16, #tpu.memory_space<vmem>>, vector<256x64xbf16>,
    %31 = vector.extract_strided_slice %2 {offsets = [2, 1, 0], sizes = [16, 16, 64], strides = [1, 1, 1]} : vector<18x18x64xf32> to vector<16x16x64xf32>
    %32 = vector.shape_cast %31 : vector<16x16x64xf32> to vector<256x64xf32>
    %33 = arith.truncf %32 : vector<256x64xf32> to vector<256x64xbf16>
    %c0_11 = arith.constant 0 : index
    %c448 = arith.constant 448 : index
    %34 = vector.load %arg10[%c0_11, %c448] : memref<256x576xbf16, #tpu.memory_space<vmem>>, vector<256x64xbf16>
    tpu.vector_store %arg10[%c0_11, %c448], %33 {strides = array<i32>} : memref<256x576xbf16, #tpu.memory_space<vmem>>, vector<256x64xbf16>,
    %35 = vector.extract_strided_slice %2 {offsets = [2, 2, 0], sizes = [16, 16, 64], strides = [1, 1, 1]} : vector<18x18x64xf32> to vector<16x16x64xf32>
    %36 = vector.shape_cast %35 : vector<16x16x64xf32> to vector<256x64xf32>
    %37 = arith.truncf %36 : vector<256x64xf32> to vector<256x64xbf16>
    %c0_12 = arith.constant 0 : index
    %c512 = arith.constant 512 : index
    %38 = vector.load %arg10[%c0_12, %c512] : memref<256x576xbf16, #tpu.memory_space<vmem>>, vector<256x64xbf16>
    tpu.vector_store %arg10[%c0_12, %c512], %37 {strides = array<i32>} : memref<256x576xbf16, #tpu.memory_space<vmem>>, vector<256x64xbf16>,
    %c0_13 = arith.constant 0 : index
    %c0_14 = arith.constant 0 : index
    %39 = vector.load %arg10[%c0_13, %c0_14] : memref<256x576xbf16, #tpu.memory_space<vmem>>, vector<256x576xbf16>
    %c0_15 = arith.constant 0 : index
    %c0_16 = arith.constant 0 : index
    %40 = vector.load %arg2[%c0_15, %c0_16] : memref<576x64xbf16, #tpu.memory_space<vmem>>, vector<576x64xbf16>
    %cst = arith.constant dense<0.000000e+00> : vector<256x64xf32>
    %41 = tpu.matmul %39, %40, %cst {dimension_numbers = #tpu.dot_dimension_numbers<[1], [0], [0], [1], [0, 0, 1, 1], [], []>} : vector<256x576xbf16>, vector<576x64xbf16>, vector<256x64xf32> -> vector<256x64xf32>
    %c0_17 = arith.constant 0 : index
    %c0_18 = arith.constant 0 : index
    %42 = vector.load %arg4[%c0_17, %c0_18] : memref<1x64xf32, #tpu.memory_space<vmem>>, vector<1x64xf32>
    %43 = vector.broadcast %42 : vector<1x64xf32> to vector<256x64xf32>
    %44 = arith.mulf %41, %43 : vector<256x64xf32>
    %c0_19 = arith.constant 0 : index
    %c0_20 = arith.constant 0 : index
    %45 = vector.load %arg5[%c0_19, %c0_20] : memref<1x64xf32, #tpu.memory_space<vmem>>, vector<1x64xf32>
    %46 = vector.broadcast %45 : vector<1x64xf32> to vector<256x64xf32>
    %47 = arith.addf %44, %46 : vector<256x64xf32>
    %cst_21 = arith.constant 0.000000e+00 : f32
    %48 = vector.broadcast %cst_21 : f32 to vector<256x64xf32>
    %49 = arith.maximumf %47, %48 : vector<256x64xf32>
    %cst_22 = arith.constant 0.000000e+00 : f32
    %50 = vector.broadcast %cst_22 : f32 to vector<18x18x64xf32>
    %c0_23 = arith.constant 0 : index
    %c0_24 = arith.constant 0 : index
    %c0_25 = arith.constant 0 : index
    %51 = vector.load %arg9[%c0_23, %c0_24, %c0_25] : memref<18x18x64xf32, #tpu.memory_space<vmem>>, vector<18x18x64xf32>
    tpu.vector_store %arg9[%c0_23, %c0_24, %c0_25], %50 {strides = array<i32>} : memref<18x18x64xf32, #tpu.memory_space<vmem>>, vector<18x18x64xf32>,
    %52 = vector.shape_cast %49 : vector<256x64xf32> to vector<16x16x64xf32>
    %c1 = arith.constant 1 : index
    %c1_26 = arith.constant 1 : index
    %c0_27 = arith.constant 0 : index
    %53 = vector.load %arg9[%c1, %c1_26, %c0_27] : memref<18x18x64xf32, #tpu.memory_space<vmem>>, vector<16x16x64xf32>
    tpu.vector_store %arg9[%c1, %c1_26, %c0_27], %52 {strides = array<i32>} : memref<18x18x64xf32, #tpu.memory_space<vmem>>, vector<16x16x64xf32>,
    %c0_28 = arith.constant 0 : index
    %c0_29 = arith.constant 0 : index
    %c0_30 = arith.constant 0 : index
    %54 = vector.load %arg9[%c0_28, %c0_29, %c0_30] : memref<18x18x64xf32, #tpu.memory_space<vmem>>, vector<18x18x64xf32>
    %55 = vector.extract_strided_slice %54 {offsets = [0, 0, 0], sizes = [16, 16, 64], strides = [1, 1, 1]} : vector<18x18x64xf32> to vector<16x16x64xf32>
    %56 = vector.shape_cast %55 : vector<16x16x64xf32> to vector<256x64xf32>
    %57 = arith.truncf %56 : vector<256x64xf32> to vector<256x64xbf16>
    %c0_31 = arith.constant 0 : index
    %c0_32 = arith.constant 0 : index
    %58 = vector.load %arg10[%c0_31, %c0_32] : memref<256x576xbf16, #tpu.memory_space<vmem>>, vector<256x64xbf16>
    tpu.vector_store %arg10[%c0_31, %c0_32], %57 {strides = array<i32>} : memref<256x576xbf16, #tpu.memory_space<vmem>>, vector<256x64xbf16>,
    %59 = vector.extract_strided_slice %54 {offsets = [0, 1, 0], sizes = [16, 16, 64], strides = [1, 1, 1]} : vector<18x18x64xf32> to vector<16x16x64xf32>
    %60 = vector.shape_cast %59 : vector<16x16x64xf32> to vector<256x64xf32>
    %61 = arith.truncf %60 : vector<256x64xf32> to vector<256x64xbf16>
    %c0_33 = arith.constant 0 : index
    %c64_34 = arith.constant 64 : index
    %62 = vector.load %arg10[%c0_33, %c64_34] : memref<256x576xbf16, #tpu.memory_space<vmem>>, vector<256x64xbf16>
    tpu.vector_store %arg10[%c0_33, %c64_34], %61 {strides = array<i32>} : memref<256x576xbf16, #tpu.memory_space<vmem>>, vector<256x64xbf16>,
    %63 = vector.extract_strided_slice %54 {offsets = [0, 2, 0], sizes = [16, 16, 64], strides = [1, 1, 1]} : vector<18x18x64xf32> to vector<16x16x64xf32>
    %64 = vector.shape_cast %63 : vector<16x16x64xf32> to vector<256x64xf32>
    %65 = arith.truncf %64 : vector<256x64xf32> to vector<256x64xbf16>
    %c0_35 = arith.constant 0 : index
    %c128_36 = arith.constant 128 : index
    %66 = vector.load %arg10[%c0_35, %c128_36] : memref<256x576xbf16, #tpu.memory_space<vmem>>, vector<256x64xbf16>
    tpu.vector_store %arg10[%c0_35, %c128_36], %65 {strides = array<i32>} : memref<256x576xbf16, #tpu.memory_space<vmem>>, vector<256x64xbf16>,
    %67 = vector.extract_strided_slice %54 {offsets = [1, 0, 0], sizes = [16, 16, 64], strides = [1, 1, 1]} : vector<18x18x64xf32> to vector<16x16x64xf32>
    %68 = vector.shape_cast %67 : vector<16x16x64xf32> to vector<256x64xf32>
    %69 = arith.truncf %68 : vector<256x64xf32> to vector<256x64xbf16>
    %c0_37 = arith.constant 0 : index
    %c192_38 = arith.constant 192 : index
    %70 = vector.load %arg10[%c0_37, %c192_38] : memref<256x576xbf16, #tpu.memory_space<vmem>>, vector<256x64xbf16>
    tpu.vector_store %arg10[%c0_37, %c192_38], %69 {strides = array<i32>} : memref<256x576xbf16, #tpu.memory_space<vmem>>, vector<256x64xbf16>,
    %71 = vector.extract_strided_slice %54 {offsets = [1, 1, 0], sizes = [16, 16, 64], strides = [1, 1, 1]} : vector<18x18x64xf32> to vector<16x16x64xf32>
    %72 = vector.shape_cast %71 : vector<16x16x64xf32> to vector<256x64xf32>
    %73 = arith.truncf %72 : vector<256x64xf32> to vector<256x64xbf16>
    %c0_39 = arith.constant 0 : index
    %c256_40 = arith.constant 256 : index
    %74 = vector.load %arg10[%c0_39, %c256_40] : memref<256x576xbf16, #tpu.memory_space<vmem>>, vector<256x64xbf16>
    tpu.vector_store %arg10[%c0_39, %c256_40], %73 {strides = array<i32>} : memref<256x576xbf16, #tpu.memory_space<vmem>>, vector<256x64xbf16>,
    %75 = vector.extract_strided_slice %54 {offsets = [1, 2, 0], sizes = [16, 16, 64], strides = [1, 1, 1]} : vector<18x18x64xf32> to vector<16x16x64xf32>
    %76 = vector.shape_cast %75 : vector<16x16x64xf32> to vector<256x64xf32>
    %77 = arith.truncf %76 : vector<256x64xf32> to vector<256x64xbf16>
    %c0_41 = arith.constant 0 : index
    %c320_42 = arith.constant 320 : index
    %78 = vector.load %arg10[%c0_41, %c320_42] : memref<256x576xbf16, #tpu.memory_space<vmem>>, vector<256x64xbf16>
    tpu.vector_store %arg10[%c0_41, %c320_42], %77 {strides = array<i32>} : memref<256x576xbf16, #tpu.memory_space<vmem>>, vector<256x64xbf16>,
    %79 = vector.extract_strided_slice %54 {offsets = [2, 0, 0], sizes = [16, 16, 64], strides = [1, 1, 1]} : vector<18x18x64xf32> to vector<16x16x64xf32>
    %80 = vector.shape_cast %79 : vector<16x16x64xf32> to vector<256x64xf32>
    %81 = arith.truncf %80 : vector<256x64xf32> to vector<256x64xbf16>
    %c0_43 = arith.constant 0 : index
    %c384_44 = arith.constant 384 : index
    %82 = vector.load %arg10[%c0_43, %c384_44] : memref<256x576xbf16, #tpu.memory_space<vmem>>, vector<256x64xbf16>
    tpu.vector_store %arg10[%c0_43, %c384_44], %81 {strides = array<i32>} : memref<256x576xbf16, #tpu.memory_space<vmem>>, vector<256x64xbf16>,
    %83 = vector.extract_strided_slice %54 {offsets = [2, 1, 0], sizes = [16, 16, 64], strides = [1, 1, 1]} : vector<18x18x64xf32> to vector<16x16x64xf32>
    %84 = vector.shape_cast %83 : vector<16x16x64xf32> to vector<256x64xf32>
    %85 = arith.truncf %84 : vector<256x64xf32> to vector<256x64xbf16>
    %c0_45 = arith.constant 0 : index
    %c448_46 = arith.constant 448 : index
    %86 = vector.load %arg10[%c0_45, %c448_46] : memref<256x576xbf16, #tpu.memory_space<vmem>>, vector<256x64xbf16>
    tpu.vector_store %arg10[%c0_45, %c448_46], %85 {strides = array<i32>} : memref<256x576xbf16, #tpu.memory_space<vmem>>, vector<256x64xbf16>,
    %87 = vector.extract_strided_slice %54 {offsets = [2, 2, 0], sizes = [16, 16, 64], strides = [1, 1, 1]} : vector<18x18x64xf32> to vector<16x16x64xf32>
    %88 = vector.shape_cast %87 : vector<16x16x64xf32> to vector<256x64xf32>
    %89 = arith.truncf %88 : vector<256x64xf32> to vector<256x64xbf16>
    %c0_47 = arith.constant 0 : index
    %c512_48 = arith.constant 512 : index
    %90 = vector.load %arg10[%c0_47, %c512_48] : memref<256x576xbf16, #tpu.memory_space<vmem>>, vector<256x64xbf16>
    tpu.vector_store %arg10[%c0_47, %c512_48], %89 {strides = array<i32>} : memref<256x576xbf16, #tpu.memory_space<vmem>>, vector<256x64xbf16>,
    %c0_49 = arith.constant 0 : index
    %c0_50 = arith.constant 0 : index
    %91 = vector.load %arg10[%c0_49, %c0_50] : memref<256x576xbf16, #tpu.memory_space<vmem>>, vector<256x576xbf16>
    %c0_51 = arith.constant 0 : index
    %c0_52 = arith.constant 0 : index
    %92 = vector.load %arg3[%c0_51, %c0_52] : memref<576x64xbf16, #tpu.memory_space<vmem>>, vector<576x64xbf16>
    %cst_53 = arith.constant dense<0.000000e+00> : vector<256x64xf32>
    %93 = tpu.matmul %91, %92, %cst_53 {dimension_numbers = #tpu.dot_dimension_numbers<[1], [0], [0], [1], [0, 0, 1, 1], [], []>} : vector<256x576xbf16>, vector<576x64xbf16>, vector<256x64xf32> -> vector<256x64xf32>
    %c0_54 = arith.constant 0 : index
    %c0_55 = arith.constant 0 : index
    %94 = vector.load %arg6[%c0_54, %c0_55] : memref<1x64xf32, #tpu.memory_space<vmem>>, vector<1x64xf32>
    %95 = vector.broadcast %94 : vector<1x64xf32> to vector<256x64xf32>
    %96 = arith.mulf %93, %95 : vector<256x64xf32>
    %c0_56 = arith.constant 0 : index
    %c0_57 = arith.constant 0 : index
    %97 = vector.load %arg7[%c0_56, %c0_57] : memref<1x64xf32, #tpu.memory_space<vmem>>, vector<1x64xf32>
    %98 = vector.broadcast %97 : vector<1x64xf32> to vector<256x64xf32>
    %99 = arith.addf %96, %98 : vector<256x64xf32>
    %100 = vector.extract_strided_slice %2 {offsets = [1, 1, 0], sizes = [16, 16, 64], strides = [1, 1, 1]} : vector<18x18x64xf32> to vector<16x16x64xf32>
    %101 = vector.shape_cast %100 : vector<16x16x64xf32> to vector<256x64xf32>
    %102 = arith.addf %99, %101 : vector<256x64xf32>
    %cst_58 = arith.constant 0.000000e+00 : f32
    %103 = vector.broadcast %cst_58 : f32 to vector<256x64xf32>
    %104 = arith.maximumf %102, %103 : vector<256x64xf32>
    %c0_59 = arith.constant 0 : index
    %c0_60 = arith.constant 0 : index
    %c0_61 = arith.constant 0 : index
    %105 = vector.load %arg8[%c0_59, %c0_60, %c0_61] : memref<1x256x64xf32, #tpu.memory_space<vmem>>, vector<1x256x64xf32>
    %106 = vector.shape_cast %105 : vector<1x256x64xf32> to vector<256x64xf32>
    %107 = vector.shape_cast %104 : vector<256x64xf32> to vector<1x256x64xf32>
    tpu.vector_store %arg8[%c0_59, %c0_60, %c0_61], %107 {strides = array<i32>} : memref<1x256x64xf32, #tpu.memory_space<vmem>>, vector<1x256x64xf32>,
    return
  }
  func.func @transform_0(%arg0: i32) -> (i32, i32, i32, i32) {
    %c0_i32 = arith.constant 0 : i32
    %c0_i32_0 = arith.constant 0 : i32
    %c0_i32_1 = arith.constant 0 : i32
    %c0_i32_2 = arith.constant 0 : i32
    return %arg0, %c0_i32, %c0_i32_0, %c0_i32_1 : i32, i32, i32, i32
  }
  func.func @transform_1(%arg0: i32) -> (i32, i32) {
    %c0_i32 = arith.constant 0 : i32
    %c0_i32_0 = arith.constant 0 : i32
    %c0_i32_1 = arith.constant 0 : i32
    return %c0_i32, %c0_i32_0 : i32, i32
  }
  func.func @transform_2(%arg0: i32) -> (i32, i32) {
    %c0_i32 = arith.constant 0 : i32
    %c0_i32_0 = arith.constant 0 : i32
    %c0_i32_1 = arith.constant 0 : i32
    return %c0_i32, %c0_i32_0 : i32, i32
  }
  func.func @transform_3(%arg0: i32) -> (i32, i32) {
    %c0_i32 = arith.constant 0 : i32
    %c0_i32_0 = arith.constant 0 : i32
    %c0_i32_1 = arith.constant 0 : i32
    return %c0_i32, %c0_i32_0 : i32, i32
  }
  func.func @transform_4(%arg0: i32) -> (i32, i32) {
    %c0_i32 = arith.constant 0 : i32
    %c0_i32_0 = arith.constant 0 : i32
    %c0_i32_1 = arith.constant 0 : i32
    return %c0_i32, %c0_i32_0 : i32, i32
  }
  func.func @transform_5(%arg0: i32) -> (i32, i32) {
    %c0_i32 = arith.constant 0 : i32
    %c0_i32_0 = arith.constant 0 : i32
    %c0_i32_1 = arith.constant 0 : i32
    return %c0_i32, %c0_i32_0 : i32, i32
  }
  func.func @transform_6(%arg0: i32) -> (i32, i32) {
    %c0_i32 = arith.constant 0 : i32
    %c0_i32_0 = arith.constant 0 : i32
    %c0_i32_1 = arith.constant 0 : i32
    return %c0_i32, %c0_i32_0 : i32, i32
  }
  func.func @transform_7(%arg0: i32) -> (i32, i32, i32) {
    %c0_i32 = arith.constant 0 : i32
    %c0_i32_0 = arith.constant 0 : i32
    %c0_i32_1 = arith.constant 0 : i32
    return %arg0, %c0_i32, %c0_i32_0 : i32, i32, i32
  }
}

</mosaic_0001>

<llo_original>
// kernel: basic_block_forward.1
$region0: #{basic_block_forward.1}
  #allocation0 [shape = 'u32[]', space=smem, size = 0x4, offset = 0x4, fixed_abs, tag = 'smem constant byte address 0x4 - core index']
  #allocation1 [shape = 'u32[144,128]{1,0:T(1,128)}', space=vmem, size = 0x12000, scoped, tag = 'internal scratch']
  #allocation2 [shape = 'f32[18,18,64]{2,1,0:T(8,128)}', space=vmem, size = 0x36000, scoped, tag = 'scratch operand']
  #allocation3 [shape = 'bf16[256,576]{1,0:T(8,128)(2,1)}', space=vmem, size = 0x50000, scoped, tag = 'scratch operand']
  %s0 = inlined_call_operand.vmem [shape: bf16[2,18,18,64], index: 0, kind: input, shape index: {}]
  %s1 = inlined_call_operand.vmem [shape: bf16[576,64], index: 1, kind: input, shape index: {}]
  %s2 = inlined_call_operand.vmem [shape: bf16[576,64], index: 2, kind: input, shape index: {}]
  %s3 = inlined_call_operand.vmem [shape: f32[1,64], index: 3, kind: input, shape index: {}]
  %s4 = inlined_call_operand.vmem [shape: f32[1,64], index: 4, kind: input, shape index: {}]
  %s5 = inlined_call_operand.vmem [shape: f32[1,64], index: 5, kind: input, shape index: {}]
  %s6 = inlined_call_operand.vmem [shape: f32[1,64], index: 6, kind: input, shape index: {}]
  %s7 = inlined_call_operand.hbm [shape: f32[2,256,64], index: 7, kind: output, shape index: {}]
  %s8 = sld [smem:[#allocation0]]
  $region61: #{basic_block_forward.1} parent=0
    _
  %s10 = ssub.s32 1, %s8
  %s11 = scalar_select 0, %s10, %s8
  $region1: #{basic_block_forward.1} parent=0
    #allocation4 [shape = 'u8[262144]{0}', space=vmem, size = 0x40000, scoped, tag = 'output window, operand 0']
    #allocation5 [shape = 's32[2]{0}', space=sflag, size = 0x8, scoped, tag = 'scoped memory for basic_block_forward.1']
    %12 = vsyncpa [#allocation5], 0
    %s13 = scalar_lea.sflag [#allocation5], 1
    %14 = vsyncpa %s13, 0
    loop: start=0, step=1, limit=4
    $region2: #{basic_block_forward.1} parent=1 // loop_pre_header
      _
    $region3: #{basic_block_forward.1} parent=1 // loop_header
      %s16 = sphi 0, %s20
      %p17 = scmp.ge.s32.totalorder %s16, 4
      %s26 = sphi 0, %s28
      %s29 = sphi 0, %s26
      %s30 = sphi 0, %s29
      %s46 = sphi 0, %s30
      %s50 = sphi 0, %s50
      %s52 = sphi 0, %s50
      %s53 = sphi 0, %s52
      %s67 = sphi 0, %s53
      %s71 = sphi 0, %s71
      %s73 = sphi 0, %s71
      %s74 = sphi 0, %s73
      %s88 = sphi 0, %s74
      %s92 = sphi 0, %s92
      %s94 = sphi 0, %s92
      %s95 = sphi 0, %s94
      %s109 = sphi 0, %s95
      %s113 = sphi 0, %s113
      %s115 = sphi 0, %s113
      %s116 = sphi 0, %s115
      %s130 = sphi 0, %s116
      %s134 = sphi 0, %s134
      %s136 = sphi 0, %s134
      %s137 = sphi 0, %s136
      %s151 = sphi 0, %s137
      %s155 = sphi 0, %s155
      %s157 = sphi 0, %s155
      %s158 = sphi 0, %s157
      %s172 = sphi 0, %s158
      %s178 = sphi 0, %s180
      %s181 = sphi 0, %s178
      %s182 = sphi 0, %s181
      %s198 = sphi 0, %s182
    $region4: #{basic_block_forward.1} parent=1 // loop_header_branch
      %19 = sbr.rel (%p17) target = $region8
    $region5: #{basic_block_forward.1} parent=1 // loop_body
      %s21 = ssub.s32 %s16, 1
      %s22 = ssub.s32 %s16, 2
      %s23 = sadd.s32 %s16, 1
      %s24 = ssub.s32 %s16, %s23
      %p25 = scmp.eq.s32.totalorder %s24, 0
      %s27 = sadd.s32 %s26, 1
      %s28 = scalar_select %p25, %s26, %s27
      %p31 = pneg %p25
      %p32 = scmp.eq.s32.totalorder %s16, 1
      %p33 = por %p31, %p32
      %p34 = scmp.ne.s32.totalorder %s26, %s29
      %p35 = scmp.eq.s32.totalorder %s16, 0
      %p36 = por %p34, %p35
      %p37 = scmp.ne.s32.totalorder %s26, %s29
      %p38 = scmp.eq.s32.totalorder %s21, 1
      %p39 = por %p37, %p38
      %p40 = scmp.ne.s32.totalorder %s29, %s30
      %p41 = scmp.eq.s32.totalorder %s21, 0
      %p42 = por %p40, %p41
      %p43 = scmp.ne.s32.totalorder %s29, %s30
      %p44 = scmp.eq.s32.totalorder %s22, 1
      %p45 = por %p43, %p44
      %p47 = scmp.ne.s32.totalorder %s30, %s46
      %p48 = scmp.eq.s32.totalorder %s22, 0
      %p49 = por %p47, %p48
      %s51 = sadd.s32 %s50, 1
      %p54 = scmp.eq.s32.totalorder %s16, 1
      %p55 = scmp.ne.s32.totalorder %s50, %s52
      %p56 = scmp.eq.s32.totalorder %s16, 0
      %p57 = por %p55, %p56
      %p58 = scmp.ne.s32.totalorder %s50, %s52
      %p59 = scmp.eq.s32.totalorder %s21, 1
      %p60 = por %p58, %p59
      %p61 = scmp.ne.s32.totalorder %s52, %s53
      %p62 = scmp.eq.s32.totalorder %s21, 0
      %p63 = por %p61, %p62
      %p64 = scmp.ne.s32.totalorder %s52, %s53
      %p65 = scmp.eq.s32.totalorder %s22, 1
      %p66 = por %p64, %p65
      %p68 = scmp.ne.s32.totalorder %s53, %s67
      %p69 = scmp.eq.s32.totalorder %s22, 0
      %p70 = por %p68, %p69
      %s72 = sadd.s32 %s71, 1
      %p75 = scmp.eq.s32.totalorder %s16, 1
      %p76 = scmp.ne.s32.totalorder %s71, %s73
      %p77 = scmp.eq.s32.totalorder %s16, 0
      %p78 = por %p76, %p77
      %p79 = scmp.ne.s32.totalorder %s71, %s73
      %p80 = scmp.eq.s32.totalorder %s21, 1
      %p81 = por %p79, %p80
      %p82 = scmp.ne.s32.totalorder %s73, %s74
      %p83 = scmp.eq.s32.totalorder %s21, 0
      %p84 = por %p82, %p83
      %p85 = scmp.ne.s32.totalorder %s73, %s74
      %p86 = scmp.eq.s32.totalorder %s22, 1
      %p87 = por %p85, %p86
      %p89 = scmp.ne.s32.totalorder %s74, %s88
      %p90 = scmp.eq.s32.totalorder %s22, 0
      %p91 = por %p89, %p90
      %s93 = sadd.s32 %s92, 1
      %p96 = scmp.eq.s32.totalorder %s16, 1
      %p97 = scmp.ne.s32.totalorder %s92, %s94
      %p98 = scmp.eq.s32.totalorder %s16, 0
      %p99 = por %p97, %p98
      %p100 = scmp.ne.s32.totalorder %s92, %s94
      %p101 = scmp.eq.s32.totalorder %s21, 1
      %p102 = por %p100, %p101
      %p103 = scmp.ne.s32.totalorder %s94, %s95
      %p104 = scmp.eq.s32.totalorder %s21, 0
      %p105 = por %p103, %p104
      %p106 = scmp.ne.s32.totalorder %s94, %s95
      %p107 = scmp.eq.s32.totalorder %s22, 1
      %p108 = por %p106, %p107
      %p110 = scmp.ne.s32.totalorder %s95, %s109
      %p111 = scmp.eq.s32.totalorder %s22, 0
      %p112 = por %p110, %p111
      %s114 = sadd.s32 %s113, 1
      %p117 = scmp.eq.s32.totalorder %s16, 1
      %p118 = scmp.ne.s32.totalorder %s113, %s115
      %p119 = scmp.eq.s32.totalorder %s16, 0
      %p120 = por %p118, %p119
      %p121 = scmp.ne.s32.totalorder %s113, %s115
      %p122 = scmp.eq.s32.totalorder %s21, 1
      %p123 = por %p121, %p122
      %p124 = scmp.ne.s32.totalorder %s115, %s116
      %p125 = scmp.eq.s32.totalorder %s21, 0
      %p126 = por %p124, %p125
      %p127 = scmp.ne.s32.totalorder %s115, %s116
      %p128 = scmp.eq.s32.totalorder %s22, 1
      %p129 = por %p127, %p128
      %p131 = scmp.ne.s32.totalorder %s116, %s130
      %p132 = scmp.eq.s32.totalorder %s22, 0
      %p133 = por %p131, %p132
      %s135 = sadd.s32 %s134, 1
      %p138 = scmp.eq.s32.totalorder %s16, 1
      %p139 = scmp.ne.s32.totalorder %s134, %s136
      %p140 = scmp.eq.s32.totalorder %s16, 0
      %p141 = por %p139, %p140
      %p142 = scmp.ne.s32.totalorder %s134, %s136
      %p143 = scmp.eq.s32.totalorder %s21, 1
      %p144 = por %p142, %p143
      %p145 = scmp.ne.s32.totalorder %s136, %s137
      %p146 = scmp.eq.s32.totalorder %s21, 0
      %p147 = por %p145, %p146
      %p148 = scmp.ne.s32.totalorder %s136, %s137
      %p149 = scmp.eq.s32.totalorder %s22, 1
      %p150 = por %p148, %p149
      %p152 = scmp.ne.s32.totalorder %s137, %s151
      %p153 = scmp.eq.s32.totalorder %s22, 0
      %p154 = por %p152, %p153
      %s156 = sadd.s32 %s155, 1
      %p159 = scmp.eq.s32.totalorder %s16, 1
      %p160 = scmp.ne.s32.totalorder %s155, %s157
      %p161 = scmp.eq.s32.totalorder %s16, 0
      %p162 = por %p160, %p161
      %p163 = scmp.ne.s32.totalorder %s155, %s157
      %p164 = scmp.eq.s32.totalorder %s21, 1
      %p165 = por %p163, %p164
      %p166 = scmp.ne.s32.totalorder %s157, %s158
      %p167 = scmp.eq.s32.totalorder %s21, 0
      %p168 = por %p166, %p167
      %p169 = scmp.ne.s32.totalorder %s157, %s158
      %p170 = scmp.eq.s32.totalorder %s22, 1
      %p171 = por %p169, %p170
      %p173 = scmp.ne.s32.totalorder %s158, %s172
      %p174 = scmp.eq.s32.totalorder %s22, 0
      %p175 = por %p173, %p174
      %s176 = ssub.s32 %s16, %s23
      %p177 = scmp.eq.s32.totalorder %s176, 0
      %s179 = sadd.s32 %s178, 1
      %s180 = scalar_select %p177, %s178, %s179
      %p183 = pneg %p177
      %p184 = scmp.eq.s32.totalorder %s16, 1
      %p185 = por %p183, %p184
      %p186 = scmp.ne.s32.totalorder %s178, %s181
      %p187 = scmp.eq.s32.totalorder %s16, 0
      %p188 = por %p186, %p187
      %p189 = scmp.ne.s32.totalorder %s178, %s181
      %p190 = scmp.eq.s32.totalorder %s21, 1
      %p191 = por %p189, %p190
      %p192 = scmp.ne.s32.totalorder %s181, %s182
      %p193 = scmp.eq.s32.totalorder %s21, 0
      %p194 = por %p192, %p193
      %p195 = scmp.ne.s32.totalorder %s181, %s182
      %p196 = scmp.eq.s32.totalorder %s22, 1
      %p197 = por %p195, %p196
      %p199 = scmp.ne.s32.totalorder %s182, %s198
      %p200 = scmp.eq.s32.totalorder %s22, 0
      %p201 = por %p199, %p200
      %p202 = scmp.le.s32.totalorder 1, %s16
      %p203 = scmp.lt.s32.totalorder %s16, 3
      %p204 = pnand %p202, %p203
      %p205 = pneg %p204
      // Predicated region
      $region9: #{basic_block_forward.1} parent=5 // pred_check
        _
      $region10: #{basic_block_forward.1} parent=5 // pred_check_branch
        %207 = sbr.rel (%p204) target = $region12
      $region11: #{basic_block_forward.1} parent=5 // pred_region
        %s208 = ssub.s32 %s16, 1
        // Predicated region
        $region13: #{basic_block_forward.1} parent=11 // pred_check
          %p209 = pneg %p63
        $region14: #{basic_block_forward.1} parent=11 // pred_check_branch
          %211 = sbr.rel (%p209) target = $region16
        $region15: #{basic_block_forward.1} parent=11 // pred_region
          _
        $region16: #{basic_block_forward.1} parent=11 // pred_fallthru
          _
        // Predicated region
        $region17: #{basic_block_forward.1} parent=11 // pred_check
          %p212 = pneg %p84
        $region18: #{basic_block_forward.1} parent=11 // pred_check_branch
          %214 = sbr.rel (%p212) target = $region20
        $region19: #{basic_block_forward.1} parent=11 // pred_region
          _
        $region20: #{basic_block_forward.1} parent=11 // pred_fallthru
          _
        // Predicated region
        $region21: #{basic_block_forward.1} parent=11 // pred_check
          %p215 = pneg %p105
        $region22: #{basic_block_forward.1} parent=11 // pred_check_branch
          %217 = sbr.rel (%p215) target = $region24
        $region23: #{basic_block_forward.1} parent=11 // pred_region
          _
        $region24: #{basic_block_forward.1} parent=11 // pred_fallthru
          _
        // Predicated region
        $region25: #{basic_block_forward.1} parent=11 // pred_check
          %p218 = pneg %p126
        $region26: #{basic_block_forward.1} parent=11 // pred_check_branch
          %220 = sbr.rel (%p218) target = $region28
        $region27: #{basic_block_forward.1} parent=11 // pred_region
          _
        $region28: #{basic_block_forward.1} parent=11 // pred_fallthru
          _
        // Predicated region
        $region29: #{basic_block_forward.1} parent=11 // pred_check
          %p221 = pneg %p147
        $region30: #{basic_block_forward.1} parent=11 // pred_check_branch
          %223 = sbr.rel (%p221) target = $region32
        $region31: #{basic_block_forward.1} parent=11 // pred_region
          _
        $region32: #{basic_block_forward.1} parent=11 // pred_fallthru
          _
        // Predicated region
        $region33: #{basic_block_forward.1} parent=11 // pred_check
          %p224 = pneg %p168
        $region34: #{basic_block_forward.1} parent=11 // pred_check_branch
          %226 = sbr.rel (%p224) target = $region36
        $region35: #{basic_block_forward.1} parent=11 // pred_region
          _
        $region36: #{basic_block_forward.1} parent=11 // pred_fallthru
          _
      $region12: #{basic_block_forward.1} parent=5 // pred_fallthru
        _
      %p227 = scmp.lt.s32.totalorder %s16, 2
      // Predicated region
      $region37: #{basic_block_forward.1} parent=5 // pred_check
        %p228 = pneg %p227
      $region38: #{basic_block_forward.1} parent=5 // pred_check_branch
        %230 = sbr.rel (%p228) target = $region40
      $region39: #{basic_block_forward.1} parent=5 // pred_region
        // Predicated region
        $region41: #{basic_block_forward.1} parent=39 // pred_check
          %p231 = pneg %p36
        $region42: #{basic_block_forward.1} parent=39 // pred_check_branch
          %233 = sbr.rel (%p231) target = $region44
        $region43: #{basic_block_forward.1} parent=39 // pred_region
          %p234 = scmp.lt.s32.totalorder %s16, 1
          %s235 = scalar_select %p234, %s16, 1
          %s236 = smul.addr %s235, 54
          %s237 = smul.addr %s236, 4
          %s238 = scalar_lea.vmem %s0, %s237
        $region44: #{basic_block_forward.1} parent=39 // pred_fallthru
          _
      $region40: #{basic_block_forward.1} parent=5 // pred_fallthru
        _
      %p239 = scmp.le.s32.totalorder 1, %s16
      %p240 = scmp.lt.s32.totalorder %s16, 3
      %p241 = pnand %p239, %p240
      %p242 = pneg %p241
      // Predicated region
      $region45: #{basic_block_forward.1} parent=5 // pred_check
        _
      $region46: #{basic_block_forward.1} parent=5 // pred_check_branch
        %244 = sbr.rel (%p241) target = $region48
      $region47: #{basic_block_forward.1} parent=5 // pred_region
        %s245 = ssub.s32 %s16, 1
        %p246 = scmp.lt.s32.totalorder %s21, 1
        %s247 = scalar_select %p246, %s21, 1
        %s248 = smul.addr %s247, 54
        %s249 = smul.addr %s248, 4
        %s250 = scalar_lea.vmem %s0, %s249
        %p251 = pneg %p42
        %p252 = pneg %p39
        %p253 = pneg %p63
        %p254 = pneg %p60
        %p255 = pneg %p84
        %p256 = pneg %p81
        %p257 = pneg %p105
        %p258 = pneg %p102
        %p259 = pneg %p126
        %p260 = pneg %p123
        %p261 = pneg %p147
        %p262 = pneg %p144
        %p263 = pneg %p168
        %p264 = pneg %p165
        %p265 = pneg %p194
        %p266 = pneg %p191
        %s267 = sand.u32 %s181, 1
        %s268 = scalar_lea.sflag [#allocation5], %s267
        %s269 = sand.u32 %s181, 1
        %s270 = smul.addr %s269, 256
        %s271 = scalar_lea.vmem [#allocation4], %s270
        %p272 = scmp.lt.s32.totalorder %s21, 1
        %s273 = scalar_select %p272, %s21, 1
        %s274 = smul.addr %s273, 54
        %s275 = smul.addr %s274, 4
        %s276 = scalar_lea.vmem %s0, %s275
        %v278 = vld [vmem:[%s276] sm:$0xf]
        %v279 = vld [vmem:[%s276 + $0x4] sm:$0xf]
        %v280 = vld [vmem:[%s276 + $0x8] sm:$0x1]
        %v281 = vld [vmem:[%s276 + $0xc] sm:$0xf]
        %v282 = vld [vmem:[%s276 + $0x10] sm:$0xf]
        %v283 = vld [vmem:[%s276 + $0x14] sm:$0x1]
        %v284 = vld [vmem:[%s276 + $0x18] sm:$0xf]
        %v285 = vld [vmem:[%s276 + $0x1c] sm:$0xf]
        %v286 = vld [vmem:[%s276 + $0x20] sm:$0x1]
        %v287 = vld [vmem:[%s276 + $0x24] sm:$0xf]
        %v288 = vld [vmem:[%s276 + $0x28] sm:$0xf]
        %v289 = vld [vmem:[%s276 + $0x2c] sm:$0x1]
        %v290 = vld [vmem:[%s276 + $0x30] sm:$0xf]
        %v291 = vld [vmem:[%s276 + $0x34] sm:$0xf]
        %v292 = vld [vmem:[%s276 + $0x38] sm:$0x1]
        %v293 = vld [vmem:[%s276 + $0x3c] sm:$0xf]
        %v294 = vld [vmem:[%s276 + $0x40] sm:$0xf]
        %v295 = vld [vmem:[%s276 + $0x44] sm:$0x1]
        %v296 = vld [vmem:[%s276 + $0x48] sm:$0xf]
        %v297 = vld [vmem:[%s276 + $0x4c] sm:$0xf]
        %v298 = vld [vmem:[%s276 + $0x50] sm:$0x1]
        %v299 = vld [vmem:[%s276 + $0x54] sm:$0xf]
        %v300 = vld [vmem:[%s276 + $0x58] sm:$0xf]
        %v301 = vld [vmem:[%s276 + $0x5c] sm:$0x1]
        %v302 = vld [vmem:[%s276 + $0x60] sm:$0xf]
        %v303 = vld [vmem:[%s276 + $0x64] sm:$0xf]
        %v304 = vld [vmem:[%s276 + $0x68] sm:$0x1]
        %v305 = vld [vmem:[%s276 + $0x6c] sm:$0xf]
        %v306 = vld [vmem:[%s276 + $0x70] sm:$0xf]
        %v307 = vld [vmem:[%s276 + $0x74] sm:$0x1]
        %v308 = vld [vmem:[%s276 + $0x78] sm:$0xf]
        %v309 = vld [vmem:[%s276 + $0x7c] sm:$0xf]
        %v310 = vld [vmem:[%s276 + $0x80] sm:$0x1]
        %v311 = vld [vmem:[%s276 + $0x84] sm:$0xf]
        %v312 = vld [vmem:[%s276 + $0x88] sm:$0xf]
        %v313 = vld [vmem:[%s276 + $0x8c] sm:$0x1]
        %v314 = vld [vmem:[%s276 + $0x90] sm:$0xf]
        %v315 = vld [vmem:[%s276 + $0x94] sm:$0xf]
        %v316 = vld [vmem:[%s276 + $0x98] sm:$0x1]
        %v317 = vld [vmem:[%s276 + $0x9c] sm:$0xf]
        %v318 = vld [vmem:[%s276 + $0xa0] sm:$0xf]
        %v319 = vld [vmem:[%s276 + $0xa4] sm:$0x1]
        %v320 = vld [vmem:[%s276 + $0xa8] sm:$0xf]
        %v321 = vld [vmem:[%s276 + $0xac] sm:$0xf]
        %v322 = vld [vmem:[%s276 + $0xb0] sm:$0x1]
        %v323 = vld [vmem:[%s276 + $0xb4] sm:$0xf]
        %v324 = vld [vmem:[%s276 + $0xb8] sm:$0xf]
        %v325 = vld [vmem:[%s276 + $0xbc] sm:$0x1]
        %v326 = vld [vmem:[%s276 + $0xc0] sm:$0xf]
        %v327 = vld [vmem:[%s276 + $0xc4] sm:$0xf]
        %v328 = vld [vmem:[%s276 + $0xc8] sm:$0x1]
        %v329 = vld [vmem:[%s276 + $0xcc] sm:$0xf]
        %v330 = vld [vmem:[%s276 + $0xd0] sm:$0xf]
        %v331 = vld [vmem:[%s276 + $0xd4] sm:$0x1]
        %v332 = vunpack.c.l.bf16 %v278
        %v333 = vunpack.c.l.bf16 %v279
        %v334 = vunpack.c.l.bf16 %v280
        %v335 = vunpack.c.l.bf16 %v281
        %v336 = vunpack.c.l.bf16 %v282
        %v337 = vunpack.c.l.bf16 %v283
        %v338 = vunpack.c.l.bf16 %v284
        %v339 = vunpack.c.l.bf16 %v285
        %v340 = vunpack.c.l.bf16 %v286
        %v341 = vunpack.c.l.bf16 %v287
        %v342 = vunpack.c.l.bf16 %v288
        %v343 = vunpack.c.l.bf16 %v289
        %v344 = vunpack.c.l.bf16 %v290
        %v345 = vunpack.c.l.bf16 %v291
        %v346 = vunpack.c.l.bf16 %v292
        %v347 = vunpack.c.l.bf16 %v293
        %v348 = vunpack.c.l.bf16 %v294
        %v349 = vunpack.c.l.bf16 %v295
        %v350 = vunpack.c.l.bf16 %v296
        %v351 = vunpack.c.l.bf16 %v297
        %v352 = vunpack.c.l.bf16 %v298
        %v353 = vunpack.c.l.bf16 %v299
        %v354 = vunpack.c.l.bf16 %v300
        %v355 = vunpack.c.l.bf16 %v301
        %v356 = vunpack.c.l.bf16 %v302
        %v357 = vunpack.c.l.bf16 %v303
        %v358 = vunpack.c.l.bf16 %v304
        %v359 = vunpack.c.l.bf16 %v305
        %v360 = vunpack.c.l.bf16 %v306
        %v361 = vunpack.c.l.bf16 %v307
        %v362 = vunpack.c.l.bf16 %v308
        %v363 = vunpack.c.l.bf16 %v309
        %v364 = vunpack.c.l.bf16 %v310
        %v365 = vunpack.c.l.bf16 %v311
        %v366 = vunpack.c.l.bf16 %v312
        %v367 = vunpack.c.l.bf16 %v313
        %v368 = vunpack.c.l.bf16 %v314
        %v369 = vunpack.c.l.bf16 %v315
        %v370 = vunpack.c.l.bf16 %v316
        %v371 = vunpack.c.l.bf16 %v317
        %v372 = vunpack.c.l.bf16 %v318
        %v373 = vunpack.c.l.bf16 %v319
        %v374 = vunpack.c.l.bf16 %v320
        %v375 = vunpack.c.l.bf16 %v321
        %v376 = vunpack.c.l.bf16 %v322
        %v377 = vunpack.c.l.bf16 %v323
        %v378 = vunpack.c.l.bf16 %v324
        %v379 = vunpack.c.l.bf16 %v325
        %v380 = vunpack.c.l.bf16 %v326
        %v381 = vunpack.c.l.bf16 %v327
        %v382 = vunpack.c.l.bf16 %v328
        %v383 = vunpack.c.l.bf16 %v329
        %v384 = vunpack.c.l.bf16 %v330
        %v385 = vunpack.c.l.bf16 %v331
        %v386 = vpack.c.bf16 %v333, %v332
        %v387 = vpack.c.bf16 %v336, %v335
        %v388 = vpack.c.bf16 %v339, %v338
        %v389 = vpack.c.bf16 %v342, %v341
        %v390 = vpack.c.bf16 %v345, %v344
        %v391 = vpack.c.bf16 %v348, %v347
        %v392 = vpack.c.bf16 %v351, %v350
        %v393 = vpack.c.bf16 %v354, %v353
        %v394 = vpack.c.bf16 %v357, %v356
        %v395 = vpack.c.bf16 %v360, %v359
        %v396 = vpack.c.bf16 %v363, %v362
        %v397 = vpack.c.bf16 %v366, %v365
        %v398 = vpack.c.bf16 %v369, %v368
        %v399 = vpack.c.bf16 %v372, %v371
        %v400 = vpack.c.bf16 %v375, %v374
        %v401 = vpack.c.bf16 %v378, %v377
        %v418 = vunpack.c.l.b16 %v386
        %v419 = vunpack.c.h.b16 %v386
        %v420 = vunpack.c.l.b16 %v387
        %v421 = vunpack.c.h.b16 %v387
        %v422 = vunpack.c.l.b16 %v388
        %v423 = vunpack.c.h.b16 %v388
        %v424 = vunpack.c.l.b16 %v389
        %v425 = vunpack.c.h.b16 %v389
        %v426 = vunpack.c.l.b16 %v390
        %v427 = vunpack.c.h.b16 %v390
        %v428 = vunpack.c.l.b16 %v391
        %v429 = vunpack.c.h.b16 %v391
        %v430 = vunpack.c.l.b16 %v392
        %v431 = vunpack.c.h.b16 %v392
        %v432 = vunpack.c.l.b16 %v393
        %v433 = vunpack.c.h.b16 %v393
        %v434 = vunpack.c.l.b16 %v394
        %v435 = vunpack.c.h.b16 %v394
        %v436 = vunpack.c.l.b16 %v395
        %v437 = vunpack.c.h.b16 %v395
        %v438 = vunpack.c.l.b16 %v396
        %v439 = vunpack.c.h.b16 %v396
        %v440 = vunpack.c.l.b16 %v397
        %v441 = vunpack.c.h.b16 %v397
        %v442 = vunpack.c.l.b16 %v398
        %v443 = vunpack.c.h.b16 %v398
        %v444 = vunpack.c.l.b16 %v399
        %v445 = vunpack.c.h.b16 %v399
        %v446 = vunpack.c.l.b16 %v400
        %v447 = vunpack.c.h.b16 %v400
        %v448 = vunpack.c.l.b16 %v401
        %v449 = vunpack.c.h.b16 %v401
        %v450 = vpack.c.b16 %v418, %v418
        %v451 = vpack.c.b16 %v419, %v419
        %v452 = vpack.c.b16 %v420, %v420
        %v453 = vpack.c.b16 %v421, %v421
        %v454 = vpack.c.b16 %v422, %v422
        %v455 = vpack.c.b16 %v423, %v423
        %v456 = vpack.c.b16 %v424, %v424
        %v457 = vpack.c.b16 %v425, %v425
        %v458 = vpack.c.b16 %v426, %v426
        %v459 = vpack.c.b16 %v427, %v427
        %v460 = vpack.c.b16 %v428, %v428
        %v461 = vpack.c.b16 %v429, %v429
        %v462 = vpack.c.b16 %v430, %v430
        %v463 = vpack.c.b16 %v431, %v431
        %v464 = vpack.c.b16 %v432, %v432
        %v465 = vpack.c.b16 %v433, %v433
        %v466 = vpack.c.b16 %v434, %v434
        %v467 = vpack.c.b16 %v435, %v435
        %v468 = vpack.c.b16 %v436, %v436
        %v469 = vpack.c.b16 %v437, %v437
        %v470 = vpack.c.b16 %v438, %v438
        %v471 = vpack.c.b16 %v439, %v439
        %v472 = vpack.c.b16 %v440, %v440
        %v473 = vpack.c.b16 %v441, %v441
        %v474 = vpack.c.b16 %v442, %v442
        %v475 = vpack.c.b16 %v443, %v443
        %v476 = vpack.c.b16 %v444, %v444
        %v477 = vpack.c.b16 %v445, %v445
        %v478 = vpack.c.b16 %v446, %v446
        %v479 = vpack.c.b16 %v447, %v447
        %v480 = vpack.c.b16 %v448, %v448
        %v481 = vpack.c.b16 %v449, %v449
        %vm514 = vcmask 519168
        %515 = vst.msk [vmem:[#allocation3] sm:$0xf] %vm514, %v450
        %516 = vst.msk [vmem:[#allocation3 + $0x14] sm:$0xf] %vm514, %v451
        %517 = vst.msk [vmem:[#allocation3 + $0x28] sm:$0xf] %vm514, %v452
        %518 = vst.msk [vmem:[#allocation3 + $0x3c] sm:$0xf] %vm514, %v453
        %519 = vst.msk [vmem:[#allocation3 + $0x50] sm:$0xf] %vm514, %v454
        %520 = vst.msk [vmem:[#allocation3 + $0x64] sm:$0xf] %vm514, %v455
        %521 = vst.msk [vmem:[#allocation3 + $0x78] sm:$0xf] %vm514, %v456
        %522 = vst.msk [vmem:[#allocation3 + $0x8c] sm:$0xf] %vm514, %v457
        %523 = vst.msk [vmem:[#allocation3 + $0xa0] sm:$0xf] %vm514, %v458
        %524 = vst.msk [vmem:[#allocation3 + $0xb4] sm:$0xf] %vm514, %v459
        %525 = vst.msk [vmem:[#allocation3 + $0xc8] sm:$0xf] %vm514, %v460
        %526 = vst.msk [vmem:[#allocation3 + $0xdc] sm:$0xf] %vm514, %v461
        %527 = vst.msk [vmem:[#allocation3 + $0xf0] sm:$0xf] %vm514, %v462
        %528 = vst.msk [vmem:[#allocation3 + $0x104] sm:$0xf] %vm514, %v463
        %529 = vst.msk [vmem:[#allocation3 + $0x118] sm:$0xf] %vm514, %v464
        %530 = vst.msk [vmem:[#allocation3 + $0x12c] sm:$0xf] %vm514, %v465
        %531 = vst.msk [vmem:[#allocation3 + $0x140] sm:$0xf] %vm514, %v466
        %532 = vst.msk [vmem:[#allocation3 + $0x154] sm:$0xf] %vm514, %v467
        %533 = vst.msk [vmem:[#allocation3 + $0x168] sm:$0xf] %vm514, %v468
        %534 = vst.msk [vmem:[#allocation3 + $0x17c] sm:$0xf] %vm514, %v469
        %535 = vst.msk [vmem:[#allocation3 + $0x190] sm:$0xf] %vm514, %v470
        %536 = vst.msk [vmem:[#allocation3 + $0x1a4] sm:$0xf] %vm514, %v471
        %537 = vst.msk [vmem:[#allocation3 + $0x1b8] sm:$0xf] %vm514, %v472
        %538 = vst.msk [vmem:[#allocation3 + $0x1cc] sm:$0xf] %vm514, %v473
        %539 = vst.msk [vmem:[#allocation3 + $0x1e0] sm:$0xf] %vm514, %v474
        %540 = vst.msk [vmem:[#allocation3 + $0x1f4] sm:$0xf] %vm514, %v475
        %541 = vst.msk [vmem:[#allocation3 + $0x208] sm:$0xf] %vm514, %v476
        %542 = vst.msk [vmem:[#allocation3 + $0x21c] sm:$0xf] %vm514, %v477
        %543 = vst.msk [vmem:[#allocation3 + $0x230] sm:$0xf] %vm514, %v478
        %544 = vst.msk [vmem:[#allocation3 + $0x244] sm:$0xf] %vm514, %v479
        %545 = vst.msk [vmem:[#allocation3 + $0x258] sm:$0xf] %vm514, %v480
        %546 = vst.msk [vmem:[#allocation3 + $0x26c] sm:$0xf] %vm514, %v481
        %vm595 = vcmask 1046528
        %v596 = vrot.slane %v332, 1
        %v597 = vrot.slane %v333, 1
        %v598 = vsel %vm595, %v596, %v597
        %v599 = vrot.slane %v334, 1
        %v600 = vsel %vm595, %v597, %v599
        %v601 = vrot.slane %v335, 1
        %v602 = vrot.slane %v336, 1
        %v603 = vsel %vm595, %v601, %v602
        %v604 = vrot.slane %v337, 1
        %v605 = vsel %vm595, %v602, %v604
        %v606 = vrot.slane %v338, 1
        %v607 = vrot.slane %v339, 1
        %v608 = vsel %vm595, %v606, %v607
        %v609 = vrot.slane %v340, 1
        %v610 = vsel %vm595, %v607, %v609
        %v611 = vrot.slane %v341, 1
        %v612 = vrot.slane %v342, 1
        %v613 = vsel %vm595, %v611, %v612
        %v614 = vrot.slane %v343, 1
        %v615 = vsel %vm595, %v612, %v614
        %v616 = vrot.slane %v344, 1
        %v617 = vrot.slane %v345, 1
        %v618 = vsel %vm595, %v616, %v617
        %v619 = vrot.slane %v346, 1
        %v620 = vsel %vm595, %v617, %v619
        %v621 = vrot.slane %v347, 1
        %v622 = vrot.slane %v348, 1
        %v623 = vsel %vm595, %v621, %v622
        %v624 = vrot.slane %v349, 1
        %v625 = vsel %vm595, %v622, %v624
        %v626 = vrot.slane %v350, 1
        %v627 = vrot.slane %v351, 1
        %v628 = vsel %vm595, %v626, %v627
        %v629 = vrot.slane %v352, 1
        %v630 = vsel %vm595, %v627, %v629
        %v631 = vrot.slane %v353, 1
        %v632 = vrot.slane %v354, 1
        %v633 = vsel %vm595, %v631, %v632
        %v634 = vrot.slane %v355, 1
        %v635 = vsel %vm595, %v632, %v634
        %v636 = vrot.slane %v356, 1
        %v637 = vrot.slane %v357, 1
        %v638 = vsel %vm595, %v636, %v637
        %v639 = vrot.slane %v358, 1
        %v640 = vsel %vm595, %v637, %v639
        %v641 = vrot.slane %v359, 1
        %v642 = vrot.slane %v360, 1
        %v643 = vsel %vm595, %v641, %v642
        %v644 = vrot.slane %v361, 1
        %v645 = vsel %vm595, %v642, %v644
        %v646 = vrot.slane %v362, 1
        %v647 = vrot.slane %v363, 1
        %v648 = vsel %vm595, %v646, %v647
        %v649 = vrot.slane %v364, 1
        %v650 = vsel %vm595, %v647, %v649
        %v651 = vrot.slane %v365, 1
        %v652 = vrot.slane %v366, 1
        %v653 = vsel %vm595, %v651, %v652
        %v654 = vrot.slane %v367, 1
        %v655 = vsel %vm595, %v652, %v654
        %v656 = vrot.slane %v368, 1
        %v657 = vrot.slane %v369, 1
        %v658 = vsel %vm595, %v656, %v657
        %v659 = vrot.slane %v370, 1
        %v660 = vsel %vm595, %v657, %v659
        %v661 = vrot.slane %v371, 1
        %v662 = vrot.slane %v372, 1
        %v663 = vsel %vm595, %v661, %v662
        %v664 = vrot.slane %v373, 1
        %v665 = vsel %vm595, %v662, %v664
        %v666 = vrot.slane %v374, 1
        %v667 = vrot.slane %v375, 1
        %v668 = vsel %vm595, %v666, %v667
        %v669 = vrot.slane %v376, 1
        %v670 = vsel %vm595, %v667, %v669
        %v671 = vrot.slane %v377, 1
        %v672 = vrot.slane %v378, 1
        %v673 = vsel %vm595, %v671, %v672
        %v674 = vrot.slane %v379, 1
        %v675 = vsel %vm595, %v672, %v674
        %v708 = vpack.c.bf16 %v600, %v598
        %v709 = vpack.c.bf16 %v605, %v603
        %v710 = vpack.c.bf16 %v610, %v608
        %v711 = vpack.c.bf16 %v615, %v613
        %v712 = vpack.c.bf16 %v620, %v618
        %v713 = vpack.c.bf16 %v625, %v623
        %v714 = vpack.c.bf16 %v630, %v628
        %v715 = vpack.c.bf16 %v635, %v633
        %v716 = vpack.c.bf16 %v640, %v638
        %v717 = vpack.c.bf16 %v645, %v643
        %v718 = vpack.c.bf16 %v650, %v648
        %v719 = vpack.c.bf16 %v655, %v653
        %v720 = vpack.c.bf16 %v660, %v658
        %v721 = vpack.c.bf16 %v665, %v663
        %v722 = vpack.c.bf16 %v670, %v668
        %v723 = vpack.c.bf16 %v675, %v673
        %v740 = vunpack.c.l.b16 %v708
        %v741 = vunpack.c.h.b16 %v708
        %v742 = vunpack.c.l.b16 %v709
        %v743 = vunpack.c.h.b16 %v709
        %v744 = vunpack.c.l.b16 %v710
        %v745 = vunpack.c.h.b16 %v710
        %v746 = vunpack.c.l.b16 %v711
        %v747 = vunpack.c.h.b16 %v711
        %v748 = vunpack.c.l.b16 %v712
        %v749 = vunpack.c.h.b16 %v712
        %v750 = vunpack.c.l.b16 %v713
        %v751 = vunpack.c.h.b16 %v713
        %v752 = vunpack.c.l.b16 %v714
        %v753 = vunpack.c.h.b16 %v714
        %v754 = vunpack.c.l.b16 %v715
        %v755 = vunpack.c.h.b16 %v715
        %v756 = vunpack.c.l.b16 %v716
        %v757 = vunpack.c.h.b16 %v716
        %v758 = vunpack.c.l.b16 %v717
        %v759 = vunpack.c.h.b16 %v717
        %v760 = vunpack.c.l.b16 %v718
        %v761 = vunpack.c.h.b16 %v718
        %v762 = vunpack.c.l.b16 %v719
        %v763 = vunpack.c.h.b16 %v719
        %v764 = vunpack.c.l.b16 %v720
        %v765 = vunpack.c.h.b16 %v720
        %v766 = vunpack.c.l.b16 %v721
        %v767 = vunpack.c.h.b16 %v721
        %v768 = vunpack.c.l.b16 %v722
        %v769 = vunpack.c.h.b16 %v722
        %v770 = vunpack.c.l.b16 %v723
        %v771 = vunpack.c.h.b16 %v723
        %v772 = vpack.c.b16 %v740, %v740
        %v773 = vpack.c.b16 %v741, %v741
        %v774 = vpack.c.b16 %v742, %v742
        %v775 = vpack.c.b16 %v743, %v743
        %v776 = vpack.c.b16 %v744, %v744
        %v777 = vpack.c.b16 %v745, %v745
        %v778 = vpack.c.b16 %v746, %v746
        %v779 = vpack.c.b16 %v747, %v747
        %v780 = vpack.c.b16 %v748, %v748
        %v781 = vpack.c.b16 %v749, %v749
        %v782 = vpack.c.b16 %v750, %v750
        %v783 = vpack.c.b16 %v751, %v751
        %v784 = vpack.c.b16 %v752, %v752
        %v785 = vpack.c.b16 %v753, %v753
        %v786 = vpack.c.b16 %v754, %v754
        %v787 = vpack.c.b16 %v755, %v755
        %v788 = vpack.c.b16 %v756, %v756
        %v789 = vpack.c.b16 %v757, %v757
        %v790 = vpack.c.b16 %v758, %v758
        %v791 = vpack.c.b16 %v759, %v759
        %v792 = vpack.c.b16 %v760, %v760
        %v793 = vpack.c.b16 %v761, %v761
        %v794 = vpack.c.b16 %v762, %v762
        %v795 = vpack.c.b16 %v763, %v763
        %v796 = vpack.c.b16 %v764, %v764
        %v797 = vpack.c.b16 %v765, %v765
        %v798 = vpack.c.b16 %v766, %v766
        %v799 = vpack.c.b16 %v767, %v767
        %v800 = vpack.c.b16 %v768, %v768
        %v801 = vpack.c.b16 %v769, %v769
        %v802 = vpack.c.b16 %v770, %v770
        %v803 = vpack.c.b16 %v771, %v771
        %804 = vrot.lane.b32.xlu0 %v772, 64
        %v805 = vpop.permute.xlu0 %804
        %806 = vrot.lane.b32.xlu0 %v773, 64
        %v807 = vpop.permute.xlu0 %806
        %808 = vrot.lane.b32.xlu0 %v774, 64
        %v809 = vpop.permute.xlu0 %808
        %810 = vrot.lane.b32.xlu0 %v775, 64
        %v811 = vpop.permute.xlu0 %810
        %812 = vrot.lane.b32.xlu0 %v776, 64
        %v813 = vpop.permute.xlu0 %812
        %814 = vrot.lane.b32.xlu0 %v777, 64
        %v815 = vpop.permute.xlu0 %814
        %816 = vrot.lane.b32.xlu0 %v778, 64
        %v817 = vpop.permute.xlu0 %816
        %818 = vrot.lane.b32.xlu0 %v779, 64
        %v819 = vpop.permute.xlu0 %818
        %820 = vrot.lane.b32.xlu0 %v780, 64
        %v821 = vpop.permute.xlu0 %820
        %822 = vrot.lane.b32.xlu0 %v781, 64
        %v823 = vpop.permute.xlu0 %822
        %824 = vrot.lane.b32.xlu0 %v782, 64
        %v825 = vpop.permute.xlu0 %824
        %826 = vrot.lane.b32.xlu0 %v783, 64
        %v827 = vpop.permute.xlu0 %826
        %828 = vrot.lane.b32.xlu0 %v784, 64
        %v829 = vpop.permute.xlu0 %828
        %830 = vrot.lane.b32.xlu0 %v785, 64
        %v831 = vpop.permute.xlu0 %830
        %832 = vrot.lane.b32.xlu0 %v786, 64
        %v833 = vpop.permute.xlu0 %832
        %834 = vrot.lane.b32.xlu0 %v787, 64
        %v835 = vpop.permute.xlu0 %834
        %836 = vrot.lane.b32.xlu0 %v788, 64
        %v837 = vpop.permute.xlu0 %836
        %838 = vrot.lane.b32.xlu0 %v789, 64
        %v839 = vpop.permute.xlu0 %838
        %840 = vrot.lane.b32.xlu0 %v790, 64
        %v841 = vpop.permute.xlu0 %840
        %842 = vrot.lane.b32.xlu0 %v791, 64
        %v843 = vpop.permute.xlu0 %842
        %844 = vrot.lane.b32.xlu0 %v792, 64
        %v845 = vpop.permute.xlu0 %844
        %846 = vrot.lane.b32.xlu0 %v793, 64
        %v847 = vpop.permute.xlu0 %846
        %848 = vrot.lane.b32.xlu0 %v794, 64
        %v849 = vpop.permute.xlu0 %848
        %850 = vrot.lane.b32.xlu0 %v795, 64
        %v851 = vpop.permute.xlu0 %850
        %852 = vrot.lane.b32.xlu0 %v796, 64
        %v853 = vpop.permute.xlu0 %852
        %854 = vrot.lane.b32.xlu0 %v797, 64
        %v855 = vpop.permute.xlu0 %854
        %856 = vrot.lane.b32.xlu0 %v798, 64
        %v857 = vpop.permute.xlu0 %856
        %858 = vrot.lane.b32.xlu0 %v799, 64
        %v859 = vpop.permute.xlu0 %858
        %860 = vrot.lane.b32.xlu0 %v800, 64
        %v861 = vpop.permute.xlu0 %860
        %862 = vrot.lane.b32.xlu0 %v801, 64
        %v863 = vpop.permute.xlu0 %862
        %864 = vrot.lane.b32.xlu0 %v802, 64
        %v865 = vpop.permute.xlu0 %864
        %866 = vrot.lane.b32.xlu0 %v803, 64
        %v867 = vpop.permute.xlu0 %866
        %vm900 = vcmask 1043968
        %901 = vst.msk [vmem:[#allocation3] sm:$0xf] %vm900, %v805
        %902 = vst.msk [vmem:[#allocation3 + $0x14] sm:$0xf] %vm900, %v807
        %903 = vst.msk [vmem:[#allocation3 + $0x28] sm:$0xf] %vm900, %v809
        %904 = vst.msk [vmem:[#allocation3 + $0x3c] sm:$0xf] %vm900, %v811
        %905 = vst.msk [vmem:[#allocation3 + $0x50] sm:$0xf] %vm900, %v813
        %906 = vst.msk [vmem:[#allocation3 + $0x64] sm:$0xf] %vm900, %v815
        %907 = vst.msk [vmem:[#allocation3 + $0x78] sm:$0xf] %vm900, %v817
        %908 = vst.msk [vmem:[#allocation3 + $0x8c] sm:$0xf] %vm900, %v819
        %909 = vst.msk [vmem:[#allocation3 + $0xa0] sm:$0xf] %vm900, %v821
        %910 = vst.msk [vmem:[#allocation3 + $0xb4] sm:$0xf] %vm900, %v823
        %911 = vst.msk [vmem:[#allocation3 + $0xc8] sm:$0xf] %vm900, %v825
        %912 = vst.msk [vmem:[#allocation3 + $0xdc] sm:$0xf] %vm900, %v827
        %913 = vst.msk [vmem:[#allocation3 + $0xf0] sm:$0xf] %vm900, %v829
        %914 = vst.msk [vmem:[#allocation3 + $0x104] sm:$0xf] %vm900, %v831
        %915 = vst.msk [vmem:[#allocation3 + $0x118] sm:$0xf] %vm900, %v833
        %916 = vst.msk [vmem:[#allocation3 + $0x12c] sm:$0xf] %vm900, %v835
        %917 = vst.msk [vmem:[#allocation3 + $0x140] sm:$0xf] %vm900, %v837
        %918 = vst.msk [vmem:[#allocation3 + $0x154] sm:$0xf] %vm900, %v839
        %919 = vst.msk [vmem:[#allocation3 + $0x168] sm:$0xf] %vm900, %v841
        %920 = vst.msk [vmem:[#allocation3 + $0x17c] sm:$0xf] %vm900, %v843
        %921 = vst.msk [vmem:[#allocation3 + $0x190] sm:$0xf] %vm900, %v845
        %922 = vst.msk [vmem:[#allocation3 + $0x1a4] sm:$0xf] %vm900, %v847
        %923 = vst.msk [vmem:[#allocation3 + $0x1b8] sm:$0xf] %vm900, %v849
        %924 = vst.msk [vmem:[#allocation3 + $0x1cc] sm:$0xf] %vm900, %v851
        %925 = vst.msk [vmem:[#allocation3 + $0x1e0] sm:$0xf] %vm900, %v853
        %926 = vst.msk [vmem:[#allocation3 + $0x1f4] sm:$0xf] %vm900, %v855
        %927 = vst.msk [vmem:[#allocation3 + $0x208] sm:$0xf] %vm900, %v857
        %928 = vst.msk [vmem:[#allocation3 + $0x21c] sm:$0xf] %vm900, %v859
        %929 = vst.msk [vmem:[#allocation3 + $0x230] sm:$0xf] %vm900, %v861
        %930 = vst.msk [vmem:[#allocation3 + $0x244] sm:$0xf] %vm900, %v863
        %931 = vst.msk [vmem:[#allocation3 + $0x258] sm:$0xf] %vm900, %v865
        %932 = vst.msk [vmem:[#allocation3 + $0x26c] sm:$0xf] %vm900, %v867
        %vm933 = vcmask 1045504
        %v934 = vrot.slane %v332, 2
        %v935 = vrot.slane %v333, 2
        %v936 = vsel %vm933, %v934, %v935
        %v937 = vrot.slane %v334, 2
        %v938 = vsel %vm933, %v935, %v937
        %v939 = vrot.slane %v335, 2
        %v940 = vrot.slane %v336, 2
        %v941 = vsel %vm933, %v939, %v940
        %v942 = vrot.slane %v337, 2
        %v943 = vsel %vm933, %v940, %v942
        %v944 = vrot.slane %v338, 2
        %v945 = vrot.slane %v339, 2
        %v946 = vsel %vm933, %v944, %v945
        %v947 = vrot.slane %v340, 2
        %v948 = vsel %vm933, %v945, %v947
        %v949 = vrot.slane %v341, 2
        %v950 = vrot.slane %v342, 2
        %v951 = vsel %vm933, %v949, %v950
        %v952 = vrot.slane %v343, 2
        %v953 = vsel %vm933, %v950, %v952
        %v954 = vrot.slane %v344, 2
        %v955 = vrot.slane %v345, 2
        %v956 = vsel %vm933, %v954, %v955
        %v957 = vrot.slane %v346, 2
        %v958 = vsel %vm933, %v955, %v957
        %v959 = vrot.slane %v347, 2
        %v960 = vrot.slane %v348, 2
        %v961 = vsel %vm933, %v959, %v960
        %v962 = vrot.slane %v349, 2
        %v963 = vsel %vm933, %v960, %v962
        %v964 = vrot.slane %v350, 2
        %v965 = vrot.slane %v351, 2
        %v966 = vsel %vm933, %v964, %v965
        %v967 = vrot.slane %v352, 2
        %v968 = vsel %vm933, %v965, %v967
        %v969 = vrot.slane %v353, 2
        %v970 = vrot.slane %v354, 2
        %v971 = vsel %vm933, %v969, %v970
        %v972 = vrot.slane %v355, 2
        %v973 = vsel %vm933, %v970, %v972
        %v974 = vrot.slane %v356, 2
        %v975 = vrot.slane %v357, 2
        %v976 = vsel %vm933, %v974, %v975
        %v977 = vrot.slane %v358, 2
        %v978 = vsel %vm933, %v975, %v977
        %v979 = vrot.slane %v359, 2
        %v980 = vrot.slane %v360, 2
        %v981 = vsel %vm933, %v979, %v980
        %v982 = vrot.slane %v361, 2
        %v983 = vsel %vm933, %v980, %v982
        %v984 = vrot.slane %v362, 2
        %v985 = vrot.slane %v363, 2
        %v986 = vsel %vm933, %v984, %v985
        %v987 = vrot.slane %v364, 2
        %v988 = vsel %vm933, %v985, %v987
        %v989 = vrot.slane %v365, 2
        %v990 = vrot.slane %v366, 2
        %v991 = vsel %vm933, %v989, %v990
        %v992 = vrot.slane %v367, 2
        %v993 = vsel %vm933, %v990, %v992
        %v994 = vrot.slane %v368, 2
        %v995 = vrot.slane %v369, 2
        %v996 = vsel %vm933, %v994, %v995
        %v997 = vrot.slane %v370, 2
        %v998 = vsel %vm933, %v995, %v997
        %v999 = vrot.slane %v371, 2
        %v1000 = vrot.slane %v372, 2
        %v1001 = vsel %vm933, %v999, %v1000
        %v1002 = vrot.slane %v373, 2
        %v1003 = vsel %vm933, %v1000, %v1002
        %v1004 = vrot.slane %v374, 2
        %v1005 = vrot.slane %v375, 2
        %v1006 = vsel %vm933, %v1004, %v1005
        %v1007 = vrot.slane %v376, 2
        %v1008 = vsel %vm933, %v1005, %v1007
        %v1009 = vrot.slane %v377, 2
        %v1010 = vrot.slane %v378, 2
        %v1011 = vsel %vm933, %v1009, %v1010
        %v1012 = vrot.slane %v379, 2
        %v1013 = vsel %vm933, %v1010, %v1012
        %v1046 = vpack.c.bf16 %v938, %v936
        %v1047 = vpack.c.bf16 %v943, %v941
        %v1048 = vpack.c.bf16 %v948, %v946
        %v1049 = vpack.c.bf16 %v953, %v951
        %v1050 = vpack.c.bf16 %v958, %v956
        %v1051 = vpack.c.bf16 %v963, %v961
        %v1052 = vpack.c.bf16 %v968, %v966
        %v1053 = vpack.c.bf16 %v973, %v971
        %v1054 = vpack.c.bf16 %v978, %v976
        %v1055 = vpack.c.bf16 %v983, %v981
        %v1056 = vpack.c.bf16 %v988, %v986
        %v1057 = vpack.c.bf16 %v993, %v991
        %v1058 = vpack.c.bf16 %v998, %v996
        %v1059 = vpack.c.bf16 %v1003, %v1001
        %v1060 = vpack.c.bf16 %v1008, %v1006
        %v1061 = vpack.c.bf16 %v1013, %v1011
        %v1078 = vunpack.c.l.b16 %v1046
        %v1079 = vunpack.c.h.b16 %v1046
        %v1080 = vunpack.c.l.b16 %v1047
        %v1081 = vunpack.c.h.b16 %v1047
        %v1082 = vunpack.c.l.b16 %v1048
        %v1083 = vunpack.c.h.b16 %v1048
        %v1084 = vunpack.c.l.b16 %v1049
        %v1085 = vunpack.c.h.b16 %v1049
        %v1086 = vunpack.c.l.b16 %v1050
        %v1087 = vunpack.c.h.b16 %v1050
        %v1088 = vunpack.c.l.b16 %v1051
        %v1089 = vunpack.c.h.b16 %v1051
        %v1090 = vunpack.c.l.b16 %v1052
        %v1091 = vunpack.c.h.b16 %v1052
        %v1092 = vunpack.c.l.b16 %v1053
        %v1093 = vunpack.c.h.b16 %v1053
        %v1094 = vunpack.c.l.b16 %v1054
        %v1095 = vunpack.c.h.b16 %v1054
        %v1096 = vunpack.c.l.b16 %v1055
        %v1097 = vunpack.c.h.b16 %v1055
        %v1098 = vunpack.c.l.b16 %v1056
        %v1099 = vunpack.c.h.b16 %v1056
        %v1100 = vunpack.c.l.b16 %v1057
        %v1101 = vunpack.c.h.b16 %v1057
        %v1102 = vunpack.c.l.b16 %v1058
        %v1103 = vunpack.c.h.b16 %v1058
        %v1104 = vunpack.c.l.b16 %v1059
        %v1105 = vunpack.c.h.b16 %v1059
        %v1106 = vunpack.c.l.b16 %v1060
        %v1107 = vunpack.c.h.b16 %v1060
        %v1108 = vunpack.c.l.b16 %v1061
        %v1109 = vunpack.c.h.b16 %v1061
        %v1110 = vpack.c.b16 %v1078, %v1078
        %v1111 = vpack.c.b16 %v1079, %v1079
        %v1112 = vpack.c.b16 %v1080, %v1080
        %v1113 = vpack.c.b16 %v1081, %v1081
        %v1114 = vpack.c.b16 %v1082, %v1082
        %v1115 = vpack.c.b16 %v1083, %v1083
        %v1116 = vpack.c.b16 %v1084, %v1084
        %v1117 = vpack.c.b16 %v1085, %v1085
        %v1118 = vpack.c.b16 %v1086, %v1086
        %v1119 = vpack.c.b16 %v1087, %v1087
        %v1120 = vpack.c.b16 %v1088, %v1088
        %v1121 = vpack.c.b16 %v1089, %v1089
        %v1122 = vpack.c.b16 %v1090, %v1090
        %v1123 = vpack.c.b16 %v1091, %v1091
        %v1124 = vpack.c.b16 %v1092, %v1092
        %v1125 = vpack.c.b16 %v1093, %v1093
        %v1126 = vpack.c.b16 %v1094, %v1094
        %v1127 = vpack.c.b16 %v1095, %v1095
        %v1128 = vpack.c.b16 %v1096, %v1096
        %v1129 = vpack.c.b16 %v1097, %v1097
        %v1130 = vpack.c.b16 %v1098, %v1098
        %v1131 = vpack.c.b16 %v1099, %v1099
        %v1132 = vpack.c.b16 %v1100, %v1100
        %v1133 = vpack.c.b16 %v1101, %v1101
        %v1134 = vpack.c.b16 %v1102, %v1102
        %v1135 = vpack.c.b16 %v1103, %v1103
        %v1136 = vpack.c.b16 %v1104, %v1104
        %v1137 = vpack.c.b16 %v1105, %v1105
        %v1138 = vpack.c.b16 %v1106, %v1106
        %v1139 = vpack.c.b16 %v1107, %v1107
        %v1140 = vpack.c.b16 %v1108, %v1108
        %v1141 = vpack.c.b16 %v1109, %v1109
        %1174 = vst.msk [vmem:[#allocation3 + $0x4] sm:$0xf] %vm514, %v1110
        %1175 = vst.msk [vmem:[#allocation3 + $0x18] sm:$0xf] %vm514, %v1111
        %1176 = vst.msk [vmem:[#allocation3 + $0x2c] sm:$0xf] %vm514, %v1112
        %1177 = vst.msk [vmem:[#allocation3 + $0x40] sm:$0xf] %vm514, %v1113
        %1178 = vst.msk [vmem:[#allocation3 + $0x54] sm:$0xf] %vm514, %v1114
        %1179 = vst.msk [vmem:[#allocation3 + $0x68] sm:$0xf] %vm514, %v1115
        %1180 = vst.msk [vmem:[#allocation3 + $0x7c] sm:$0xf] %vm514, %v1116
        %1181 = vst.msk [vmem:[#allocation3 + $0x90] sm:$0xf] %vm514, %v1117
        %1182 = vst.msk [vmem:[#allocation3 + $0xa4] sm:$0xf] %vm514, %v1118
        %1183 = vst.msk [vmem:[#allocation3 + $0xb8] sm:$0xf] %vm514, %v1119
        %1184 = vst.msk [vmem:[#allocation3 + $0xcc] sm:$0xf] %vm514, %v1120
        %1185 = vst.msk [vmem:[#allocation3 + $0xe0] sm:$0xf] %vm514, %v1121
        %1186 = vst.msk [vmem:[#allocation3 + $0xf4] sm:$0xf] %vm514, %v1122
        %1187 = vst.msk [vmem:[#allocation3 + $0x108] sm:$0xf] %vm514, %v1123
        %1188 = vst.msk [vmem:[#allocation3 + $0x11c] sm:$0xf] %vm514, %v1124
        %1189 = vst.msk [vmem:[#allocation3 + $0x130] sm:$0xf] %vm514, %v1125
        %1190 = vst.msk [vmem:[#allocation3 + $0x144] sm:$0xf] %vm514, %v1126
        %1191 = vst.msk [vmem:[#allocation3 + $0x158] sm:$0xf] %vm514, %v1127
        %1192 = vst.msk [vmem:[#allocation3 + $0x16c] sm:$0xf] %vm514, %v1128
        %1193 = vst.msk [vmem:[#allocation3 + $0x180] sm:$0xf] %vm514, %v1129
        %1194 = vst.msk [vmem:[#allocation3 + $0x194] sm:$0xf] %vm514, %v1130
        %1195 = vst.msk [vmem:[#allocation3 + $0x1a8] sm:$0xf] %vm514, %v1131
        %1196 = vst.msk [vmem:[#allocation3 + $0x1bc] sm:$0xf] %vm514, %v1132
        %1197 = vst.msk [vmem:[#allocation3 + $0x1d0] sm:$0xf] %vm514, %v1133
        %1198 = vst.msk [vmem:[#allocation3 + $0x1e4] sm:$0xf] %vm514, %v1134
        %1199 = vst.msk [vmem:[#allocation3 + $0x1f8] sm:$0xf] %vm514, %v1135
        %1200 = vst.msk [vmem:[#allocation3 + $0x20c] sm:$0xf] %vm514, %v1136
        %1201 = vst.msk [vmem:[#allocation3 + $0x220] sm:$0xf] %vm514, %v1137
        %1202 = vst.msk [vmem:[#allocation3 + $0x234] sm:$0xf] %vm514, %v1138
        %1203 = vst.msk [vmem:[#allocation3 + $0x248] sm:$0xf] %vm514, %v1139
        %1204 = vst.msk [vmem:[#allocation3 + $0x25c] sm:$0xf] %vm514, %v1140
        %1205 = vst.msk [vmem:[#allocation3 + $0x270] sm:$0xf] %vm514, %v1141
        %v1206 = vpack.c.bf16 %v381, %v380
        %v1208 = vunpack.c.l.b16 %v1206
        %v1209 = vunpack.c.h.b16 %v1206
        %v1210 = vpack.c.b16 %v1208, %v1208
        %v1211 = vpack.c.b16 %v1209, %v1209
        %1212 = vrot.lane.b32.xlu0 %v452, 64
        %v1213 = vpop.permute.xlu0 %1212
        %1214 = vrot.lane.b32.xlu0 %v453, 64
        %v1215 = vpop.permute.xlu0 %1214
        %1216 = vrot.lane.b32.xlu0 %v454, 64
        %v1217 = vpop.permute.xlu0 %1216
        %1218 = vrot.lane.b32.xlu0 %v455, 64
        %v1219 = vpop.permute.xlu0 %1218
        %1220 = vrot.lane.b32.xlu0 %v456, 64
        %v1221 = vpop.permute.xlu0 %1220
        %1222 = vrot.lane.b32.xlu0 %v457, 64
        %v1223 = vpop.permute.xlu0 %1222
        %1224 = vrot.lane.b32.xlu0 %v458, 64
        %v1225 = vpop.permute.xlu0 %1224
        %1226 = vrot.lane.b32.xlu0 %v459, 64
        %v1227 = vpop.permute.xlu0 %1226
        %1228 = vrot.lane.b32.xlu0 %v460, 64
        %v1229 = vpop.permute.xlu0 %1228
        %1230 = vrot.lane.b32.xlu0 %v461, 64
        %v1231 = vpop.permute.xlu0 %1230
        %1232 = vrot.lane.b32.xlu0 %v462, 64
        %v1233 = vpop.permute.xlu0 %1232
        %1234 = vrot.lane.b32.xlu0 %v463, 64
        %v1235 = vpop.permute.xlu0 %1234
        %1236 = vrot.lane.b32.xlu0 %v464, 64
        %v1237 = vpop.permute.xlu0 %1236
        %1238 = vrot.lane.b32.xlu0 %v465, 64
        %v1239 = vpop.permute.xlu0 %1238
        %1240 = vrot.lane.b32.xlu0 %v466, 64
        %v1241 = vpop.permute.xlu0 %1240
        %1242 = vrot.lane.b32.xlu0 %v467, 64
        %v1243 = vpop.permute.xlu0 %1242
        %1244 = vrot.lane.b32.xlu0 %v468, 64
        %v1245 = vpop.permute.xlu0 %1244
        %1246 = vrot.lane.b32.xlu0 %v469, 64
        %v1247 = vpop.permute.xlu0 %1246
        %1248 = vrot.lane.b32.xlu0 %v470, 64
        %v1249 = vpop.permute.xlu0 %1248
        %1250 = vrot.lane.b32.xlu0 %v471, 64
        %v1251 = vpop.permute.xlu0 %1250
        %1252 = vrot.lane.b32.xlu0 %v472, 64
        %v1253 = vpop.permute.xlu0 %1252
        %1254 = vrot.lane.b32.xlu0 %v473, 64
        %v1255 = vpop.permute.xlu0 %1254
        %1256 = vrot.lane.b32.xlu0 %v474, 64
        %v1257 = vpop.permute.xlu0 %1256
        %1258 = vrot.lane.b32.xlu0 %v475, 64
        %v1259 = vpop.permute.xlu0 %1258
        %1260 = vrot.lane.b32.xlu0 %v476, 64
        %v1261 = vpop.permute.xlu0 %1260
        %1262 = vrot.lane.b32.xlu0 %v477, 64
        %v1263 = vpop.permute.xlu0 %1262
        %1264 = vrot.lane.b32.xlu0 %v478, 64
        %v1265 = vpop.permute.xlu0 %1264
        %1266 = vrot.lane.b32.xlu0 %v479, 64
        %v1267 = vpop.permute.xlu0 %1266
        %1268 = vrot.lane.b32.xlu0 %v480, 64
        %v1269 = vpop.permute.xlu0 %1268
        %1270 = vrot.lane.b32.xlu0 %v481, 64
        %v1271 = vpop.permute.xlu0 %1270
        %1272 = vrot.lane.b32.xlu0 %v1210, 64
        %v1273 = vpop.permute.xlu0 %1272
        %1274 = vrot.lane.b32.xlu0 %v1211, 64
        %v1275 = vpop.permute.xlu0 %1274
        %1308 = vst.msk [vmem:[#allocation3 + $0x4] sm:$0xf] %vm900, %v1213
        %1309 = vst.msk [vmem:[#allocation3 + $0x18] sm:$0xf] %vm900, %v1215
        %1310 = vst.msk [vmem:[#allocation3 + $0x2c] sm:$0xf] %vm900, %v1217
        %1311 = vst.msk [vmem:[#allocation3 + $0x40] sm:$0xf] %vm900, %v1219
        %1312 = vst.msk [vmem:[#allocation3 + $0x54] sm:$0xf] %vm900, %v1221
        %1313 = vst.msk [vmem:[#allocation3 + $0x68] sm:$0xf] %vm900, %v1223
        %1314 = vst.msk [vmem:[#allocation3 + $0x7c] sm:$0xf] %vm900, %v1225
        %1315 = vst.msk [vmem:[#allocation3 + $0x90] sm:$0xf] %vm900, %v1227
        %1316 = vst.msk [vmem:[#allocation3 + $0xa4] sm:$0xf] %vm900, %v1229
        %1317 = vst.msk [vmem:[#allocation3 + $0xb8] sm:$0xf] %vm900, %v1231
        %1318 = vst.msk [vmem:[#allocation3 + $0xcc] sm:$0xf] %vm900, %v1233
        %1319 = vst.msk [vmem:[#allocation3 + $0xe0] sm:$0xf] %vm900, %v1235
        %1320 = vst.msk [vmem:[#allocation3 + $0xf4] sm:$0xf] %vm900, %v1237
        %1321 = vst.msk [vmem:[#allocation3 + $0x108] sm:$0xf] %vm900, %v1239
        %1322 = vst.msk [vmem:[#allocation3 + $0x11c] sm:$0xf] %vm900, %v1241
        %1323 = vst.msk [vmem:[#allocation3 + $0x130] sm:$0xf] %vm900, %v1243
        %1324 = vst.msk [vmem:[#allocation3 + $0x144] sm:$0xf] %vm900, %v1245
        %1325 = vst.msk [vmem:[#allocation3 + $0x158] sm:$0xf] %vm900, %v1247
        %1326 = vst.msk [vmem:[#allocation3 + $0x16c] sm:$0xf] %vm900, %v1249
        %1327 = vst.msk [vmem:[#allocation3 + $0x180] sm:$0xf] %vm900, %v1251
        %1328 = vst.msk [vmem:[#allocation3 + $0x194] sm:$0xf] %vm900, %v1253
        %1329 = vst.msk [vmem:[#allocation3 + $0x1a8] sm:$0xf] %vm900, %v1255
        %1330 = vst.msk [vmem:[#allocation3 + $0x1bc] sm:$0xf] %vm900, %v1257
        %1331 = vst.msk [vmem:[#allocation3 + $0x1d0] sm:$0xf] %vm900, %v1259
        %1332 = vst.msk [vmem:[#allocation3 + $0x1e4] sm:$0xf] %vm900, %v1261
        %1333 = vst.msk [vmem:[#allocation3 + $0x1f8] sm:$0xf] %vm900, %v1263
        %1334 = vst.msk [vmem:[#allocation3 + $0x20c] sm:$0xf] %vm900, %v1265
        %1335 = vst.msk [vmem:[#allocation3 + $0x220] sm:$0xf] %vm900, %v1267
        %1336 = vst.msk [vmem:[#allocation3 + $0x234] sm:$0xf] %vm900, %v1269
        %1337 = vst.msk [vmem:[#allocation3 + $0x248] sm:$0xf] %vm900, %v1271
        %1338 = vst.msk [vmem:[#allocation3 + $0x25c] sm:$0xf] %vm900, %v1273
        %1339 = vst.msk [vmem:[#allocation3 + $0x270] sm:$0xf] %vm900, %v1275
        %v1343 = vrot.slane %v380, 1
        %v1344 = vrot.slane %v381, 1
        %v1345 = vsel %vm595, %v1343, %v1344
        %v1346 = vrot.slane %v382, 1
        %v1347 = vsel %vm595, %v1344, %v1346
        %v1350 = vpack.c.bf16 %v1347, %v1345
        %v1352 = vunpack.c.l.b16 %v1350
        %v1353 = vunpack.c.h.b16 %v1350
        %v1354 = vpack.c.b16 %v1352, %v1352
        %v1355 = vpack.c.b16 %v1353, %v1353
        %1388 = vst.msk [vmem:[#allocation3 + $0x8] sm:$0xf] %vm514, %v774
        %1389 = vst.msk [vmem:[#allocation3 + $0x1c] sm:$0xf] %vm514, %v775
        %1390 = vst.msk [vmem:[#allocation3 + $0x30] sm:$0xf] %vm514, %v776
        %1391 = vst.msk [vmem:[#allocation3 + $0x44] sm:$0xf] %vm514, %v777
        %1392 = vst.msk [vmem:[#allocation3 + $0x58] sm:$0xf] %vm514, %v778
        %1393 = vst.msk [vmem:[#allocation3 + $0x6c] sm:$0xf] %vm514, %v779
        %1394 = vst.msk [vmem:[#allocation3 + $0x80] sm:$0xf] %vm514, %v780
        %1395 = vst.msk [vmem:[#allocation3 + $0x94] sm:$0xf] %vm514, %v781
        %1396 = vst.msk [vmem:[#allocation3 + $0xa8] sm:$0xf] %vm514, %v782
        %1397 = vst.msk [vmem:[#allocation3 + $0xbc] sm:$0xf] %vm514, %v783
        %1398 = vst.msk [vmem:[#allocation3 + $0xd0] sm:$0xf] %vm514, %v784
        %1399 = vst.msk [vmem:[#allocation3 + $0xe4] sm:$0xf] %vm514, %v785
        %1400 = vst.msk [vmem:[#allocation3 + $0xf8] sm:$0xf] %vm514, %v786
        %1401 = vst.msk [vmem:[#allocation3 + $0x10c] sm:$0xf] %vm514, %v787
        %1402 = vst.msk [vmem:[#allocation3 + $0x120] sm:$0xf] %vm514, %v788
        %1403 = vst.msk [vmem:[#allocation3 + $0x134] sm:$0xf] %vm514, %v789
        %1404 = vst.msk [vmem:[#allocation3 + $0x148] sm:$0xf] %vm514, %v790
        %1405 = vst.msk [vmem:[#allocation3 + $0x15c] sm:$0xf] %vm514, %v791
        %1406 = vst.msk [vmem:[#allocation3 + $0x170] sm:$0xf] %vm514, %v792
        %1407 = vst.msk [vmem:[#allocation3 + $0x184] sm:$0xf] %vm514, %v793
        %1408 = vst.msk [vmem:[#allocation3 + $0x198] sm:$0xf] %vm514, %v794
        %1409 = vst.msk [vmem:[#allocation3 + $0x1ac] sm:$0xf] %vm514, %v795
        %1410 = vst.msk [vmem:[#allocation3 + $0x1c0] sm:$0xf] %vm514, %v796
        %1411 = vst.msk [vmem:[#allocation3 + $0x1d4] sm:$0xf] %vm514, %v797
        %1412 = vst.msk [vmem:[#allocation3 + $0x1e8] sm:$0xf] %vm514, %v798
        %1413 = vst.msk [vmem:[#allocation3 + $0x1fc] sm:$0xf] %vm514, %v799
        %1414 = vst.msk [vmem:[#allocation3 + $0x210] sm:$0xf] %vm514, %v800
        %1415 = vst.msk [vmem:[#allocation3 + $0x224] sm:$0xf] %vm514, %v801
        %1416 = vst.msk [vmem:[#allocation3 + $0x238] sm:$0xf] %vm514, %v802
        %1417 = vst.msk [vmem:[#allocation3 + $0x24c] sm:$0xf] %vm514, %v803
        %1418 = vst.msk [vmem:[#allocation3 + $0x260] sm:$0xf] %vm514, %v1354
        %1419 = vst.msk [vmem:[#allocation3 + $0x274] sm:$0xf] %vm514, %v1355
        %v1420 = vrot.slane %v380, 2
        %v1421 = vrot.slane %v381, 2
        %v1422 = vsel %vm933, %v1420, %v1421
        %v1423 = vrot.slane %v382, 2
        %v1424 = vsel %vm933, %v1421, %v1423
        %v1427 = vpack.c.bf16 %v1424, %v1422
        %v1429 = vunpack.c.l.b16 %v1427
        %v1430 = vunpack.c.h.b16 %v1427
        %v1431 = vpack.c.b16 %v1429, %v1429
        %v1432 = vpack.c.b16 %v1430, %v1430
        %1433 = vrot.lane.b32.xlu0 %v1112, 64
        %v1434 = vpop.permute.xlu0 %1433
        %1435 = vrot.lane.b32.xlu0 %v1113, 64
        %v1436 = vpop.permute.xlu0 %1435
        %1437 = vrot.lane.b32.xlu0 %v1114, 64
        %v1438 = vpop.permute.xlu0 %1437
        %1439 = vrot.lane.b32.xlu0 %v1115, 64
        %v1440 = vpop.permute.xlu0 %1439
        %1441 = vrot.lane.b32.xlu0 %v1116, 64
        %v1442 = vpop.permute.xlu0 %1441
        %1443 = vrot.lane.b32.xlu0 %v1117, 64
        %v1444 = vpop.permute.xlu0 %1443
        %1445 = vrot.lane.b32.xlu0 %v1118, 64
        %v1446 = vpop.permute.xlu0 %1445
        %1447 = vrot.lane.b32.xlu0 %v1119, 64
        %v1448 = vpop.permute.xlu0 %1447
        %1449 = vrot.lane.b32.xlu0 %v1120, 64
        %v1450 = vpop.permute.xlu0 %1449
        %1451 = vrot.lane.b32.xlu0 %v1121, 64
        %v1452 = vpop.permute.xlu0 %1451
        %1453 = vrot.lane.b32.xlu0 %v1122, 64
        %v1454 = vpop.permute.xlu0 %1453
        %1455 = vrot.lane.b32.xlu0 %v1123, 64
        %v1456 = vpop.permute.xlu0 %1455
        %1457 = vrot.lane.b32.xlu0 %v1124, 64
        %v1458 = vpop.permute.xlu0 %1457
        %1459 = vrot.lane.b32.xlu0 %v1125, 64
        %v1460 = vpop.permute.xlu0 %1459
        %1461 = vrot.lane.b32.xlu0 %v1126, 64
        %v1462 = vpop.permute.xlu0 %1461
        %1463 = vrot.lane.b32.xlu0 %v1127, 64
        %v1464 = vpop.permute.xlu0 %1463
        %1465 = vrot.lane.b32.xlu0 %v1128, 64
        %v1466 = vpop.permute.xlu0 %1465
        %1467 = vrot.lane.b32.xlu0 %v1129, 64
        %v1468 = vpop.permute.xlu0 %1467
        %1469 = vrot.lane.b32.xlu0 %v1130, 64
        %v1470 = vpop.permute.xlu0 %1469
        %1471 = vrot.lane.b32.xlu0 %v1131, 64
        %v1472 = vpop.permute.xlu0 %1471
        %1473 = vrot.lane.b32.xlu0 %v1132, 64
        %v1474 = vpop.permute.xlu0 %1473
        %1475 = vrot.lane.b32.xlu0 %v1133, 64
        %v1476 = vpop.permute.xlu0 %1475
        %1477 = vrot.lane.b32.xlu0 %v1134, 64
        %v1478 = vpop.permute.xlu0 %1477
        %1479 = vrot.lane.b32.xlu0 %v1135, 64
        %v1480 = vpop.permute.xlu0 %1479
        %1481 = vrot.lane.b32.xlu0 %v1136, 64
        %v1482 = vpop.permute.xlu0 %1481
        %1483 = vrot.lane.b32.xlu0 %v1137, 64
        %v1484 = vpop.permute.xlu0 %1483
        %1485 = vrot.lane.b32.xlu0 %v1138, 64
        %v1486 = vpop.permute.xlu0 %1485
        %1487 = vrot.lane.b32.xlu0 %v1139, 64
        %v1488 = vpop.permute.xlu0 %1487
        %1489 = vrot.lane.b32.xlu0 %v1140, 64
        %v1490 = vpop.permute.xlu0 %1489
        %1491 = vrot.lane.b32.xlu0 %v1141, 64
        %v1492 = vpop.permute.xlu0 %1491
        %1493 = vrot.lane.b32.xlu0 %v1431, 64
        %v1494 = vpop.permute.xlu0 %1493
        %1495 = vrot.lane.b32.xlu0 %v1432, 64
        %v1496 = vpop.permute.xlu0 %1495
        %1529 = vst.msk [vmem:[#allocation3 + $0x8] sm:$0xf] %vm900, %v1434
        %1530 = vst.msk [vmem:[#allocation3 + $0x1c] sm:$0xf] %vm900, %v1436
        %1531 = vst.msk [vmem:[#allocation3 + $0x30] sm:$0xf] %vm900, %v1438
        %1532 = vst.msk [vmem:[#allocation3 + $0x44] sm:$0xf] %vm900, %v1440
        %1533 = vst.msk [vmem:[#allocation3 + $0x58] sm:$0xf] %vm900, %v1442
        %1534 = vst.msk [vmem:[#allocation3 + $0x6c] sm:$0xf] %vm900, %v1444
        %1535 = vst.msk [vmem:[#allocation3 + $0x80] sm:$0xf] %vm900, %v1446
        %1536 = vst.msk [vmem:[#allocation3 + $0x94] sm:$0xf] %vm900, %v1448
        %1537 = vst.msk [vmem:[#allocation3 + $0xa8] sm:$0xf] %vm900, %v1450
        %1538 = vst.msk [vmem:[#allocation3 + $0xbc] sm:$0xf] %vm900, %v1452
        %1539 = vst.msk [vmem:[#allocation3 + $0xd0] sm:$0xf] %vm900, %v1454
        %1540 = vst.msk [vmem:[#allocation3 + $0xe4] sm:$0xf] %vm900, %v1456
        %1541 = vst.msk [vmem:[#allocation3 + $0xf8] sm:$0xf] %vm900, %v1458
        %1542 = vst.msk [vmem:[#allocation3 + $0x10c] sm:$0xf] %vm900, %v1460
        %1543 = vst.msk [vmem:[#allocation3 + $0x120] sm:$0xf] %vm900, %v1462
        %1544 = vst.msk [vmem:[#allocation3 + $0x134] sm:$0xf] %vm900, %v1464
        %1545 = vst.msk [vmem:[#allocation3 + $0x148] sm:$0xf] %vm900, %v1466
        %1546 = vst.msk [vmem:[#allocation3 + $0x15c] sm:$0xf] %vm900, %v1468
        %1547 = vst.msk [vmem:[#allocation3 + $0x170] sm:$0xf] %vm900, %v1470
        %1548 = vst.msk [vmem:[#allocation3 + $0x184] sm:$0xf] %vm900, %v1472
        %1549 = vst.msk [vmem:[#allocation3 + $0x198] sm:$0xf] %vm900, %v1474
        %1550 = vst.msk [vmem:[#allocation3 + $0x1ac] sm:$0xf] %vm900, %v1476
        %1551 = vst.msk [vmem:[#allocation3 + $0x1c0] sm:$0xf] %vm900, %v1478
        %1552 = vst.msk [vmem:[#allocation3 + $0x1d4] sm:$0xf] %vm900, %v1480
        %1553 = vst.msk [vmem:[#allocation3 + $0x1e8] sm:$0xf] %vm900, %v1482
        %1554 = vst.msk [vmem:[#allocation3 + $0x1fc] sm:$0xf] %vm900, %v1484
        %1555 = vst.msk [vmem:[#allocation3 + $0x210] sm:$0xf] %vm900, %v1486
        %1556 = vst.msk [vmem:[#allocation3 + $0x224] sm:$0xf] %vm900, %v1488
        %1557 = vst.msk [vmem:[#allocation3 + $0x238] sm:$0xf] %vm900, %v1490
        %1558 = vst.msk [vmem:[#allocation3 + $0x24c] sm:$0xf] %vm900, %v1492
        %1559 = vst.msk [vmem:[#allocation3 + $0x260] sm:$0xf] %vm900, %v1494
        %1560 = vst.msk [vmem:[#allocation3 + $0x274] sm:$0xf] %vm900, %v1496
        %v1561 = vpack.c.bf16 %v384, %v383
        %v1563 = vunpack.c.l.b16 %v1561
        %v1564 = vunpack.c.h.b16 %v1561
        %v1565 = vpack.c.b16 %v1563, %v1563
        %v1566 = vpack.c.b16 %v1564, %v1564
        %1571 = vst.msk [vmem:[#allocation3 + $0xc] sm:$0xf] %vm514, %v454
        %1572 = vst.msk [vmem:[#allocation3 + $0x20] sm:$0xf] %vm514, %v455
        %1573 = vst.msk [vmem:[#allocation3 + $0x34] sm:$0xf] %vm514, %v456
        %1574 = vst.msk [vmem:[#allocation3 + $0x48] sm:$0xf] %vm514, %v457
        %1575 = vst.msk [vmem:[#allocation3 + $0x5c] sm:$0xf] %vm514, %v458
        %1576 = vst.msk [vmem:[#allocation3 + $0x70] sm:$0xf] %vm514, %v459
        %1577 = vst.msk [vmem:[#allocation3 + $0x84] sm:$0xf] %vm514, %v460
        %1578 = vst.msk [vmem:[#allocation3 + $0x98] sm:$0xf] %vm514, %v461
        %1579 = vst.msk [vmem:[#allocation3 + $0xac] sm:$0xf] %vm514, %v462
        %1580 = vst.msk [vmem:[#allocation3 + $0xc0] sm:$0xf] %vm514, %v463
        %1581 = vst.msk [vmem:[#allocation3 + $0xd4] sm:$0xf] %vm514, %v464
        %1582 = vst.msk [vmem:[#allocation3 + $0xe8] sm:$0xf] %vm514, %v465
        %1583 = vst.msk [vmem:[#allocation3 + $0xfc] sm:$0xf] %vm514, %v466
        %1584 = vst.msk [vmem:[#allocation3 + $0x110] sm:$0xf] %vm514, %v467
        %1585 = vst.msk [vmem:[#allocation3 + $0x124] sm:$0xf] %vm514, %v468
        %1586 = vst.msk [vmem:[#allocation3 + $0x138] sm:$0xf] %vm514, %v469
        %1587 = vst.msk [vmem:[#allocation3 + $0x14c] sm:$0xf] %vm514, %v470
        %1588 = vst.msk [vmem:[#allocation3 + $0x160] sm:$0xf] %vm514, %v471
        %1589 = vst.msk [vmem:[#allocation3 + $0x174] sm:$0xf] %vm514, %v472
        %1590 = vst.msk [vmem:[#allocation3 + $0x188] sm:$0xf] %vm514, %v473
        %1591 = vst.msk [vmem:[#allocation3 + $0x19c] sm:$0xf] %vm514, %v474
        %1592 = vst.msk [vmem:[#allocation3 + $0x1b0] sm:$0xf] %vm514, %v475
        %1593 = vst.msk [vmem:[#allocation3 + $0x1c4] sm:$0xf] %vm514, %v476
        %1594 = vst.msk [vmem:[#allocation3 + $0x1d8] sm:$0xf] %vm514, %v477
        %1595 = vst.msk [vmem:[#allocation3 + $0x1ec] sm:$0xf] %vm514, %v478
        %1596 = vst.msk [vmem:[#allocation3 + $0x200] sm:$0xf] %vm514, %v479
        %1597 = vst.msk [vmem:[#allocation3 + $0x214] sm:$0xf] %vm514, %v480
        %1598 = vst.msk [vmem:[#allocation3 + $0x228] sm:$0xf] %vm514, %v481
        %1599 = vst.msk [vmem:[#allocation3 + $0x23c] sm:$0xf] %vm514, %v1210
        %1600 = vst.msk [vmem:[#allocation3 + $0x250] sm:$0xf] %vm514, %v1211
        %1601 = vst.msk [vmem:[#allocation3 + $0x264] sm:$0xf] %vm514, %v1565
        %1602 = vst.msk [vmem:[#allocation3 + $0x278] sm:$0xf] %vm514, %v1566
        %v1606 = vrot.slane %v383, 1
        %v1607 = vrot.slane %v384, 1
        %v1608 = vsel %vm595, %v1606, %v1607
        %v1609 = vrot.slane %v385, 1
        %v1610 = vsel %vm595, %v1607, %v1609
        %v1613 = vpack.c.bf16 %v1610, %v1608
        %v1615 = vunpack.c.l.b16 %v1613
        %v1616 = vunpack.c.h.b16 %v1613
        %v1617 = vpack.c.b16 %v1615, %v1615
        %v1618 = vpack.c.b16 %v1616, %v1616
        %1619 = vrot.lane.b32.xlu0 %v1354, 64
        %v1620 = vpop.permute.xlu0 %1619
        %1621 = vrot.lane.b32.xlu0 %v1355, 64
        %v1622 = vpop.permute.xlu0 %1621
        %1623 = vrot.lane.b32.xlu0 %v1617, 64
        %v1624 = vpop.permute.xlu0 %1623
        %1625 = vrot.lane.b32.xlu0 %v1618, 64
        %v1626 = vpop.permute.xlu0 %1625
        %1631 = vst.msk [vmem:[#allocation3 + $0xc] sm:$0xf] %vm900, %v813
        %1632 = vst.msk [vmem:[#allocation3 + $0x20] sm:$0xf] %vm900, %v815
        %1633 = vst.msk [vmem:[#allocation3 + $0x34] sm:$0xf] %vm900, %v817
        %1634 = vst.msk [vmem:[#allocation3 + $0x48] sm:$0xf] %vm900, %v819
        %1635 = vst.msk [vmem:[#allocation3 + $0x5c] sm:$0xf] %vm900, %v821
        %1636 = vst.msk [vmem:[#allocation3 + $0x70] sm:$0xf] %vm900, %v823
        %1637 = vst.msk [vmem:[#allocation3 + $0x84] sm:$0xf] %vm900, %v825
        %1638 = vst.msk [vmem:[#allocation3 + $0x98] sm:$0xf] %vm900, %v827
        %1639 = vst.msk [vmem:[#allocation3 + $0xac] sm:$0xf] %vm900, %v829
        %1640 = vst.msk [vmem:[#allocation3 + $0xc0] sm:$0xf] %vm900, %v831
        %1641 = vst.msk [vmem:[#allocation3 + $0xd4] sm:$0xf] %vm900, %v833
        %1642 = vst.msk [vmem:[#allocation3 + $0xe8] sm:$0xf] %vm900, %v835
        %1643 = vst.msk [vmem:[#allocation3 + $0xfc] sm:$0xf] %vm900, %v837
        %1644 = vst.msk [vmem:[#allocation3 + $0x110] sm:$0xf] %vm900, %v839
        %1645 = vst.msk [vmem:[#allocation3 + $0x124] sm:$0xf] %vm900, %v841
        %1646 = vst.msk [vmem:[#allocation3 + $0x138] sm:$0xf] %vm900, %v843
        %1647 = vst.msk [vmem:[#allocation3 + $0x14c] sm:$0xf] %vm900, %v845
        %1648 = vst.msk [vmem:[#allocation3 + $0x160] sm:$0xf] %vm900, %v847
        %1649 = vst.msk [vmem:[#allocation3 + $0x174] sm:$0xf] %vm900, %v849
        %1650 = vst.msk [vmem:[#allocation3 + $0x188] sm:$0xf] %vm900, %v851
        %1651 = vst.msk [vmem:[#allocation3 + $0x19c] sm:$0xf] %vm900, %v853
        %1652 = vst.msk [vmem:[#allocation3 + $0x1b0] sm:$0xf] %vm900, %v855
        %1653 = vst.msk [vmem:[#allocation3 + $0x1c4] sm:$0xf] %vm900, %v857
        %1654 = vst.msk [vmem:[#allocation3 + $0x1d8] sm:$0xf] %vm900, %v859
        %1655 = vst.msk [vmem:[#allocation3 + $0x1ec] sm:$0xf] %vm900, %v861
        %1656 = vst.msk [vmem:[#allocation3 + $0x200] sm:$0xf] %vm900, %v863
        %1657 = vst.msk [vmem:[#allocation3 + $0x214] sm:$0xf] %vm900, %v865
        %1658 = vst.msk [vmem:[#allocation3 + $0x228] sm:$0xf] %vm900, %v867
        %1659 = vst.msk [vmem:[#allocation3 + $0x23c] sm:$0xf] %vm900, %v1620
        %1660 = vst.msk [vmem:[#allocation3 + $0x250] sm:$0xf] %vm900, %v1622
        %1661 = vst.msk [vmem:[#allocation3 + $0x264] sm:$0xf] %vm900, %v1624
        %1662 = vst.msk [vmem:[#allocation3 + $0x278] sm:$0xf] %vm900, %v1626
        %v1663 = vrot.slane %v383, 2
        %v1664 = vrot.slane %v384, 2
        %v1665 = vsel %vm933, %v1663, %v1664
        %v1666 = vrot.slane %v385, 2
        %v1667 = vsel %vm933, %v1664, %v1666
        %v1670 = vpack.c.bf16 %v1667, %v1665
        %v1672 = vunpack.c.l.b16 %v1670
        %v1673 = vunpack.c.h.b16 %v1670
        %v1674 = vpack.c.b16 %v1672, %v1672
        %v1675 = vpack.c.b16 %v1673, %v1673
        %1680 = vst.msk [vmem:[#allocation3 + $0x10] sm:$0xf] %vm514, %v1114
        %1681 = vst.msk [vmem:[#allocation3 + $0x24] sm:$0xf] %vm514, %v1115
        %1682 = vst.msk [vmem:[#allocation3 + $0x38] sm:$0xf] %vm514, %v1116
        %1683 = vst.msk [vmem:[#allocation3 + $0x4c] sm:$0xf] %vm514, %v1117
        %1684 = vst.msk [vmem:[#allocation3 + $0x60] sm:$0xf] %vm514, %v1118
        %1685 = vst.msk [vmem:[#allocation3 + $0x74] sm:$0xf] %vm514, %v1119
        %1686 = vst.msk [vmem:[#allocation3 + $0x88] sm:$0xf] %vm514, %v1120
        %1687 = vst.msk [vmem:[#allocation3 + $0x9c] sm:$0xf] %vm514, %v1121
        %1688 = vst.msk [vmem:[#allocation3 + $0xb0] sm:$0xf] %vm514, %v1122
        %1689 = vst.msk [vmem:[#allocation3 + $0xc4] sm:$0xf] %vm514, %v1123
        %1690 = vst.msk [vmem:[#allocation3 + $0xd8] sm:$0xf] %vm514, %v1124
        %1691 = vst.msk [vmem:[#allocation3 + $0xec] sm:$0xf] %vm514, %v1125
        %1692 = vst.msk [vmem:[#allocation3 + $0x100] sm:$0xf] %vm514, %v1126
        %1693 = vst.msk [vmem:[#allocation3 + $0x114] sm:$0xf] %vm514, %v1127
        %1694 = vst.msk [vmem:[#allocation3 + $0x128] sm:$0xf] %vm514, %v1128
        %1695 = vst.msk [vmem:[#allocation3 + $0x13c] sm:$0xf] %vm514, %v1129
        %1696 = vst.msk [vmem:[#allocation3 + $0x150] sm:$0xf] %vm514, %v1130
        %1697 = vst.msk [vmem:[#allocation3 + $0x164] sm:$0xf] %vm514, %v1131
        %1698 = vst.msk [vmem:[#allocation3 + $0x178] sm:$0xf] %vm514, %v1132
        %1699 = vst.msk [vmem:[#allocation3 + $0x18c] sm:$0xf] %vm514, %v1133
        %1700 = vst.msk [vmem:[#allocation3 + $0x1a0] sm:$0xf] %vm514, %v1134
        %1701 = vst.msk [vmem:[#allocation3 + $0x1b4] sm:$0xf] %vm514, %v1135
        %1702 = vst.msk [vmem:[#allocation3 + $0x1c8] sm:$0xf] %vm514, %v1136
        %1703 = vst.msk [vmem:[#allocation3 + $0x1dc] sm:$0xf] %vm514, %v1137
        %1704 = vst.msk [vmem:[#allocation3 + $0x1f0] sm:$0xf] %vm514, %v1138
        %1705 = vst.msk [vmem:[#allocation3 + $0x204] sm:$0xf] %vm514, %v1139
        %1706 = vst.msk [vmem:[#allocation3 + $0x218] sm:$0xf] %vm514, %v1140
        %1707 = vst.msk [vmem:[#allocation3 + $0x22c] sm:$0xf] %vm514, %v1141
        %1708 = vst.msk [vmem:[#allocation3 + $0x240] sm:$0xf] %vm514, %v1431
        %1709 = vst.msk [vmem:[#allocation3 + $0x254] sm:$0xf] %vm514, %v1432
        %1710 = vst.msk [vmem:[#allocation3 + $0x268] sm:$0xf] %vm514, %v1674
        %1711 = vst.msk [vmem:[#allocation3 + $0x27c] sm:$0xf] %vm514, %v1675
        %v1712 = vld [vmem:[#allocation3] sm:$0xff]
        %v1713 = vld [vmem:[#allocation3 + $0x8] sm:$0xff]
        %v1714 = vld [vmem:[#allocation3 + $0x10] sm:$0xf]
        %v1715 = vld [vmem:[#allocation3 + $0x14] sm:$0xff]
        %v1716 = vld [vmem:[#allocation3 + $0x1c] sm:$0xff]
        %v1717 = vld [vmem:[#allocation3 + $0x24] sm:$0xf]
        %v1718 = vld [vmem:[#allocation3 + $0x28] sm:$0xff]
        %v1719 = vld [vmem:[#allocation3 + $0x30] sm:$0xff]
        %v1720 = vld [vmem:[#allocation3 + $0x38] sm:$0xf]
        %v1721 = vld [vmem:[#allocation3 + $0x3c] sm:$0xff]
        %v1722 = vld [vmem:[#allocation3 + $0x44] sm:$0xff]
        %v1723 = vld [vmem:[#allocation3 + $0x4c] sm:$0xf]
        %v1724 = vld [vmem:[#allocation3 + $0x50] sm:$0xff]
        %v1725 = vld [vmem:[#allocation3 + $0x58] sm:$0xff]
        %v1726 = vld [vmem:[#allocation3 + $0x60] sm:$0xf]
        %v1727 = vld [vmem:[#allocation3 + $0x64] sm:$0xff]
        %v1728 = vld [vmem:[#allocation3 + $0x6c] sm:$0xff]
        %v1729 = vld [vmem:[#allocation3 + $0x74] sm:$0xf]
        %v1730 = vld [vmem:[#allocation3 + $0x78] sm:$0xff]
        %v1731 = vld [vmem:[#allocation3 + $0x80] sm:$0xff]
        %v1732 = vld [vmem:[#allocation3 + $0x88] sm:$0xf]
        %v1733 = vld [vmem:[#allocation3 + $0x8c] sm:$0xff]
        %v1734 = vld [vmem:[#allocation3 + $0x94] sm:$0xff]
        %v1735 = vld [vmem:[#allocation3 + $0x9c] sm:$0xf]
        %v1736 = vld [vmem:[#allocation3 + $0xa0] sm:$0xff]
        %v1737 = vld [vmem:[#allocation3 + $0xa8] sm:$0xff]
        %v1738 = vld [vmem:[#allocation3 + $0xb0] sm:$0xf]
        %v1739 = vld [vmem:[#allocation3 + $0xb4] sm:$0xff]
        %v1740 = vld [vmem:[#allocation3 + $0xbc] sm:$0xff]
        %v1741 = vld [vmem:[#allocation3 + $0xc4] sm:$0xf]
        %v1742 = vld [vmem:[#allocation3 + $0xc8] sm:$0xff]
        %v1743 = vld [vmem:[#allocation3 + $0xd0] sm:$0xff]
        %v1744 = vld [vmem:[#allocation3 + $0xd8] sm:$0xf]
        %v1745 = vld [vmem:[#allocation3 + $0xdc] sm:$0xff]
        %v1746 = vld [vmem:[#allocation3 + $0xe4] sm:$0xff]
        %v1747 = vld [vmem:[#allocation3 + $0xec] sm:$0xf]
        %v1748 = vld [vmem:[#allocation3 + $0xf0] sm:$0xff]
        %v1749 = vld [vmem:[#allocation3 + $0xf8] sm:$0xff]
        %v1750 = vld [vmem:[#allocation3 + $0x100] sm:$0xf]
        %v1751 = vld [vmem:[#allocation3 + $0x104] sm:$0xff]
        %v1752 = vld [vmem:[#allocation3 + $0x10c] sm:$0xff]
        %v1753 = vld [vmem:[#allocation3 + $0x114] sm:$0xf]
        %v1754 = vld [vmem:[#allocation3 + $0x118] sm:$0xff]
        %v1755 = vld [vmem:[#allocation3 + $0x120] sm:$0xff]
        %v1756 = vld [vmem:[#allocation3 + $0x128] sm:$0xf]
        %v1757 = vld [vmem:[#allocation3 + $0x12c] sm:$0xff]
        %v1758 = vld [vmem:[#allocation3 + $0x134] sm:$0xff]
        %v1759 = vld [vmem:[#allocation3 + $0x13c] sm:$0xf]
        %v1760 = vld [vmem:[#allocation3 + $0x140] sm:$0xff]
        %v1761 = vld [vmem:[#allocation3 + $0x148] sm:$0xff]
        %v1762 = vld [vmem:[#allocation3 + $0x150] sm:$0xf]
        %v1763 = vld [vmem:[#allocation3 + $0x154] sm:$0xff]
        %v1764 = vld [vmem:[#allocation3 + $0x15c] sm:$0xff]
        %v1765 = vld [vmem:[#allocation3 + $0x164] sm:$0xf]
        %v1766 = vld [vmem:[#allocation3 + $0x168] sm:$0xff]
        %v1767 = vld [vmem:[#allocation3 + $0x170] sm:$0xff]
        %v1768 = vld [vmem:[#allocation3 + $0x178] sm:$0xf]
        %v1769 = vld [vmem:[#allocation3 + $0x17c] sm:$0xff]
        %v1770 = vld [vmem:[#allocation3 + $0x184] sm:$0xff]
        %v1771 = vld [vmem:[#allocation3 + $0x18c] sm:$0xf]
        %v1772 = vld [vmem:[#allocation3 + $0x190] sm:$0xff]
        %v1773 = vld [vmem:[#allocation3 + $0x198] sm:$0xff]
        %v1774 = vld [vmem:[#allocation3 + $0x1a0] sm:$0xf]
        %v1775 = vld [vmem:[#allocation3 + $0x1a4] sm:$0xff]
        %v1776 = vld [vmem:[#allocation3 + $0x1ac] sm:$0xff]
        %v1777 = vld [vmem:[#allocation3 + $0x1b4] sm:$0xf]
        %v1778 = vld [vmem:[#allocation3 + $0x1b8] sm:$0xff]
        %v1779 = vld [vmem:[#allocation3 + $0x1c0] sm:$0xff]
        %v1780 = vld [vmem:[#allocation3 + $0x1c8] sm:$0xf]
        %v1781 = vld [vmem:[#allocation3 + $0x1cc] sm:$0xff]
        %v1782 = vld [vmem:[#allocation3 + $0x1d4] sm:$0xff]
        %v1783 = vld [vmem:[#allocation3 + $0x1dc] sm:$0xf]
        %v1784 = vld [vmem:[#allocation3 + $0x1e0] sm:$0xff]
        %v1785 = vld [vmem:[#allocation3 + $0x1e8] sm:$0xff]
        %v1786 = vld [vmem:[#allocation3 + $0x1f0] sm:$0xf]
        %v1787 = vld [vmem:[#allocation3 + $0x1f4] sm:$0xff]
        %v1788 = vld [vmem:[#allocation3 + $0x1fc] sm:$0xff]
        %v1789 = vld [vmem:[#allocation3 + $0x204] sm:$0xf]
        %v1790 = vld [vmem:[#allocation3 + $0x208] sm:$0xff]
        %v1791 = vld [vmem:[#allocation3 + $0x210] sm:$0xff]
        %v1792 = vld [vmem:[#allocation3 + $0x218] sm:$0xf]
        %v1793 = vld [vmem:[#allocation3 + $0x21c] sm:$0xff]
        %v1794 = vld [vmem:[#allocation3 + $0x224] sm:$0xff]
        %v1795 = vld [vmem:[#allocation3 + $0x22c] sm:$0xf]
        %v1796 = vld [vmem:[#allocation3 + $0x230] sm:$0xff]
        %v1797 = vld [vmem:[#allocation3 + $0x238] sm:$0xff]
        %v1798 = vld [vmem:[#allocation3 + $0x240] sm:$0xf]
        %v1799 = vld [vmem:[#allocation3 + $0x244] sm:$0xff]
        %v1800 = vld [vmem:[#allocation3 + $0x24c] sm:$0xff]
        %v1801 = vld [vmem:[#allocation3 + $0x254] sm:$0xf]
        %v1802 = vld [vmem:[#allocation3 + $0x258] sm:$0xff]
        %v1803 = vld [vmem:[#allocation3 + $0x260] sm:$0xff]
        %v1804 = vld [vmem:[#allocation3 + $0x268] sm:$0xf]
        %v1805 = vld [vmem:[#allocation3 + $0x26c] sm:$0xff]
        %v1806 = vld [vmem:[#allocation3 + $0x274] sm:$0xff]
        %v1807 = vld [vmem:[#allocation3 + $0x27c] sm:$0xf]
        %v1808 = vld [vmem:[%s1] sm:$0xf]
        %v1809 = vld [vmem:[%s1 + $0x4] sm:$0xf]
        %v1810 = vld [vmem:[%s1 + $0x8] sm:$0xf]
        %v1811 = vld [vmem:[%s1 + $0xc] sm:$0xf]
        %v1812 = vld [vmem:[%s1 + $0x10] sm:$0xf]
        %v1813 = vld [vmem:[%s1 + $0x14] sm:$0xf]
        %v1814 = vld [vmem:[%s1 + $0x18] sm:$0xf]
        %v1815 = vld [vmem:[%s1 + $0x1c] sm:$0xf]
        %v1816 = vld [vmem:[%s1 + $0x20] sm:$0xf]
        %v1817 = vld [vmem:[%s1 + $0x24] sm:$0xf]
        %v1818 = vld [vmem:[%s1 + $0x28] sm:$0xf]
        %v1819 = vld [vmem:[%s1 + $0x2c] sm:$0xf]
        %v1820 = vld [vmem:[%s1 + $0x30] sm:$0xf]
        %v1821 = vld [vmem:[%s1 + $0x34] sm:$0xf]
        %v1822 = vld [vmem:[%s1 + $0x38] sm:$0xf]
        %v1823 = vld [vmem:[%s1 + $0x3c] sm:$0xf]
        %v1824 = vld [vmem:[%s1 + $0x40] sm:$0xf]
        %v1825 = vld [vmem:[%s1 + $0x44] sm:$0xf]
        %v1826 = vld [vmem:[%s1 + $0x48] sm:$0xf]
        %v1827 = vld [vmem:[%s1 + $0x4c] sm:$0xf]
        %v1828 = vld [vmem:[%s1 + $0x50] sm:$0xf]
        %v1829 = vld [vmem:[%s1 + $0x54] sm:$0xf]
        %v1830 = vld [vmem:[%s1 + $0x58] sm:$0xf]
        %v1831 = vld [vmem:[%s1 + $0x5c] sm:$0xf]
        %v1832 = vld [vmem:[%s1 + $0x60] sm:$0xf]
        %v1833 = vld [vmem:[%s1 + $0x64] sm:$0xf]
        %v1834 = vld [vmem:[%s1 + $0x68] sm:$0xf]
        %v1835 = vld [vmem:[%s1 + $0x6c] sm:$0xf]
        %v1836 = vld [vmem:[%s1 + $0x70] sm:$0xf]
        %v1837 = vld [vmem:[%s1 + $0x74] sm:$0xf]
        %v1838 = vld [vmem:[%s1 + $0x78] sm:$0xf]
        %v1839 = vld [vmem:[%s1 + $0x7c] sm:$0xf]
        %v1840 = vld [vmem:[%s1 + $0x80] sm:$0xf]
        %v1841 = vld [vmem:[%s1 + $0x84] sm:$0xf]
        %v1842 = vld [vmem:[%s1 + $0x88] sm:$0xf]
        %v1843 = vld [vmem:[%s1 + $0x8c] sm:$0xf]
        %v1844 = vld [vmem:[%s1 + $0x90] sm:$0xf]
        %v1845 = vld [vmem:[%s1 + $0x94] sm:$0xf]
        %v1846 = vld [vmem:[%s1 + $0x98] sm:$0xf]
        %v1847 = vld [vmem:[%s1 + $0x9c] sm:$0xf]
        %v1848 = vld [vmem:[%s1 + $0xa0] sm:$0xf]
        %v1849 = vld [vmem:[%s1 + $0xa4] sm:$0xf]
        %v1850 = vld [vmem:[%s1 + $0xa8] sm:$0xf]
        %v1851 = vld [vmem:[%s1 + $0xac] sm:$0xf]
        %v1852 = vld [vmem:[%s1 + $0xb0] sm:$0xf]
        %v1853 = vld [vmem:[%s1 + $0xb4] sm:$0xf]
        %v1854 = vld [vmem:[%s1 + $0xb8] sm:$0xf]
        %v1855 = vld [vmem:[%s1 + $0xbc] sm:$0xf]
        %v1856 = vld [vmem:[%s1 + $0xc0] sm:$0xf]
        %v1857 = vld [vmem:[%s1 + $0xc4] sm:$0xf]
        %v1858 = vld [vmem:[%s1 + $0xc8] sm:$0xf]
        %v1859 = vld [vmem:[%s1 + $0xcc] sm:$0xf]
        %v1860 = vld [vmem:[%s1 + $0xd0] sm:$0xf]
        %v1861 = vld [vmem:[%s1 + $0xd4] sm:$0xf]
        %v1862 = vld [vmem:[%s1 + $0xd8] sm:$0xf]
        %v1863 = vld [vmem:[%s1 + $0xdc] sm:$0xf]
        %v1864 = vld [vmem:[%s1 + $0xe0] sm:$0xf]
        %v1865 = vld [vmem:[%s1 + $0xe4] sm:$0xf]
        %v1866 = vld [vmem:[%s1 + $0xe8] sm:$0xf]
        %v1867 = vld [vmem:[%s1 + $0xec] sm:$0xf]
        %v1868 = vld [vmem:[%s1 + $0xf0] sm:$0xf]
        %v1869 = vld [vmem:[%s1 + $0xf4] sm:$0xf]
        %v1870 = vld [vmem:[%s1 + $0xf8] sm:$0xf]
        %v1871 = vld [vmem:[%s1 + $0xfc] sm:$0xf]
        %v1872 = vld [vmem:[%s1 + $0x100] sm:$0xf]
        %v1873 = vld [vmem:[%s1 + $0x104] sm:$0xf]
        %v1874 = vld [vmem:[%s1 + $0x108] sm:$0xf]
        %v1875 = vld [vmem:[%s1 + $0x10c] sm:$0xf]
        %v1876 = vld [vmem:[%s1 + $0x110] sm:$0xf]
        %v1877 = vld [vmem:[%s1 + $0x114] sm:$0xf]
        %v1878 = vld [vmem:[%s1 + $0x118] sm:$0xf]
        %v1879 = vld [vmem:[%s1 + $0x11c] sm:$0xf]
        %v1976 = vunpack.c.l.b16 %v1712
        %v1977 = vunpack.c.h.b16 %v1712
        %v1978 = vunpack.c.l.b16 %v1713
        %v1979 = vunpack.c.h.b16 %v1713
        %v1980 = vunpack.c.l.b16 %v1714
        %v1981 = vunpack.c.l.b16 %v1715
        %v1982 = vunpack.c.h.b16 %v1715
        %v1983 = vunpack.c.l.b16 %v1716
        %v1984 = vunpack.c.h.b16 %v1716
        %v1985 = vunpack.c.l.b16 %v1717
        %v1986 = vunpack.c.l.b16 %v1718
        %v1987 = vunpack.c.h.b16 %v1718
        %v1988 = vunpack.c.l.b16 %v1719
        %v1989 = vunpack.c.h.b16 %v1719
        %v1990 = vunpack.c.l.b16 %v1720
        %v1991 = vunpack.c.l.b16 %v1721
        %v1992 = vunpack.c.h.b16 %v1721
        %v1993 = vunpack.c.l.b16 %v1722
        %v1994 = vunpack.c.h.b16 %v1722
        %v1995 = vunpack.c.l.b16 %v1723
        %v1996 = vunpack.c.l.b16 %v1724
        %v1997 = vunpack.c.h.b16 %v1724
        %v1998 = vunpack.c.l.b16 %v1725
        %v1999 = vunpack.c.h.b16 %v1725
        %v2000 = vunpack.c.l.b16 %v1726
        %v2001 = vunpack.c.l.b16 %v1727
        %v2002 = vunpack.c.h.b16 %v1727
        %v2003 = vunpack.c.l.b16 %v1728
        %v2004 = vunpack.c.h.b16 %v1728
        %v2005 = vunpack.c.l.b16 %v1729
        %v2006 = vunpack.c.l.b16 %v1730
        %v2007 = vunpack.c.h.b16 %v1730
        %v2008 = vunpack.c.l.b16 %v1731
        %v2009 = vunpack.c.h.b16 %v1731
        %v2010 = vunpack.c.l.b16 %v1732
        %v2011 = vunpack.c.l.b16 %v1733
        %v2012 = vunpack.c.h.b16 %v1733
        %v2013 = vunpack.c.l.b16 %v1734
        %v2014 = vunpack.c.h.b16 %v1734
        %v2015 = vunpack.c.l.b16 %v1735
        %v2016 = vunpack.c.l.b16 %v1736
        %v2017 = vunpack.c.h.b16 %v1736
        %v2018 = vunpack.c.l.b16 %v1737
        %v2019 = vunpack.c.h.b16 %v1737
        %v2020 = vunpack.c.l.b16 %v1738
        %v2021 = vunpack.c.l.b16 %v1739
        %v2022 = vunpack.c.h.b16 %v1739
        %v2023 = vunpack.c.l.b16 %v1740
        %v2024 = vunpack.c.h.b16 %v1740
        %v2025 = vunpack.c.l.b16 %v1741
        %v2026 = vunpack.c.l.b16 %v1742
        %v2027 = vunpack.c.h.b16 %v1742
        %v2028 = vunpack.c.l.b16 %v1743
        %v2029 = vunpack.c.h.b16 %v1743
        %v2030 = vunpack.c.l.b16 %v1744
        %v2031 = vunpack.c.l.b16 %v1745
        %v2032 = vunpack.c.h.b16 %v1745
        %v2033 = vunpack.c.l.b16 %v1746
        %v2034 = vunpack.c.h.b16 %v1746
        %v2035 = vunpack.c.l.b16 %v1747
        %v2036 = vunpack.c.l.b16 %v1748
        %v2037 = vunpack.c.h.b16 %v1748
        %v2038 = vunpack.c.l.b16 %v1749
        %v2039 = vunpack.c.h.b16 %v1749
        %v2040 = vunpack.c.l.b16 %v1750
        %v2041 = vunpack.c.l.b16 %v1751
        %v2042 = vunpack.c.h.b16 %v1751
        %v2043 = vunpack.c.l.b16 %v1752
        %v2044 = vunpack.c.h.b16 %v1752
        %v2045 = vunpack.c.l.b16 %v1753
        %v2046 = vunpack.c.l.b16 %v1754
        %v2047 = vunpack.c.h.b16 %v1754
        %v2048 = vunpack.c.l.b16 %v1755
        %v2049 = vunpack.c.h.b16 %v1755
        %v2050 = vunpack.c.l.b16 %v1756
        %v2051 = vunpack.c.l.b16 %v1757
        %v2052 = vunpack.c.h.b16 %v1757
        %v2053 = vunpack.c.l.b16 %v1758
        %v2054 = vunpack.c.h.b16 %v1758
        %v2055 = vunpack.c.l.b16 %v1759
        %v2056 = vunpack.c.l.b16 %v1760
        %v2057 = vunpack.c.h.b16 %v1760
        %v2058 = vunpack.c.l.b16 %v1761
        %v2059 = vunpack.c.h.b16 %v1761
        %v2060 = vunpack.c.l.b16 %v1762
        %v2061 = vunpack.c.l.b16 %v1763
        %v2062 = vunpack.c.h.b16 %v1763
        %v2063 = vunpack.c.l.b16 %v1764
        %v2064 = vunpack.c.h.b16 %v1764
        %v2065 = vunpack.c.l.b16 %v1765
        %v2066 = vunpack.c.l.b16 %v1766
        %v2067 = vunpack.c.h.b16 %v1766
        %v2068 = vunpack.c.l.b16 %v1767
        %v2069 = vunpack.c.h.b16 %v1767
        %v2070 = vunpack.c.l.b16 %v1768
        %v2071 = vunpack.c.l.b16 %v1769
        %v2072 = vunpack.c.h.b16 %v1769
        %v2073 = vunpack.c.l.b16 %v1770
        %v2074 = vunpack.c.h.b16 %v1770
        %v2075 = vunpack.c.l.b16 %v1771
        %v2076 = vunpack.c.l.b16 %v1772
        %v2077 = vunpack.c.h.b16 %v1772
        %v2078 = vunpack.c.l.b16 %v1773
        %v2079 = vunpack.c.h.b16 %v1773
        %v2080 = vunpack.c.l.b16 %v1774
        %v2081 = vunpack.c.l.b16 %v1775
        %v2082 = vunpack.c.h.b16 %v1775
        %v2083 = vunpack.c.l.b16 %v1776
        %v2084 = vunpack.c.h.b16 %v1776
        %v2085 = vunpack.c.l.b16 %v1777
        %v2086 = vunpack.c.l.b16 %v1778
        %v2087 = vunpack.c.h.b16 %v1778
        %v2088 = vunpack.c.l.b16 %v1779
        %v2089 = vunpack.c.h.b16 %v1779
        %v2090 = vunpack.c.l.b16 %v1780
        %v2091 = vunpack.c.l.b16 %v1781
        %v2092 = vunpack.c.h.b16 %v1781
        %v2093 = vunpack.c.l.b16 %v1782
        %v2094 = vunpack.c.h.b16 %v1782
        %v2095 = vunpack.c.l.b16 %v1783
        %v2096 = vunpack.c.l.b16 %v1784
        %v2097 = vunpack.c.h.b16 %v1784
        %v2098 = vunpack.c.l.b16 %v1785
        %v2099 = vunpack.c.h.b16 %v1785
        %v2100 = vunpack.c.l.b16 %v1786
        %v2101 = vunpack.c.l.b16 %v1787
        %v2102 = vunpack.c.h.b16 %v1787
        %v2103 = vunpack.c.l.b16 %v1788
        %v2104 = vunpack.c.h.b16 %v1788
        %v2105 = vunpack.c.l.b16 %v1789
        %v2106 = vunpack.c.l.b16 %v1790
        %v2107 = vunpack.c.h.b16 %v1790
        %v2108 = vunpack.c.l.b16 %v1791
        %v2109 = vunpack.c.h.b16 %v1791
        %v2110 = vunpack.c.l.b16 %v1792
        %v2111 = vunpack.c.l.b16 %v1793
        %v2112 = vunpack.c.h.b16 %v1793
        %v2113 = vunpack.c.l.b16 %v1794
        %v2114 = vunpack.c.h.b16 %v1794
        %v2115 = vunpack.c.l.b16 %v1795
        %v2116 = vunpack.c.l.b16 %v1796
        %v2117 = vunpack.c.h.b16 %v1796
        %v2118 = vunpack.c.l.b16 %v1797
        %v2119 = vunpack.c.h.b16 %v1797
        %v2120 = vunpack.c.l.b16 %v1798
        %v2121 = vunpack.c.l.b16 %v1799
        %v2122 = vunpack.c.h.b16 %v1799
        %v2123 = vunpack.c.l.b16 %v1800
        %v2124 = vunpack.c.h.b16 %v1800
        %v2125 = vunpack.c.l.b16 %v1801
        %v2126 = vunpack.c.l.b16 %v1802
        %v2127 = vunpack.c.h.b16 %v1802
        %v2128 = vunpack.c.l.b16 %v1803
        %v2129 = vunpack.c.h.b16 %v1803
        %v2130 = vunpack.c.l.b16 %v1804
        %v2131 = vunpack.c.l.b16 %v1805
        %v2132 = vunpack.c.h.b16 %v1805
        %v2133 = vunpack.c.l.b16 %v1806
        %v2134 = vunpack.c.h.b16 %v1806
        %v2135 = vunpack.c.l.b16 %v1807
        %v2136 = vpack.c.b16 %v1981, %v1976
        %v2137 = vpack.c.b16 %v1982, %v1977
        %v2138 = vpack.c.b16 %v1983, %v1978
        %v2139 = vpack.c.b16 %v1984, %v1979
        %v2140 = vpack.c.b16 %v1985, %v1980
        %v2141 = vpack.c.b16 %v1991, %v1986
        %v2142 = vpack.c.b16 %v1992, %v1987
        %v2143 = vpack.c.b16 %v1993, %v1988
        %v2144 = vpack.c.b16 %v1994, %v1989
        %v2145 = vpack.c.b16 %v1995, %v1990
        %v2146 = vpack.c.b16 %v2001, %v1996
        %v2147 = vpack.c.b16 %v2002, %v1997
        %v2148 = vpack.c.b16 %v2003, %v1998
        %v2149 = vpack.c.b16 %v2004, %v1999
        %v2150 = vpack.c.b16 %v2005, %v2000
        %v2151 = vpack.c.b16 %v2011, %v2006
        %v2152 = vpack.c.b16 %v2012, %v2007
        %v2153 = vpack.c.b16 %v2013, %v2008
        %v2154 = vpack.c.b16 %v2014, %v2009
        %v2155 = vpack.c.b16 %v2015, %v2010
        %v2156 = vpack.c.b16 %v2021, %v2016
        %v2157 = vpack.c.b16 %v2022, %v2017
        %v2158 = vpack.c.b16 %v2023, %v2018
        %v2159 = vpack.c.b16 %v2024, %v2019
        %v2160 = vpack.c.b16 %v2025, %v2020
        %v2161 = vpack.c.b16 %v2031, %v2026
        %v2162 = vpack.c.b16 %v2032, %v2027
        %v2163 = vpack.c.b16 %v2033, %v2028
        %v2164 = vpack.c.b16 %v2034, %v2029
        %v2165 = vpack.c.b16 %v2035, %v2030
        %v2166 = vpack.c.b16 %v2041, %v2036
        %v2167 = vpack.c.b16 %v2042, %v2037
        %v2168 = vpack.c.b16 %v2043, %v2038
        %v2169 = vpack.c.b16 %v2044, %v2039
        %v2170 = vpack.c.b16 %v2045, %v2040
        %v2171 = vpack.c.b16 %v2051, %v2046
        %v2172 = vpack.c.b16 %v2052, %v2047
        %v2173 = vpack.c.b16 %v2053, %v2048
        %v2174 = vpack.c.b16 %v2054, %v2049
        %v2175 = vpack.c.b16 %v2055, %v2050
        %v2176 = vpack.c.b16 %v2061, %v2056
        %v2177 = vpack.c.b16 %v2062, %v2057
        %v2178 = vpack.c.b16 %v2063, %v2058
        %v2179 = vpack.c.b16 %v2064, %v2059
        %v2180 = vpack.c.b16 %v2065, %v2060
        %v2181 = vpack.c.b16 %v2071, %v2066
        %v2182 = vpack.c.b16 %v2072, %v2067
        %v2183 = vpack.c.b16 %v2073, %v2068
        %v2184 = vpack.c.b16 %v2074, %v2069
        %v2185 = vpack.c.b16 %v2075, %v2070
        %v2186 = vpack.c.b16 %v2081, %v2076
        %v2187 = vpack.c.b16 %v2082, %v2077
        %v2188 = vpack.c.b16 %v2083, %v2078
        %v2189 = vpack.c.b16 %v2084, %v2079
        %v2190 = vpack.c.b16 %v2085, %v2080
        %v2191 = vpack.c.b16 %v2091, %v2086
        %v2192 = vpack.c.b16 %v2092, %v2087
        %v2193 = vpack.c.b16 %v2093, %v2088
        %v2194 = vpack.c.b16 %v2094, %v2089
        %v2195 = vpack.c.b16 %v2095, %v2090
        %v2196 = vpack.c.b16 %v2101, %v2096
        %v2197 = vpack.c.b16 %v2102, %v2097
        %v2198 = vpack.c.b16 %v2103, %v2098
        %v2199 = vpack.c.b16 %v2104, %v2099
        %v2200 = vpack.c.b16 %v2105, %v2100
        %v2201 = vpack.c.b16 %v2111, %v2106
        %v2202 = vpack.c.b16 %v2112, %v2107
        %v2203 = vpack.c.b16 %v2113, %v2108
        %v2204 = vpack.c.b16 %v2114, %v2109
        %v2205 = vpack.c.b16 %v2115, %v2110
        %v2206 = vpack.c.b16 %v2121, %v2116
        %v2207 = vpack.c.b16 %v2122, %v2117
        %v2208 = vpack.c.b16 %v2123, %v2118
        %v2209 = vpack.c.b16 %v2124, %v2119
        %v2210 = vpack.c.b16 %v2125, %v2120
        %v2211 = vpack.c.b16 %v2131, %v2126
        %v2212 = vpack.c.b16 %v2132, %v2127
        %v2213 = vpack.c.b16 %v2133, %v2128
        %v2214 = vpack.c.b16 %v2134, %v2129
        %v2215 = vpack.c.b16 %v2135, %v2130
        %v2352 = vunpack.c.l.b16 %v1808
        %v2353 = vunpack.c.l.b16 %v1809
        %v2354 = vunpack.c.l.b16 %v1810
        %v2355 = vunpack.c.l.b16 %v1811
        %v2356 = vunpack.c.l.b16 %v1812
        %v2357 = vunpack.c.l.b16 %v1813
        %v2358 = vunpack.c.l.b16 %v1814
        %v2359 = vunpack.c.l.b16 %v1815
        %v2360 = vunpack.c.l.b16 %v1816
        %v2361 = vunpack.c.l.b16 %v1817
        %v2362 = vunpack.c.l.b16 %v1818
        %v2363 = vunpack.c.l.b16 %v1819
        %v2364 = vunpack.c.l.b16 %v1820
        %v2365 = vunpack.c.l.b16 %v1821
        %v2366 = vunpack.c.l.b16 %v1822
        %v2367 = vunpack.c.l.b16 %v1823
        %v2368 = vunpack.c.l.b16 %v1824
        %v2369 = vunpack.c.l.b16 %v1825
        %v2370 = vunpack.c.l.b16 %v1826
        %v2371 = vunpack.c.l.b16 %v1827
        %v2372 = vunpack.c.l.b16 %v1828
        %v2373 = vunpack.c.l.b16 %v1829
        %v2374 = vunpack.c.l.b16 %v1830
        %v2375 = vunpack.c.l.b16 %v1831
        %v2376 = vunpack.c.l.b16 %v1832
        %v2377 = vunpack.c.l.b16 %v1833
        %v2378 = vunpack.c.l.b16 %v1834
        %v2379 = vunpack.c.l.b16 %v1835
        %v2380 = vunpack.c.l.b16 %v1836
        %v2381 = vunpack.c.l.b16 %v1837
        %v2382 = vunpack.c.l.b16 %v1838
        %v2383 = vunpack.c.l.b16 %v1839
        %v2384 = vunpack.c.l.b16 %v1840
        %v2385 = vunpack.c.l.b16 %v1841
        %v2386 = vunpack.c.l.b16 %v1842
        %v2387 = vunpack.c.l.b16 %v1843
        %v2388 = vunpack.c.l.b16 %v1844
        %v2389 = vunpack.c.l.b16 %v1845
        %v2390 = vunpack.c.l.b16 %v1846
        %v2391 = vunpack.c.l.b16 %v1847
        %v2392 = vunpack.c.l.b16 %v1848
        %v2393 = vunpack.c.l.b16 %v1849
        %v2394 = vunpack.c.l.b16 %v1850
        %v2395 = vunpack.c.l.b16 %v1851
        %v2396 = vunpack.c.l.b16 %v1852
        %v2397 = vunpack.c.l.b16 %v1853
        %v2398 = vunpack.c.l.b16 %v1854
        %v2399 = vunpack.c.l.b16 %v1855
        %v2400 = vunpack.c.l.b16 %v1856
        %v2401 = vunpack.c.l.b16 %v1857
        %v2402 = vunpack.c.l.b16 %v1858
        %v2403 = vunpack.c.l.b16 %v1859
        %v2404 = vunpack.c.l.b16 %v1860
        %v2405 = vunpack.c.l.b16 %v1861
        %v2406 = vunpack.c.l.b16 %v1862
        %v2407 = vunpack.c.l.b16 %v1863
        %v2408 = vunpack.c.l.b16 %v1864
        %v2409 = vunpack.c.l.b16 %v1865
        %v2410 = vunpack.c.l.b16 %v1866
        %v2411 = vunpack.c.l.b16 %v1867
        %v2412 = vunpack.c.l.b16 %v1868
        %v2413 = vunpack.c.l.b16 %v1869
        %v2414 = vunpack.c.l.b16 %v1870
        %v2415 = vunpack.c.l.b16 %v1871
        %v2416 = vunpack.c.l.b16 %v1872
        %v2417 = vunpack.c.l.b16 %v1873
        %v2418 = vunpack.c.l.b16 %v1874
        %v2419 = vunpack.c.l.b16 %v1875
        %v2420 = vunpack.c.l.b16 %v1876
        %v2421 = vunpack.c.l.b16 %v1877
        %v2422 = vunpack.c.l.b16 %v1878
        %v2423 = vunpack.c.l.b16 %v1879
        %v2424 = vpack.c.b16 %v2353, %v2352
        %v2425 = vpack.c.b16 %v2355, %v2354
        %v2426 = vpack.c.b16 %v2357, %v2356
        %v2427 = vpack.c.b16 %v2359, %v2358
        %v2428 = vpack.c.b16 %v2361, %v2360
        %v2429 = vpack.c.b16 %v2363, %v2362
        %v2430 = vpack.c.b16 %v2365, %v2364
        %v2431 = vpack.c.b16 %v2367, %v2366
        %v2432 = vpack.c.b16 %v2369, %v2368
        %v2433 = vpack.c.b16 %v2371, %v2370
        %v2434 = vpack.c.b16 %v2373, %v2372
        %v2435 = vpack.c.b16 %v2375, %v2374
        %v2436 = vpack.c.b16 %v2377, %v2376
        %v2437 = vpack.c.b16 %v2379, %v2378
        %v2438 = vpack.c.b16 %v2381, %v2380
        %v2439 = vpack.c.b16 %v2383, %v2382
        %v2440 = vpack.c.b16 %v2385, %v2384
        %v2441 = vpack.c.b16 %v2387, %v2386
        %v2442 = vpack.c.b16 %v2389, %v2388
        %v2443 = vpack.c.b16 %v2391, %v2390
        %v2444 = vpack.c.b16 %v2393, %v2392
        %v2445 = vpack.c.b16 %v2395, %v2394
        %v2446 = vpack.c.b16 %v2397, %v2396
        %v2447 = vpack.c.b16 %v2399, %v2398
        %v2448 = vpack.c.b16 %v2401, %v2400
        %v2449 = vpack.c.b16 %v2403, %v2402
        %v2450 = vpack.c.b16 %v2405, %v2404
        %v2451 = vpack.c.b16 %v2407, %v2406
        %v2452 = vpack.c.b16 %v2409, %v2408
        %v2453 = vpack.c.b16 %v2411, %v2410
        %v2454 = vpack.c.b16 %v2413, %v2412
        %v2455 = vpack.c.b16 %v2415, %v2414
        %v2456 = vpack.c.b16 %v2417, %v2416
        %v2457 = vpack.c.b16 %v2419, %v2418
        %v2458 = vpack.c.b16 %v2421, %v2420
        %v2459 = vpack.c.b16 %v2423, %v2422
        %vm2496 = vcmask 523264
        %v2498 = vsel %vm2496, %v2140, 0
        %v2501 = vsel %vm2496, %v2145, 0
        %v2504 = vsel %vm2496, %v2150, 0
        %v2507 = vsel %vm2496, %v2155, 0
        %v2510 = vsel %vm2496, %v2160, 0
        %v2513 = vsel %vm2496, %v2165, 0
        %v2516 = vsel %vm2496, %v2170, 0
        %v2519 = vsel %vm2496, %v2175, 0
        %v2522 = vsel %vm2496, %v2180, 0
        %v2525 = vsel %vm2496, %v2185, 0
        %v2528 = vsel %vm2496, %v2190, 0
        %v2531 = vsel %vm2496, %v2195, 0
        %v2534 = vsel %vm2496, %v2200, 0
        %v2537 = vsel %vm2496, %v2205, 0
        %v2540 = vsel %vm2496, %v2210, 0
        %v2543 = vsel %vm2496, %v2215, 0
        %2545 = vmatprep.subr.bf16.mxu0 0
        %2546 = vmatpush1.bf16.msra.mxu0 %v2431
        %2547 = vmatprep.subr.bf16.mxu0 0
        %2548 = vmatpush1.bf16.msra.mxu0 %v2430
        %2549 = vmatprep.subr.bf16.mxu0 0
        %2550 = vmatpush1.bf16.msra.mxu0 %v2429
        %2551 = vmatprep.subr.bf16.mxu0 0
        %2552 = vmatpush1.bf16.msra.mxu0 %v2428
        %2553 = vmatprep.subr.bf16.mxu0 0
        %2554 = vmatpush1.bf16.msra.mxu0 %v2427
        %2555 = vmatprep.subr.bf16.mxu0 0
        %2556 = vmatpush1.bf16.msra.mxu0 %v2426
        %2557 = vmatprep.subr.bf16.mxu0 0
        %2558 = vmatpush1.bf16.msra.mxu0 %v2425
        %2559 = vmatprep.subr.bf16.mxu0 0
        %2560 = vmatpush1.bf16.msra.mxu0 %v2424
        %2561 = vmatprep.subr.bf16.mxu0 0
        %2562 = vmatpush2.bf16.msra.mxu0 %v2439
        %2563 = vmatprep.subr.bf16.mxu0 0
        %2564 = vmatpush2.bf16.msra.mxu0 %v2438
        %2565 = vmatprep.subr.bf16.mxu0 0
        %2566 = vmatpush2.bf16.msra.mxu0 %v2437
        %2567 = vmatprep.subr.bf16.mxu0 0
        %2568 = vmatpush2.bf16.msra.mxu0 %v2436
        %2569 = vmatprep.subr.bf16.mxu0 0
        %2570 = vmatpush2.bf16.msra.mxu0 %v2435
        %2571 = vmatprep.subr.bf16.mxu0 0
        %2572 = vmatpush2.bf16.msra.mxu0 %v2434
        %2573 = vmatprep.subr.bf16.mxu0 0
        %2574 = vmatpush2.bf16.msra.mxu0 %v2433
        %2575 = vmatprep.subr.bf16.mxu0 0
        %2576 = vmatpush2.bf16.msra.mxu0 %v2432
        %2577 = vmatprep.mubr.bf16.mxu0 %v2137
        %2578 = vmatmul.mubr.bf16.gmra.mxu0 %v2136
        %v2579 = vpop.f32.mrf.mxu0
        %v2580 = vadd.f32 0.0, %v2579
        %v2581 = vpop.f32.mrf.mxu0
        %v2582 = vpop.f32.mrf.mxu0
        %v2583 = vadd.f32 0.0, %v2582
        %v2584 = vpop.f32.mrf.mxu0
        %2585 = vmatprep.mubr.bf16.mxu0 %v2142
        %2586 = vmatmul.mubr.bf16.gmra.mxu0 %v2141
        %v2587 = vpop.f32.mrf.mxu0
        %v2588 = vadd.f32 0.0, %v2587
        %v2589 = vpop.f32.mrf.mxu0
        %v2590 = vpop.f32.mrf.mxu0
        %v2591 = vadd.f32 0.0, %v2590
        %v2592 = vpop.f32.mrf.mxu0
        %2593 = vmatprep.mubr.bf16.mxu0 %v2147
        %2594 = vmatmul.mubr.bf16.gmra.mxu0 %v2146
        %v2595 = vpop.f32.mrf.mxu0
        %v2596 = vadd.f32 0.0, %v2595
        %v2597 = vpop.f32.mrf.mxu0
        %v2598 = vpop.f32.mrf.mxu0
        %v2599 = vadd.f32 0.0, %v2598
        %v2600 = vpop.f32.mrf.mxu0
        %2601 = vmatprep.mubr.bf16.mxu0 %v2152
        %2602 = vmatmul.mubr.bf16.gmra.mxu0 %v2151
        %v2603 = vpop.f32.mrf.mxu0
        %v2604 = vadd.f32 0.0, %v2603
        %v2605 = vpop.f32.mrf.mxu0
        %v2606 = vpop.f32.mrf.mxu0
        %v2607 = vadd.f32 0.0, %v2606
        %v2608 = vpop.f32.mrf.mxu0
        %2609 = vmatprep.mubr.bf16.mxu0 %v2157
        %2610 = vmatmul.mubr.bf16.gmra.mxu0 %v2156
        %v2611 = vpop.f32.mrf.mxu0
        %v2612 = vadd.f32 0.0, %v2611
        %v2613 = vpop.f32.mrf.mxu0
        %v2614 = vpop.f32.mrf.mxu0
        %v2615 = vadd.f32 0.0, %v2614
        %v2616 = vpop.f32.mrf.mxu0
        %2617 = vmatprep.mubr.bf16.mxu0 %v2162
        %2618 = vmatmul.mubr.bf16.gmra.mxu0 %v2161
        %v2619 = vpop.f32.mrf.mxu0
        %v2620 = vadd.f32 0.0, %v2619
        %v2621 = vpop.f32.mrf.mxu0
        %v2622 = vpop.f32.mrf.mxu0
        %v2623 = vadd.f32 0.0, %v2622
        %v2624 = vpop.f32.mrf.mxu0
        %2625 = vmatprep.mubr.bf16.mxu0 %v2167
        %2626 = vmatmul.mubr.bf16.gmra.mxu0 %v2166
        %v2627 = vpop.f32.mrf.mxu0
        %v2628 = vadd.f32 0.0, %v2627
        %v2629 = vpop.f32.mrf.mxu0
        %v2630 = vpop.f32.mrf.mxu0
        %v2631 = vadd.f32 0.0, %v2630
        %v2632 = vpop.f32.mrf.mxu0
        %2633 = vmatprep.mubr.bf16.mxu0 %v2172
        %2634 = vmatmul.mubr.bf16.gmra.mxu0 %v2171
        %v2635 = vpop.f32.mrf.mxu0
        %v2636 = vadd.f32 0.0, %v2635
        %v2637 = vpop.f32.mrf.mxu0
        %v2638 = vpop.f32.mrf.mxu0
        %v2639 = vadd.f32 0.0, %v2638
        %v2640 = vpop.f32.mrf.mxu0
        %2641 = vmatprep.mubr.bf16.mxu0 %v2177
        %2642 = vmatmul.mubr.bf16.gmra.mxu0 %v2176
        %v2643 = vpop.f32.mrf.mxu0
        %v2644 = vadd.f32 0.0, %v2643
        %v2645 = vpop.f32.mrf.mxu0
        %v2646 = vpop.f32.mrf.mxu0
        %v2647 = vadd.f32 0.0, %v2646
        %v2648 = vpop.f32.mrf.mxu0
        %2649 = vmatprep.mubr.bf16.mxu0 %v2182
        %2650 = vmatmul.mubr.bf16.gmra.mxu0 %v2181
        %v2651 = vpop.f32.mrf.mxu0
        %v2652 = vadd.f32 0.0, %v2651
        %v2653 = vpop.f32.mrf.mxu0
        %v2654 = vpop.f32.mrf.mxu0
        %v2655 = vadd.f32 0.0, %v2654
        %v2656 = vpop.f32.mrf.mxu0
        %2657 = vmatprep.mubr.bf16.mxu0 %v2187
        %2658 = vmatmul.mubr.bf16.gmra.mxu0 %v2186
        %v2659 = vpop.f32.mrf.mxu0
        %v2660 = vadd.f32 0.0, %v2659
        %v2661 = vpop.f32.mrf.mxu0
        %v2662 = vpop.f32.mrf.mxu0
        %v2663 = vadd.f32 0.0, %v2662
        %v2664 = vpop.f32.mrf.mxu0
        %2665 = vmatprep.mubr.bf16.mxu0 %v2192
        %2666 = vmatmul.mubr.bf16.gmra.mxu0 %v2191
        %v2667 = vpop.f32.mrf.mxu0
        %v2668 = vadd.f32 0.0, %v2667
        %v2669 = vpop.f32.mrf.mxu0
        %v2670 = vpop.f32.mrf.mxu0
        %v2671 = vadd.f32 0.0, %v2670
        %v2672 = vpop.f32.mrf.mxu0
        %2673 = vmatprep.mubr.bf16.mxu0 %v2197
        %2674 = vmatmul.mubr.bf16.gmra.mxu0 %v2196
        %v2675 = vpop.f32.mrf.mxu0
        %v2676 = vadd.f32 0.0, %v2675
        %v2677 = vpop.f32.mrf.mxu0
        %v2678 = vpop.f32.mrf.mxu0
        %v2679 = vadd.f32 0.0, %v2678
        %v2680 = vpop.f32.mrf.mxu0
        %2681 = vmatprep.mubr.bf16.mxu0 %v2202
        %2682 = vmatmul.mubr.bf16.gmra.mxu0 %v2201
        %v2683 = vpop.f32.mrf.mxu0
        %v2684 = vadd.f32 0.0, %v2683
        %v2685 = vpop.f32.mrf.mxu0
        %v2686 = vpop.f32.mrf.mxu0
        %v2687 = vadd.f32 0.0, %v2686
        %v2688 = vpop.f32.mrf.mxu0
        %2689 = vmatprep.mubr.bf16.mxu0 %v2207
        %2690 = vmatmul.mubr.bf16.gmra.mxu0 %v2206
        %v2691 = vpop.f32.mrf.mxu0
        %v2692 = vadd.f32 0.0, %v2691
        %v2693 = vpop.f32.mrf.mxu0
        %v2694 = vpop.f32.mrf.mxu0
        %v2695 = vadd.f32 0.0, %v2694
        %v2696 = vpop.f32.mrf.mxu0
        %2697 = vmatprep.mubr.bf16.mxu0 %v2212
        %2698 = vmatmul.mubr.bf16.gmra.mxu0 %v2211
        %v2699 = vpop.f32.mrf.mxu0
        %v2700 = vadd.f32 0.0, %v2699
        %v2701 = vpop.f32.mrf.mxu0
        %v2702 = vpop.f32.mrf.mxu0
        %v2703 = vadd.f32 0.0, %v2702
        %v2704 = vpop.f32.mrf.mxu0
        %2705 = vdwg.mxu0
        %2706 = vmatprep.subr.bf16.mxu0 0
        %2707 = vmatpush1.bf16.msra.mxu0 %v2447
        %2708 = vmatprep.subr.bf16.mxu0 0
        %2709 = vmatpush1.bf16.msra.mxu0 %v2446
        %2710 = vmatprep.subr.bf16.mxu0 0
        %2711 = vmatpush1.bf16.msra.mxu0 %v2445
        %2712 = vmatprep.subr.bf16.mxu0 0
        %2713 = vmatpush1.bf16.msra.mxu0 %v2444
        %2714 = vmatprep.subr.bf16.mxu0 0
        %2715 = vmatpush1.bf16.msra.mxu0 %v2443
        %2716 = vmatprep.subr.bf16.mxu0 0
        %2717 = vmatpush1.bf16.msra.mxu0 %v2442
        %2718 = vmatprep.subr.bf16.mxu0 0
        %2719 = vmatpush1.bf16.msra.mxu0 %v2441
        %2720 = vmatprep.subr.bf16.mxu0 0
        %2721 = vmatpush1.bf16.msra.mxu0 %v2440
        %2722 = vmatprep.subr.bf16.mxu0 0
        %2723 = vmatpush2.bf16.msra.mxu0 %v2455
        %2724 = vmatprep.subr.bf16.mxu0 0
        %2725 = vmatpush2.bf16.msra.mxu0 %v2454
        %2726 = vmatprep.subr.bf16.mxu0 0
        %2727 = vmatpush2.bf16.msra.mxu0 %v2453
        %2728 = vmatprep.subr.bf16.mxu0 0
        %2729 = vmatpush2.bf16.msra.mxu0 %v2452
        %2730 = vmatprep.subr.bf16.mxu0 0
        %2731 = vmatpush2.bf16.msra.mxu0 %v2451
        %2732 = vmatprep.subr.bf16.mxu0 0
        %2733 = vmatpush2.bf16.msra.mxu0 %v2450
        %2734 = vmatprep.subr.bf16.mxu0 0
        %2735 = vmatpush2.bf16.msra.mxu0 %v2449
        %2736 = vmatprep.subr.bf16.mxu0 0
        %2737 = vmatpush2.bf16.msra.mxu0 %v2448
        %2738 = vmatprep.mubr.bf16.mxu0 %v2139
        %2739 = vmatmul.mubr.bf16.gmra.mxu0 %v2138
        %v2740 = vpop.f32.mrf.mxu0
        %v2741 = vadd.f32 %v2580, %v2740
        %v2742 = vpop.f32.mrf.mxu0
        %v2743 = vpop.f32.mrf.mxu0
        %v2744 = vadd.f32 %v2583, %v2743
        %v2745 = vpop.f32.mrf.mxu0
        %2746 = vmatprep.mubr.bf16.mxu0 %v2144
        %2747 = vmatmul.mubr.bf16.gmra.mxu0 %v2143
        %v2748 = vpop.f32.mrf.mxu0
        %v2749 = vadd.f32 %v2588, %v2748
        %v2750 = vpop.f32.mrf.mxu0
        %v2751 = vpop.f32.mrf.mxu0
        %v2752 = vadd.f32 %v2591, %v2751
        %v2753 = vpop.f32.mrf.mxu0
        %2754 = vmatprep.mubr.bf16.mxu0 %v2149
        %2755 = vmatmul.mubr.bf16.gmra.mxu0 %v2148
        %v2756 = vpop.f32.mrf.mxu0
        %v2757 = vadd.f32 %v2596, %v2756
        %v2758 = vpop.f32.mrf.mxu0
        %v2759 = vpop.f32.mrf.mxu0
        %v2760 = vadd.f32 %v2599, %v2759
        %v2761 = vpop.f32.mrf.mxu0
        %2762 = vmatprep.mubr.bf16.mxu0 %v2154
        %2763 = vmatmul.mubr.bf16.gmra.mxu0 %v2153
        %v2764 = vpop.f32.mrf.mxu0
        %v2765 = vadd.f32 %v2604, %v2764
        %v2766 = vpop.f32.mrf.mxu0
        %v2767 = vpop.f32.mrf.mxu0
        %v2768 = vadd.f32 %v2607, %v2767
        %v2769 = vpop.f32.mrf.mxu0
        %2770 = vmatprep.mubr.bf16.mxu0 %v2159
        %2771 = vmatmul.mubr.bf16.gmra.mxu0 %v2158
        %v2772 = vpop.f32.mrf.mxu0
        %v2773 = vadd.f32 %v2612, %v2772
        %v2774 = vpop.f32.mrf.mxu0
        %v2775 = vpop.f32.mrf.mxu0
        %v2776 = vadd.f32 %v2615, %v2775
        %v2777 = vpop.f32.mrf.mxu0
        %2778 = vmatprep.mubr.bf16.mxu0 %v2164
        %2779 = vmatmul.mubr.bf16.gmra.mxu0 %v2163
        %v2780 = vpop.f32.mrf.mxu0
        %v2781 = vadd.f32 %v2620, %v2780
        %v2782 = vpop.f32.mrf.mxu0
        %v2783 = vpop.f32.mrf.mxu0
        %v2784 = vadd.f32 %v2623, %v2783
        %v2785 = vpop.f32.mrf.mxu0
        %2786 = vmatprep.mubr.bf16.mxu0 %v2169
        %2787 = vmatmul.mubr.bf16.gmra.mxu0 %v2168
        %v2788 = vpop.f32.mrf.mxu0
        %v2789 = vadd.f32 %v2628, %v2788
        %v2790 = vpop.f32.mrf.mxu0
        %v2791 = vpop.f32.mrf.mxu0
        %v2792 = vadd.f32 %v2631, %v2791
        %v2793 = vpop.f32.mrf.mxu0
        %2794 = vmatprep.mubr.bf16.mxu0 %v2174
        %2795 = vmatmul.mubr.bf16.gmra.mxu0 %v2173
        %v2796 = vpop.f32.mrf.mxu0
        %v2797 = vadd.f32 %v2636, %v2796
        %v2798 = vpop.f32.mrf.mxu0
        %v2799 = vpop.f32.mrf.mxu0
        %v2800 = vadd.f32 %v2639, %v2799
        %v2801 = vpop.f32.mrf.mxu0
        %2802 = vmatprep.mubr.bf16.mxu0 %v2179
        %2803 = vmatmul.mubr.bf16.gmra.mxu0 %v2178
        %v2804 = vpop.f32.mrf.mxu0
        %v2805 = vadd.f32 %v2644, %v2804
        %v2806 = vpop.f32.mrf.mxu0
        %v2807 = vpop.f32.mrf.mxu0
        %v2808 = vadd.f32 %v2647, %v2807
        %v2809 = vpop.f32.mrf.mxu0
        %2810 = vmatprep.mubr.bf16.mxu0 %v2184
        %2811 = vmatmul.mubr.bf16.gmra.mxu0 %v2183
        %v2812 = vpop.f32.mrf.mxu0
        %v2813 = vadd.f32 %v2652, %v2812
        %v2814 = vpop.f32.mrf.mxu0
        %v2815 = vpop.f32.mrf.mxu0
        %v2816 = vadd.f32 %v2655, %v2815
        %v2817 = vpop.f32.mrf.mxu0
        %2818 = vmatprep.mubr.bf16.mxu0 %v2189
        %2819 = vmatmul.mubr.bf16.gmra.mxu0 %v2188
        %v2820 = vpop.f32.mrf.mxu0
        %v2821 = vadd.f32 %v2660, %v2820
        %v2822 = vpop.f32.mrf.mxu0
        %v2823 = vpop.f32.mrf.mxu0
        %v2824 = vadd.f32 %v2663, %v2823
        %v2825 = vpop.f32.mrf.mxu0
        %2826 = vmatprep.mubr.bf16.mxu0 %v2194
        %2827 = vmatmul.mubr.bf16.gmra.mxu0 %v2193
        %v2828 = vpop.f32.mrf.mxu0
        %v2829 = vadd.f32 %v2668, %v2828
        %v2830 = vpop.f32.mrf.mxu0
        %v2831 = vpop.f32.mrf.mxu0
        %v2832 = vadd.f32 %v2671, %v2831
        %v2833 = vpop.f32.mrf.mxu0
        %2834 = vmatprep.mubr.bf16.mxu0 %v2199
        %2835 = vmatmul.mubr.bf16.gmra.mxu0 %v2198
        %v2836 = vpop.f32.mrf.mxu0
        %v2837 = vadd.f32 %v2676, %v2836
        %v2838 = vpop.f32.mrf.mxu0
        %v2839 = vpop.f32.mrf.mxu0
        %v2840 = vadd.f32 %v2679, %v2839
        %v2841 = vpop.f32.mrf.mxu0
        %2842 = vmatprep.mubr.bf16.mxu0 %v2204
        %2843 = vmatmul.mubr.bf16.gmra.mxu0 %v2203
        %v2844 = vpop.f32.mrf.mxu0
        %v2845 = vadd.f32 %v2684, %v2844
        %v2846 = vpop.f32.mrf.mxu0
        %v2847 = vpop.f32.mrf.mxu0
        %v2848 = vadd.f32 %v2687, %v2847
        %v2849 = vpop.f32.mrf.mxu0
        %2850 = vmatprep.mubr.bf16.mxu0 %v2209
        %2851 = vmatmul.mubr.bf16.gmra.mxu0 %v2208
        %v2852 = vpop.f32.mrf.mxu0
        %v2853 = vadd.f32 %v2692, %v2852
        %v2854 = vpop.f32.mrf.mxu0
        %v2855 = vpop.f32.mrf.mxu0
        %v2856 = vadd.f32 %v2695, %v2855
        %v2857 = vpop.f32.mrf.mxu0
        %2858 = vmatprep.mubr.bf16.mxu0 %v2214
        %2859 = vmatmul.mubr.bf16.gmra.mxu0 %v2213
        %v2860 = vpop.f32.mrf.mxu0
        %v2861 = vadd.f32 %v2700, %v2860
        %v2862 = vpop.f32.mrf.mxu0
        %v2863 = vpop.f32.mrf.mxu0
        %v2864 = vadd.f32 %v2703, %v2863
        %v2865 = vpop.f32.mrf.mxu0
        %2866 = vdwg.mxu0
        %2867 = vmatprep.subr.bf16.mxu0 0
        %2868 = vmatpush1.bf16.msra.mxu0 0
        %2869 = vmatprep.subr.bf16.mxu0 0
        %2870 = vmatpush1.bf16.msra.mxu0 0
        %2871 = vmatprep.subr.bf16.mxu0 0
        %2872 = vmatpush1.bf16.msra.mxu0 0
        %2873 = vmatprep.subr.bf16.mxu0 0
        %2874 = vmatpush1.bf16.msra.mxu0 0
        %2875 = vmatprep.subr.bf16.mxu0 0
        %2876 = vmatpush1.bf16.msra.mxu0 %v2459
        %2877 = vmatprep.subr.bf16.mxu0 0
        %2878 = vmatpush1.bf16.msra.mxu0 %v2458
        %2879 = vmatprep.subr.bf16.mxu0 0
        %2880 = vmatpush1.bf16.msra.mxu0 %v2457
        %2881 = vmatprep.subr.bf16.mxu0 0
        %2882 = vmatpush1.bf16.msra.mxu0 %v2456
        %2883 = vmatprep.subr.bf16.mxu0 0
        %2884 = vmatpush2.bf16.msra.mxu0 0
        %2885 = vmatprep.subr.bf16.mxu0 0
        %2886 = vmatpush2.bf16.msra.mxu0 0
        %2887 = vmatprep.subr.bf16.mxu0 0
        %2888 = vmatpush2.bf16.msra.mxu0 0
        %2889 = vmatprep.subr.bf16.mxu0 0
        %2890 = vmatpush2.bf16.msra.mxu0 0
        %2891 = vmatprep.subr.bf16.mxu0 0
        %2892 = vmatpush2.bf16.msra.mxu0 0
        %2893 = vmatprep.subr.bf16.mxu0 0
        %2894 = vmatpush2.bf16.msra.mxu0 0
        %2895 = vmatprep.subr.bf16.mxu0 0
        %2896 = vmatpush2.bf16.msra.mxu0 0
        %2897 = vmatprep.subr.bf16.mxu0 0
        %2898 = vmatpush2.bf16.msra.mxu0 0
        %2899 = vmatprep.mubr.bf16.mxu0 0
        %2900 = vmatmul.mubr.bf16.gmra.mxu0 %v2498
        %v2901 = vpop.f32.mrf.mxu0
        %v2902 = vadd.f32 %v2741, %v2901
        %v2903 = vpop.f32.mrf.mxu0
        %v2904 = vpop.f32.mrf.mxu0
        %v2905 = vadd.f32 %v2744, %v2904
        %v2906 = vpop.f32.mrf.mxu0
        %2907 = vmatprep.mubr.bf16.mxu0 0
        %2908 = vmatmul.mubr.bf16.gmra.mxu0 %v2501
        %v2909 = vpop.f32.mrf.mxu0
        %v2910 = vadd.f32 %v2749, %v2909
        %v2911 = vpop.f32.mrf.mxu0
        %v2912 = vpop.f32.mrf.mxu0
        %v2913 = vadd.f32 %v2752, %v2912
        %v2914 = vpop.f32.mrf.mxu0
        %2915 = vmatprep.mubr.bf16.mxu0 0
        %2916 = vmatmul.mubr.bf16.gmra.mxu0 %v2504
        %v2917 = vpop.f32.mrf.mxu0
        %v2918 = vadd.f32 %v2757, %v2917
        %v2919 = vpop.f32.mrf.mxu0
        %v2920 = vpop.f32.mrf.mxu0
        %v2921 = vadd.f32 %v2760, %v2920
        %v2922 = vpop.f32.mrf.mxu0
        %2923 = vmatprep.mubr.bf16.mxu0 0
        %2924 = vmatmul.mubr.bf16.gmra.mxu0 %v2507
        %v2925 = vpop.f32.mrf.mxu0
        %v2926 = vadd.f32 %v2765, %v2925
        %v2927 = vpop.f32.mrf.mxu0
        %v2928 = vpop.f32.mrf.mxu0
        %v2929 = vadd.f32 %v2768, %v2928
        %v2930 = vpop.f32.mrf.mxu0
        %2931 = vmatprep.mubr.bf16.mxu0 0
        %2932 = vmatmul.mubr.bf16.gmra.mxu0 %v2510
        %v2933 = vpop.f32.mrf.mxu0
        %v2934 = vadd.f32 %v2773, %v2933
        %v2935 = vpop.f32.mrf.mxu0
        %v2936 = vpop.f32.mrf.mxu0
        %v2937 = vadd.f32 %v2776, %v2936
        %v2938 = vpop.f32.mrf.mxu0
        %2939 = vmatprep.mubr.bf16.mxu0 0
        %2940 = vmatmul.mubr.bf16.gmra.mxu0 %v2513
        %v2941 = vpop.f32.mrf.mxu0
        %v2942 = vadd.f32 %v2781, %v2941
        %v2943 = vpop.f32.mrf.mxu0
        %v2944 = vpop.f32.mrf.mxu0
        %v2945 = vadd.f32 %v2784, %v2944
        %v2946 = vpop.f32.mrf.mxu0
        %2947 = vmatprep.mubr.bf16.mxu0 0
        %2948 = vmatmul.mubr.bf16.gmra.mxu0 %v2516
        %v2949 = vpop.f32.mrf.mxu0
        %v2950 = vadd.f32 %v2789, %v2949
        %v2951 = vpop.f32.mrf.mxu0
        %v2952 = vpop.f32.mrf.mxu0
        %v2953 = vadd.f32 %v2792, %v2952
        %v2954 = vpop.f32.mrf.mxu0
        %2955 = vmatprep.mubr.bf16.mxu0 0
        %2956 = vmatmul.mubr.bf16.gmra.mxu0 %v2519
        %v2957 = vpop.f32.mrf.mxu0
        %v2958 = vadd.f32 %v2797, %v2957
        %v2959 = vpop.f32.mrf.mxu0
        %v2960 = vpop.f32.mrf.mxu0
        %v2961 = vadd.f32 %v2800, %v2960
        %v2962 = vpop.f32.mrf.mxu0
        %2963 = vmatprep.mubr.bf16.mxu0 0
        %2964 = vmatmul.mubr.bf16.gmra.mxu0 %v2522
        %v2965 = vpop.f32.mrf.mxu0
        %v2966 = vadd.f32 %v2805, %v2965
        %v2967 = vpop.f32.mrf.mxu0
        %v2968 = vpop.f32.mrf.mxu0
        %v2969 = vadd.f32 %v2808, %v2968
        %v2970 = vpop.f32.mrf.mxu0
        %2971 = vmatprep.mubr.bf16.mxu0 0
        %2972 = vmatmul.mubr.bf16.gmra.mxu0 %v2525
        %v2973 = vpop.f32.mrf.mxu0
        %v2974 = vadd.f32 %v2813, %v2973
        %v2975 = vpop.f32.mrf.mxu0
        %v2976 = vpop.f32.mrf.mxu0
        %v2977 = vadd.f32 %v2816, %v2976
        %v2978 = vpop.f32.mrf.mxu0
        %2979 = vmatprep.mubr.bf16.mxu0 0
        %2980 = vmatmul.mubr.bf16.gmra.mxu0 %v2528
        %v2981 = vpop.f32.mrf.mxu0
        %v2982 = vadd.f32 %v2821, %v2981
        %v2983 = vpop.f32.mrf.mxu0
        %v2984 = vpop.f32.mrf.mxu0
        %v2985 = vadd.f32 %v2824, %v2984
        %v2986 = vpop.f32.mrf.mxu0
        %2987 = vmatprep.mubr.bf16.mxu0 0
        %2988 = vmatmul.mubr.bf16.gmra.mxu0 %v2531
        %v2989 = vpop.f32.mrf.mxu0
        %v2990 = vadd.f32 %v2829, %v2989
        %v2991 = vpop.f32.mrf.mxu0
        %v2992 = vpop.f32.mrf.mxu0
        %v2993 = vadd.f32 %v2832, %v2992
        %v2994 = vpop.f32.mrf.mxu0
        %2995 = vmatprep.mubr.bf16.mxu0 0
        %2996 = vmatmul.mubr.bf16.gmra.mxu0 %v2534
        %v2997 = vpop.f32.mrf.mxu0
        %v2998 = vadd.f32 %v2837, %v2997
        %v2999 = vpop.f32.mrf.mxu0
        %v3000 = vpop.f32.mrf.mxu0
        %v3001 = vadd.f32 %v2840, %v3000
        %v3002 = vpop.f32.mrf.mxu0
        %3003 = vmatprep.mubr.bf16.mxu0 0
        %3004 = vmatmul.mubr.bf16.gmra.mxu0 %v2537
        %v3005 = vpop.f32.mrf.mxu0
        %v3006 = vadd.f32 %v2845, %v3005
        %v3007 = vpop.f32.mrf.mxu0
        %v3008 = vpop.f32.mrf.mxu0
        %v3009 = vadd.f32 %v2848, %v3008
        %v3010 = vpop.f32.mrf.mxu0
        %3011 = vmatprep.mubr.bf16.mxu0 0
        %3012 = vmatmul.mubr.bf16.gmra.mxu0 %v2540
        %v3013 = vpop.f32.mrf.mxu0
        %v3014 = vadd.f32 %v2853, %v3013
        %v3015 = vpop.f32.mrf.mxu0
        %v3016 = vpop.f32.mrf.mxu0
        %v3017 = vadd.f32 %v2856, %v3016
        %v3018 = vpop.f32.mrf.mxu0
        %3019 = vmatprep.mubr.bf16.mxu0 0
        %3020 = vmatmul.mubr.bf16.gmra.mxu0 %v2543
        %v3021 = vpop.f32.mrf.mxu0
        %v3022 = vadd.f32 %v2861, %v3021
        %v3023 = vpop.f32.mrf.mxu0
        %v3024 = vpop.f32.mrf.mxu0
        %v3025 = vadd.f32 %v2864, %v3024
        %v3026 = vpop.f32.mrf.mxu0
        %3027 = vdwg.mxu0
        %v3028 = vld [vmem:[%s3] sm:$0x1]
        %v3030 = vlaneseq
        %v3031 = vshrl.u32 %v3030, 7
        %v3032 = vsub.s32 0, %v3031
        %v3033 = vrot.slane %v3028, %v3032
        %v3035 = vmul.f32 %v2902, %v3033
        %v3036 = vmul.f32 %v2905, %v3033
        %v3037 = vmul.f32 %v2910, %v3033
        %v3038 = vmul.f32 %v2913, %v3033
        %v3039 = vmul.f32 %v2918, %v3033
        %v3040 = vmul.f32 %v2921, %v3033
        %v3041 = vmul.f32 %v2926, %v3033
        %v3042 = vmul.f32 %v2929, %v3033
        %v3043 = vmul.f32 %v2934, %v3033
        %v3044 = vmul.f32 %v2937, %v3033
        %v3045 = vmul.f32 %v2942, %v3033
        %v3046 = vmul.f32 %v2945, %v3033
        %v3047 = vmul.f32 %v2950, %v3033
        %v3048 = vmul.f32 %v2953, %v3033
        %v3049 = vmul.f32 %v2958, %v3033
        %v3050 = vmul.f32 %v2961, %v3033
        %v3051 = vmul.f32 %v2966, %v3033
        %v3052 = vmul.f32 %v2969, %v3033
        %v3053 = vmul.f32 %v2974, %v3033
        %v3054 = vmul.f32 %v2977, %v3033
        %v3055 = vmul.f32 %v2982, %v3033
        %v3056 = vmul.f32 %v2985, %v3033
        %v3057 = vmul.f32 %v2990, %v3033
        %v3058 = vmul.f32 %v2993, %v3033
        %v3059 = vmul.f32 %v2998, %v3033
        %v3060 = vmul.f32 %v3001, %v3033
        %v3061 = vmul.f32 %v3006, %v3033
        %v3062 = vmul.f32 %v3009, %v3033
        %v3063 = vmul.f32 %v3014, %v3033
        %v3064 = vmul.f32 %v3017, %v3033
        %v3065 = vmul.f32 %v3022, %v3033
        %v3066 = vmul.f32 %v3025, %v3033
        %v3067 = vld [vmem:[%s4] sm:$0x1]
        %v3069 = vlaneseq
        %v3070 = vshrl.u32 %v3069, 7
        %v3071 = vsub.s32 0, %v3070
        %v3072 = vrot.slane %v3067, %v3071
        %v3074 = vadd.f32 %v3035, %v3072
        %v3075 = vadd.f32 %v3036, %v3072
        %v3076 = vadd.f32 %v3037, %v3072
        %v3077 = vadd.f32 %v3038, %v3072
        %v3078 = vadd.f32 %v3039, %v3072
        %v3079 = vadd.f32 %v3040, %v3072
        %v3080 = vadd.f32 %v3041, %v3072
        %v3081 = vadd.f32 %v3042, %v3072
        %v3082 = vadd.f32 %v3043, %v3072
        %v3083 = vadd.f32 %v3044, %v3072
        %v3084 = vadd.f32 %v3045, %v3072
        %v3085 = vadd.f32 %v3046, %v3072
        %v3086 = vadd.f32 %v3047, %v3072
        %v3087 = vadd.f32 %v3048, %v3072
        %v3088 = vadd.f32 %v3049, %v3072
        %v3089 = vadd.f32 %v3050, %v3072
        %v3090 = vadd.f32 %v3051, %v3072
        %v3091 = vadd.f32 %v3052, %v3072
        %v3092 = vadd.f32 %v3053, %v3072
        %v3093 = vadd.f32 %v3054, %v3072
        %v3094 = vadd.f32 %v3055, %v3072
        %v3095 = vadd.f32 %v3056, %v3072
        %v3096 = vadd.f32 %v3057, %v3072
        %v3097 = vadd.f32 %v3058, %v3072
        %v3098 = vadd.f32 %v3059, %v3072
        %v3099 = vadd.f32 %v3060, %v3072
        %v3100 = vadd.f32 %v3061, %v3072
        %v3101 = vadd.f32 %v3062, %v3072
        %v3102 = vadd.f32 %v3063, %v3072
        %v3103 = vadd.f32 %v3064, %v3072
        %v3104 = vadd.f32 %v3065, %v3072
        %v3105 = vadd.f32 %v3066, %v3072
        %v3106 = vmax.f32 %v3074, 0.0
        %v3107 = vmax.f32 %v3075, 0.0
        %v3108 = vmax.f32 %v3076, 0.0
        %v3109 = vmax.f32 %v3077, 0.0
        %v3110 = vmax.f32 %v3078, 0.0
        %v3111 = vmax.f32 %v3079, 0.0
        %v3112 = vmax.f32 %v3080, 0.0
        %v3113 = vmax.f32 %v3081, 0.0
        %v3114 = vmax.f32 %v3082, 0.0
        %v3115 = vmax.f32 %v3083, 0.0
        %v3116 = vmax.f32 %v3084, 0.0
        %v3117 = vmax.f32 %v3085, 0.0
        %v3118 = vmax.f32 %v3086, 0.0
        %v3119 = vmax.f32 %v3087, 0.0
        %v3120 = vmax.f32 %v3088, 0.0
        %v3121 = vmax.f32 %v3089, 0.0
        %v3122 = vmax.f32 %v3090, 0.0
        %v3123 = vmax.f32 %v3091, 0.0
        %v3124 = vmax.f32 %v3092, 0.0
        %v3125 = vmax.f32 %v3093, 0.0
        %v3126 = vmax.f32 %v3094, 0.0
        %v3127 = vmax.f32 %v3095, 0.0
        %v3128 = vmax.f32 %v3096, 0.0
        %v3129 = vmax.f32 %v3097, 0.0
        %v3130 = vmax.f32 %v3098, 0.0
        %v3131 = vmax.f32 %v3099, 0.0
        %v3132 = vmax.f32 %v3100, 0.0
        %v3133 = vmax.f32 %v3101, 0.0
        %v3134 = vmax.f32 %v3102, 0.0
        %v3135 = vmax.f32 %v3103, 0.0
        %v3136 = vmax.f32 %v3104, 0.0
        %v3137 = vmax.f32 %v3105, 0.0
        %3138 = vst.msk [vmem:[#allocation2] sm:$0xff] %vm2496, 0.0
        %3139 = vst.msk [vmem:[#allocation2 + $0x8] sm:$0xff] %vm2496, 0.0
        %vm3140 = vcmask 517120
        %3141 = vst.msk [vmem:[#allocation2 + $0x10] sm:$0x3] %vm3140, 0.0
        %3142 = vst.msk [vmem:[#allocation2 + $0x18] sm:$0xff] %vm2496, 0.0
        %3143 = vst.msk [vmem:[#allocation2 + $0x20] sm:$0xff] %vm2496, 0.0
        %3144 = vst.msk [vmem:[#allocation2 + $0x28] sm:$0x3] %vm3140, 0.0
        %3145 = vst.msk [vmem:[#allocation2 + $0x30] sm:$0xff] %vm2496, 0.0
        %3146 = vst.msk [vmem:[#allocation2 + $0x38] sm:$0xff] %vm2496, 0.0
        %3147 = vst.msk [vmem:[#allocation2 + $0x40] sm:$0x3] %vm3140, 0.0
        %3148 = vst.msk [vmem:[#allocation2 + $0x48] sm:$0xff] %vm2496, 0.0
        %3149 = vst.msk [vmem:[#allocation2 + $0x50] sm:$0xff] %vm2496, 0.0
        %3150 = vst.msk [vmem:[#allocation2 + $0x58] sm:$0x3] %vm3140, 0.0
        %3151 = vst.msk [vmem:[#allocation2 + $0x60] sm:$0xff] %vm2496, 0.0
        %3152 = vst.msk [vmem:[#allocation2 + $0x68] sm:$0xff] %vm2496, 0.0
        %3153 = vst.msk [vmem:[#allocation2 + $0x70] sm:$0x3] %vm3140, 0.0
        %3154 = vst.msk [vmem:[#allocation2 + $0x78] sm:$0xff] %vm2496, 0.0
        %3155 = vst.msk [vmem:[#allocation2 + $0x80] sm:$0xff] %vm2496, 0.0
        %3156 = vst.msk [vmem:[#allocation2 + $0x88] sm:$0x3] %vm3140, 0.0
        %3157 = vst.msk [vmem:[#allocation2 + $0x90] sm:$0xff] %vm2496, 0.0
        %3158 = vst.msk [vmem:[#allocation2 + $0x98] sm:$0xff] %vm2496, 0.0
        %3159 = vst.msk [vmem:[#allocation2 + $0xa0] sm:$0x3] %vm3140, 0.0
        %3160 = vst.msk [vmem:[#allocation2 + $0xa8] sm:$0xff] %vm2496, 0.0
        %3161 = vst.msk [vmem:[#allocation2 + $0xb0] sm:$0xff] %vm2496, 0.0
        %3162 = vst.msk [vmem:[#allocation2 + $0xb8] sm:$0x3] %vm3140, 0.0
        %3163 = vst.msk [vmem:[#allocation2 + $0xc0] sm:$0xff] %vm2496, 0.0
        %3164 = vst.msk [vmem:[#allocation2 + $0xc8] sm:$0xff] %vm2496, 0.0
        %3165 = vst.msk [vmem:[#allocation2 + $0xd0] sm:$0x3] %vm3140, 0.0
        %3166 = vst.msk [vmem:[#allocation2 + $0xd8] sm:$0xff] %vm2496, 0.0
        %3167 = vst.msk [vmem:[#allocation2 + $0xe0] sm:$0xff] %vm2496, 0.0
        %3168 = vst.msk [vmem:[#allocation2 + $0xe8] sm:$0x3] %vm3140, 0.0
        %3169 = vst.msk [vmem:[#allocation2 + $0xf0] sm:$0xff] %vm2496, 0.0
        %3170 = vst.msk [vmem:[#allocation2 + $0xf8] sm:$0xff] %vm2496, 0.0
        %3171 = vst.msk [vmem:[#allocation2 + $0x100] sm:$0x3] %vm3140, 0.0
        %3172 = vst.msk [vmem:[#allocation2 + $0x108] sm:$0xff] %vm2496, 0.0
        %3173 = vst.msk [vmem:[#allocation2 + $0x110] sm:$0xff] %vm2496, 0.0
        %3174 = vst.msk [vmem:[#allocation2 + $0x118] sm:$0x3] %vm3140, 0.0
        %3175 = vst.msk [vmem:[#allocation2 + $0x120] sm:$0xff] %vm2496, 0.0
        %3176 = vst.msk [vmem:[#allocation2 + $0x128] sm:$0xff] %vm2496, 0.0
        %3177 = vst.msk [vmem:[#allocation2 + $0x130] sm:$0x3] %vm3140, 0.0
        %3178 = vst.msk [vmem:[#allocation2 + $0x138] sm:$0xff] %vm2496, 0.0
        %3179 = vst.msk [vmem:[#allocation2 + $0x140] sm:$0xff] %vm2496, 0.0
        %3180 = vst.msk [vmem:[#allocation2 + $0x148] sm:$0x3] %vm3140, 0.0
        %3181 = vst.msk [vmem:[#allocation2 + $0x150] sm:$0xff] %vm2496, 0.0
        %3182 = vst.msk [vmem:[#allocation2 + $0x158] sm:$0xff] %vm2496, 0.0
        %3183 = vst.msk [vmem:[#allocation2 + $0x160] sm:$0x3] %vm3140, 0.0
        %3184 = vst.msk [vmem:[#allocation2 + $0x168] sm:$0xff] %vm2496, 0.0
        %3185 = vst.msk [vmem:[#allocation2 + $0x170] sm:$0xff] %vm2496, 0.0
        %3186 = vst.msk [vmem:[#allocation2 + $0x178] sm:$0x3] %vm3140, 0.0
        %3187 = vst.msk [vmem:[#allocation2 + $0x180] sm:$0xff] %vm2496, 0.0
        %3188 = vst.msk [vmem:[#allocation2 + $0x188] sm:$0xff] %vm2496, 0.0
        %3189 = vst.msk [vmem:[#allocation2 + $0x190] sm:$0x3] %vm3140, 0.0
        %3190 = vst.msk [vmem:[#allocation2 + $0x198] sm:$0xff] %vm2496, 0.0
        %3191 = vst.msk [vmem:[#allocation2 + $0x1a0] sm:$0xff] %vm2496, 0.0
        %3192 = vst.msk [vmem:[#allocation2 + $0x1a8] sm:$0x3] %vm3140, 0.0
        %s3193 = scalar_lea.vmem [#allocation2], 24
        %3194 = vst.msk [vmem:[%s3193 + $0x1] sm:$0xff] %vm2496, %v3106
        %3195 = vst.msk [vmem:[%s3193 + $0x9] sm:$0xff] %vm2496, %v3107
        %3196 = vst.msk [vmem:[%s3193 + $0x19] sm:$0xff] %vm2496, %v3108
        %3197 = vst.msk [vmem:[%s3193 + $0x21] sm:$0xff] %vm2496, %v3109
        %3198 = vst.msk [vmem:[%s3193 + $0x31] sm:$0xff] %vm2496, %v3110
        %3199 = vst.msk [vmem:[%s3193 + $0x39] sm:$0xff] %vm2496, %v3111
        %3200 = vst.msk [vmem:[%s3193 + $0x49] sm:$0xff] %vm2496, %v3112
        %3201 = vst.msk [vmem:[%s3193 + $0x51] sm:$0xff] %vm2496, %v3113
        %3202 = vst.msk [vmem:[%s3193 + $0x61] sm:$0xff] %vm2496, %v3114
        %3203 = vst.msk [vmem:[%s3193 + $0x69] sm:$0xff] %vm2496, %v3115
        %3204 = vst.msk [vmem:[%s3193 + $0x79] sm:$0xff] %vm2496, %v3116
        %3205 = vst.msk [vmem:[%s3193 + $0x81] sm:$0xff] %vm2496, %v3117
        %3206 = vst.msk [vmem:[%s3193 + $0x91] sm:$0xff] %vm2496, %v3118
        %3207 = vst.msk [vmem:[%s3193 + $0x99] sm:$0xff] %vm2496, %v3119
        %3208 = vst.msk [vmem:[%s3193 + $0xa9] sm:$0xff] %vm2496, %v3120
        %3209 = vst.msk [vmem:[%s3193 + $0xb1] sm:$0xff] %vm2496, %v3121
        %3210 = vst.msk [vmem:[%s3193 + $0xc1] sm:$0xff] %vm2496, %v3122
        %3211 = vst.msk [vmem:[%s3193 + $0xc9] sm:$0xff] %vm2496, %v3123
        %3212 = vst.msk [vmem:[%s3193 + $0xd9] sm:$0xff] %vm2496, %v3124
        %3213 = vst.msk [vmem:[%s3193 + $0xe1] sm:$0xff] %vm2496, %v3125
        %3214 = vst.msk [vmem:[%s3193 + $0xf1] sm:$0xff] %vm2496, %v3126
        %3215 = vst.msk [vmem:[%s3193 + $0xf9] sm:$0xff] %vm2496, %v3127
        %3216 = vst.msk [vmem:[%s3193 + $0x109] sm:$0xff] %vm2496, %v3128
        %3217 = vst.msk [vmem:[%s3193 + $0x111] sm:$0xff] %vm2496, %v3129
        %3218 = vst.msk [vmem:[%s3193 + $0x121] sm:$0xff] %vm2496, %v3130
        %3219 = vst.msk [vmem:[%s3193 + $0x129] sm:$0xff] %vm2496, %v3131
        %3220 = vst.msk [vmem:[%s3193 + $0x139] sm:$0xff] %vm2496, %v3132
        %3221 = vst.msk [vmem:[%s3193 + $0x141] sm:$0xff] %vm2496, %v3133
        %3222 = vst.msk [vmem:[%s3193 + $0x151] sm:$0xff] %vm2496, %v3134
        %3223 = vst.msk [vmem:[%s3193 + $0x159] sm:$0xff] %vm2496, %v3135
        %3224 = vst.msk [vmem:[%s3193 + $0x169] sm:$0xff] %vm2496, %v3136
        %3225 = vst.msk [vmem:[%s3193 + $0x171] sm:$0xff] %vm2496, %v3137
        %v3226 = vld [vmem:[#allocation2] sm:$0xff]
        %v3227 = vld [vmem:[#allocation2 + $0x8] sm:$0xff]
        %v3228 = vld [vmem:[#allocation2 + $0x10] sm:$0x3]
        %v3229 = vld [vmem:[#allocation2 + $0x18] sm:$0xff]
        %v3230 = vld [vmem:[#allocation2 + $0x20] sm:$0xff]
        %v3231 = vld [vmem:[#allocation2 + $0x28] sm:$0x3]
        %v3232 = vld [vmem:[#allocation2 + $0x30] sm:$0xff]
        %v3233 = vld [vmem:[#allocation2 + $0x38] sm:$0xff]
        %v3234 = vld [vmem:[#allocation2 + $0x40] sm:$0x3]
        %v3235 = vld [vmem:[#allocation2 + $0x48] sm:$0xff]
        %v3236 = vld [vmem:[#allocation2 + $0x50] sm:$0xff]
        %v3237 = vld [vmem:[#allocation2 + $0x58] sm:$0x3]
        %v3238 = vld [vmem:[#allocation2 + $0x60] sm:$0xff]
        %v3239 = vld [vmem:[#allocation2 + $0x68] sm:$0xff]
        %v3240 = vld [vmem:[#allocation2 + $0x70] sm:$0x3]
        %v3241 = vld [vmem:[#allocation2 + $0x78] sm:$0xff]
        %v3242 = vld [vmem:[#allocation2 + $0x80] sm:$0xff]
        %v3243 = vld [vmem:[#allocation2 + $0x88] sm:$0x3]
        %v3244 = vld [vmem:[#allocation2 + $0x90] sm:$0xff]
        %v3245 = vld [vmem:[#allocation2 + $0x98] sm:$0xff]
        %v3246 = vld [vmem:[#allocation2 + $0xa0] sm:$0x3]
        %v3247 = vld [vmem:[#allocation2 + $0xa8] sm:$0xff]
        %v3248 = vld [vmem:[#allocation2 + $0xb0] sm:$0xff]
        %v3249 = vld [vmem:[#allocation2 + $0xb8] sm:$0x3]
        %v3250 = vld [vmem:[#allocation2 + $0xc0] sm:$0xff]
        %v3251 = vld [vmem:[#allocation2 + $0xc8] sm:$0xff]
        %v3252 = vld [vmem:[#allocation2 + $0xd0] sm:$0x3]
        %v3253 = vld [vmem:[#allocation2 + $0xd8] sm:$0xff]
        %v3254 = vld [vmem:[#allocation2 + $0xe0] sm:$0xff]
        %v3255 = vld [vmem:[#allocation2 + $0xe8] sm:$0x3]
        %v3256 = vld [vmem:[#allocation2 + $0xf0] sm:$0xff]
        %v3257 = vld [vmem:[#allocation2 + $0xf8] sm:$0xff]
        %v3258 = vld [vmem:[#allocation2 + $0x100] sm:$0x3]
        %v3259 = vld [vmem:[#allocation2 + $0x108] sm:$0xff]
        %v3260 = vld [vmem:[#allocation2 + $0x110] sm:$0xff]
        %v3261 = vld [vmem:[#allocation2 + $0x118] sm:$0x3]
        %v3262 = vld [vmem:[#allocation2 + $0x120] sm:$0xff]
        %v3263 = vld [vmem:[#allocation2 + $0x128] sm:$0xff]
        %v3264 = vld [vmem:[#allocation2 + $0x130] sm:$0x3]
        %v3265 = vld [vmem:[#allocation2 + $0x138] sm:$0xff]
        %v3266 = vld [vmem:[#allocation2 + $0x140] sm:$0xff]
        %v3267 = vld [vmem:[#allocation2 + $0x148] sm:$0x3]
        %v3268 = vld [vmem:[#allocation2 + $0x150] sm:$0xff]
        %v3269 = vld [vmem:[#allocation2 + $0x158] sm:$0xff]
        %v3270 = vld [vmem:[#allocation2 + $0x160] sm:$0x3]
        %v3271 = vld [vmem:[#allocation2 + $0x168] sm:$0xff]
        %v3272 = vld [vmem:[#allocation2 + $0x170] sm:$0xff]
        %v3273 = vld [vmem:[#allocation2 + $0x178] sm:$0x3]
        %v3274 = vld [vmem:[#allocation2 + $0x180] sm:$0xff]
        %v3275 = vld [vmem:[#allocation2 + $0x188] sm:$0xff]
        %v3276 = vld [vmem:[#allocation2 + $0x190] sm:$0x3]
        %v3277 = vld [vmem:[#allocation2 + $0x198] sm:$0xff]
        %v3278 = vld [vmem:[#allocation2 + $0x1a0] sm:$0xff]
        %v3279 = vld [vmem:[#allocation2 + $0x1a8] sm:$0x3]
        %v3280 = vpack.c.bf16 %v3227, %v3226
        %v3281 = vpack.c.bf16 %v3230, %v3229
        %v3282 = vpack.c.bf16 %v3233, %v3232
        %v3283 = vpack.c.bf16 %v3236, %v3235
        %v3284 = vpack.c.bf16 %v3239, %v3238
        %v3285 = vpack.c.bf16 %v3242, %v3241
        %v3286 = vpack.c.bf16 %v3245, %v3244
        %v3287 = vpack.c.bf16 %v3248, %v3247
        %v3288 = vpack.c.bf16 %v3251, %v3250
        %v3289 = vpack.c.bf16 %v3254, %v3253
        %v3290 = vpack.c.bf16 %v3257, %v3256
        %v3291 = vpack.c.bf16 %v3260, %v3259
        %v3292 = vpack.c.bf16 %v3263, %v3262
        %v3293 = vpack.c.bf16 %v3266, %v3265
        %v3294 = vpack.c.bf16 %v3269, %v3268
        %v3295 = vpack.c.bf16 %v3272, %v3271
        %v3312 = vunpack.c.l.b16 %v3280
        %v3313 = vunpack.c.h.b16 %v3280
        %v3314 = vunpack.c.l.b16 %v3281
        %v3315 = vunpack.c.h.b16 %v3281
        %v3316 = vunpack.c.l.b16 %v3282
        %v3317 = vunpack.c.h.b16 %v3282
        %v3318 = vunpack.c.l.b16 %v3283
        %v3319 = vunpack.c.h.b16 %v3283
        %v3320 = vunpack.c.l.b16 %v3284
        %v3321 = vunpack.c.h.b16 %v3284
        %v3322 = vunpack.c.l.b16 %v3285
        %v3323 = vunpack.c.h.b16 %v3285
        %v3324 = vunpack.c.l.b16 %v3286
        %v3325 = vunpack.c.h.b16 %v3286
        %v3326 = vunpack.c.l.b16 %v3287
        %v3327 = vunpack.c.h.b16 %v3287
        %v3328 = vunpack.c.l.b16 %v3288
        %v3329 = vunpack.c.h.b16 %v3288
        %v3330 = vunpack.c.l.b16 %v3289
        %v3331 = vunpack.c.h.b16 %v3289
        %v3332 = vunpack.c.l.b16 %v3290
        %v3333 = vunpack.c.h.b16 %v3290
        %v3334 = vunpack.c.l.b16 %v3291
        %v3335 = vunpack.c.h.b16 %v3291
        %v3336 = vunpack.c.l.b16 %v3292
        %v3337 = vunpack.c.h.b16 %v3292
        %v3338 = vunpack.c.l.b16 %v3293
        %v3339 = vunpack.c.h.b16 %v3293
        %v3340 = vunpack.c.l.b16 %v3294
        %v3341 = vunpack.c.h.b16 %v3294
        %v3342 = vunpack.c.l.b16 %v3295
        %v3343 = vunpack.c.h.b16 %v3295
        %v3344 = vpack.c.b16 %v3312, %v3312
        %v3345 = vpack.c.b16 %v3313, %v3313
        %v3346 = vpack.c.b16 %v3314, %v3314
        %v3347 = vpack.c.b16 %v3315, %v3315
        %v3348 = vpack.c.b16 %v3316, %v3316
        %v3349 = vpack.c.b16 %v3317, %v3317
        %v3350 = vpack.c.b16 %v3318, %v3318
        %v3351 = vpack.c.b16 %v3319, %v3319
        %v3352 = vpack.c.b16 %v3320, %v3320
        %v3353 = vpack.c.b16 %v3321, %v3321
        %v3354 = vpack.c.b16 %v3322, %v3322
        %v3355 = vpack.c.b16 %v3323, %v3323
        %v3356 = vpack.c.b16 %v3324, %v3324
        %v3357 = vpack.c.b16 %v3325, %v3325
        %v3358 = vpack.c.b16 %v3326, %v3326
        %v3359 = vpack.c.b16 %v3327, %v3327
        %v3360 = vpack.c.b16 %v3328, %v3328
        %v3361 = vpack.c.b16 %v3329, %v3329
        %v3362 = vpack.c.b16 %v3330, %v3330
        %v3363 = vpack.c.b16 %v3331, %v3331
        %v3364 = vpack.c.b16 %v3332, %v3332
        %v3365 = vpack.c.b16 %v3333, %v3333
        %v3366 = vpack.c.b16 %v3334, %v3334
        %v3367 = vpack.c.b16 %v3335, %v3335
        %v3368 = vpack.c.b16 %v3336, %v3336
        %v3369 = vpack.c.b16 %v3337, %v3337
        %v3370 = vpack.c.b16 %v3338, %v3338
        %v3371 = vpack.c.b16 %v3339, %v3339
        %v3372 = vpack.c.b16 %v3340, %v3340
        %v3373 = vpack.c.b16 %v3341, %v3341
        %v3374 = vpack.c.b16 %v3342, %v3342
        %v3375 = vpack.c.b16 %v3343, %v3343
        %3408 = vst.msk [vmem:[#allocation3] sm:$0xf] %vm514, %v3344
        %3409 = vst.msk [vmem:[#allocation3 + $0x14] sm:$0xf] %vm514, %v3345
        %3410 = vst.msk [vmem:[#allocation3 + $0x28] sm:$0xf] %vm514, %v3346
        %3411 = vst.msk [vmem:[#allocation3 + $0x3c] sm:$0xf] %vm514, %v3347
        %3412 = vst.msk [vmem:[#allocation3 + $0x50] sm:$0xf] %vm514, %v3348
        %3413 = vst.msk [vmem:[#allocation3 + $0x64] sm:$0xf] %vm514, %v3349
        %3414 = vst.msk [vmem:[#allocation3 + $0x78] sm:$0xf] %vm514, %v3350
        %3415 = vst.msk [vmem:[#allocation3 + $0x8c] sm:$0xf] %vm514, %v3351
        %3416 = vst.msk [vmem:[#allocation3 + $0xa0] sm:$0xf] %vm514, %v3352
        %3417 = vst.msk [vmem:[#allocation3 + $0xb4] sm:$0xf] %vm514, %v3353
        %3418 = vst.msk [vmem:[#allocation3 + $0xc8] sm:$0xf] %vm514, %v3354
        %3419 = vst.msk [vmem:[#allocation3 + $0xdc] sm:$0xf] %vm514, %v3355
        %3420 = vst.msk [vmem:[#allocation3 + $0xf0] sm:$0xf] %vm514, %v3356
        %3421 = vst.msk [vmem:[#allocation3 + $0x104] sm:$0xf] %vm514, %v3357
        %3422 = vst.msk [vmem:[#allocation3 + $0x118] sm:$0xf] %vm514, %v3358
        %3423 = vst.msk [vmem:[#allocation3 + $0x12c] sm:$0xf] %vm514, %v3359
        %3424 = vst.msk [vmem:[#allocation3 + $0x140] sm:$0xf] %vm514, %v3360
        %3425 = vst.msk [vmem:[#allocation3 + $0x154] sm:$0xf] %vm514, %v3361
        %3426 = vst.msk [vmem:[#allocation3 + $0x168] sm:$0xf] %vm514, %v3362
        %3427 = vst.msk [vmem:[#allocation3 + $0x17c] sm:$0xf] %vm514, %v3363
        %3428 = vst.msk [vmem:[#allocation3 + $0x190] sm:$0xf] %vm514, %v3364
        %3429 = vst.msk [vmem:[#allocation3 + $0x1a4] sm:$0xf] %vm514, %v3365
        %3430 = vst.msk [vmem:[#allocation3 + $0x1b8] sm:$0xf] %vm514, %v3366
        %3431 = vst.msk [vmem:[#allocation3 + $0x1cc] sm:$0xf] %vm514, %v3367
        %3432 = vst.msk [vmem:[#allocation3 + $0x1e0] sm:$0xf] %vm514, %v3368
        %3433 = vst.msk [vmem:[#allocation3 + $0x1f4] sm:$0xf] %vm514, %v3369
        %3434 = vst.msk [vmem:[#allocation3 + $0x208] sm:$0xf] %vm514, %v3370
        %3435 = vst.msk [vmem:[#allocation3 + $0x21c] sm:$0xf] %vm514, %v3371
        %3436 = vst.msk [vmem:[#allocation3 + $0x230] sm:$0xf] %vm514, %v3372
        %3437 = vst.msk [vmem:[#allocation3 + $0x244] sm:$0xf] %vm514, %v3373
        %3438 = vst.msk [vmem:[#allocation3 + $0x258] sm:$0xf] %vm514, %v3374
        %3439 = vst.msk [vmem:[#allocation3 + $0x26c] sm:$0xf] %vm514, %v3375
        %v3488 = vrot.slane %v3226, 1
        %v3489 = vrot.slane %v3227, 1
        %v3490 = vsel %vm595, %v3488, %v3489
        %v3491 = vrot.slane %v3228, 1
        %v3492 = vsel %vm595, %v3489, %v3491
        %v3493 = vrot.slane %v3229, 1
        %v3494 = vrot.slane %v3230, 1
        %v3495 = vsel %vm595, %v3493, %v3494
        %v3496 = vrot.slane %v3231, 1
        %v3497 = vsel %vm595, %v3494, %v3496
        %v3498 = vrot.slane %v3232, 1
        %v3499 = vrot.slane %v3233, 1
        %v3500 = vsel %vm595, %v3498, %v3499
        %v3501 = vrot.slane %v3234, 1
        %v3502 = vsel %vm595, %v3499, %v3501
        %v3503 = vrot.slane %v3235, 1
        %v3504 = vrot.slane %v3236, 1
        %v3505 = vsel %vm595, %v3503, %v3504
        %v3506 = vrot.slane %v3237, 1
        %v3507 = vsel %vm595, %v3504, %v3506
        %v3508 = vrot.slane %v3238, 1
        %v3509 = vrot.slane %v3239, 1
        %v3510 = vsel %vm595, %v3508, %v3509
        %v3511 = vrot.slane %v3240, 1
        %v3512 = vsel %vm595, %v3509, %v3511
        %v3513 = vrot.slane %v3241, 1
        %v3514 = vrot.slane %v3242, 1
        %v3515 = vsel %vm595, %v3513, %v3514
        %v3516 = vrot.slane %v3243, 1
        %v3517 = vsel %vm595, %v3514, %v3516
        %v3518 = vrot.slane %v3244, 1
        %v3519 = vrot.slane %v3245, 1
        %v3520 = vsel %vm595, %v3518, %v3519
        %v3521 = vrot.slane %v3246, 1
        %v3522 = vsel %vm595, %v3519, %v3521
        %v3523 = vrot.slane %v3247, 1
        %v3524 = vrot.slane %v3248, 1
        %v3525 = vsel %vm595, %v3523, %v3524
        %v3526 = vrot.slane %v3249, 1
        %v3527 = vsel %vm595, %v3524, %v3526
        %v3528 = vrot.slane %v3250, 1
        %v3529 = vrot.slane %v3251, 1
        %v3530 = vsel %vm595, %v3528, %v3529
        %v3531 = vrot.slane %v3252, 1
        %v3532 = vsel %vm595, %v3529, %v3531
        %v3533 = vrot.slane %v3253, 1
        %v3534 = vrot.slane %v3254, 1
        %v3535 = vsel %vm595, %v3533, %v3534
        %v3536 = vrot.slane %v3255, 1
        %v3537 = vsel %vm595, %v3534, %v3536
        %v3538 = vrot.slane %v3256, 1
        %v3539 = vrot.slane %v3257, 1
        %v3540 = vsel %vm595, %v3538, %v3539
        %v3541 = vrot.slane %v3258, 1
        %v3542 = vsel %vm595, %v3539, %v3541
        %v3543 = vrot.slane %v3259, 1
        %v3544 = vrot.slane %v3260, 1
        %v3545 = vsel %vm595, %v3543, %v3544
        %v3546 = vrot.slane %v3261, 1
        %v3547 = vsel %vm595, %v3544, %v3546
        %v3548 = vrot.slane %v3262, 1
        %v3549 = vrot.slane %v3263, 1
        %v3550 = vsel %vm595, %v3548, %v3549
        %v3551 = vrot.slane %v3264, 1
        %v3552 = vsel %vm595, %v3549, %v3551
        %v3553 = vrot.slane %v3265, 1
        %v3554 = vrot.slane %v3266, 1
        %v3555 = vsel %vm595, %v3553, %v3554
        %v3556 = vrot.slane %v3267, 1
        %v3557 = vsel %vm595, %v3554, %v3556
        %v3558 = vrot.slane %v3268, 1
        %v3559 = vrot.slane %v3269, 1
        %v3560 = vsel %vm595, %v3558, %v3559
        %v3561 = vrot.slane %v3270, 1
        %v3562 = vsel %vm595, %v3559, %v3561
        %v3563 = vrot.slane %v3271, 1
        %v3564 = vrot.slane %v3272, 1
        %v3565 = vsel %vm595, %v3563, %v3564
        %v3566 = vrot.slane %v3273, 1
        %v3567 = vsel %vm595, %v3564, %v3566
        %v3600 = vpack.c.bf16 %v3492, %v3490
        %v3601 = vpack.c.bf16 %v3497, %v3495
        %v3602 = vpack.c.bf16 %v3502, %v3500
        %v3603 = vpack.c.bf16 %v3507, %v3505
        %v3604 = vpack.c.bf16 %v3512, %v3510
        %v3605 = vpack.c.bf16 %v3517, %v3515
        %v3606 = vpack.c.bf16 %v3522, %v3520
        %v3607 = vpack.c.bf16 %v3527, %v3525
        %v3608 = vpack.c.bf16 %v3532, %v3530
        %v3609 = vpack.c.bf16 %v3537, %v3535
        %v3610 = vpack.c.bf16 %v3542, %v3540
        %v3611 = vpack.c.bf16 %v3547, %v3545
        %v3612 = vpack.c.bf16 %v3552, %v3550
        %v3613 = vpack.c.bf16 %v3557, %v3555
        %v3614 = vpack.c.bf16 %v3562, %v3560
        %v3615 = vpack.c.bf16 %v3567, %v3565
        %v3632 = vunpack.c.l.b16 %v3600
        %v3633 = vunpack.c.h.b16 %v3600
        %v3634 = vunpack.c.l.b16 %v3601
        %v3635 = vunpack.c.h.b16 %v3601
        %v3636 = vunpack.c.l.b16 %v3602
        %v3637 = vunpack.c.h.b16 %v3602
        %v3638 = vunpack.c.l.b16 %v3603
        %v3639 = vunpack.c.h.b16 %v3603
        %v3640 = vunpack.c.l.b16 %v3604
        %v3641 = vunpack.c.h.b16 %v3604
        %v3642 = vunpack.c.l.b16 %v3605
        %v3643 = vunpack.c.h.b16 %v3605
        %v3644 = vunpack.c.l.b16 %v3606
        %v3645 = vunpack.c.h.b16 %v3606
        %v3646 = vunpack.c.l.b16 %v3607
        %v3647 = vunpack.c.h.b16 %v3607
        %v3648 = vunpack.c.l.b16 %v3608
        %v3649 = vunpack.c.h.b16 %v3608
        %v3650 = vunpack.c.l.b16 %v3609
        %v3651 = vunpack.c.h.b16 %v3609
        %v3652 = vunpack.c.l.b16 %v3610
        %v3653 = vunpack.c.h.b16 %v3610
        %v3654 = vunpack.c.l.b16 %v3611
        %v3655 = vunpack.c.h.b16 %v3611
        %v3656 = vunpack.c.l.b16 %v3612
        %v3657 = vunpack.c.h.b16 %v3612
        %v3658 = vunpack.c.l.b16 %v3613
        %v3659 = vunpack.c.h.b16 %v3613
        %v3660 = vunpack.c.l.b16 %v3614
        %v3661 = vunpack.c.h.b16 %v3614
        %v3662 = vunpack.c.l.b16 %v3615
        %v3663 = vunpack.c.h.b16 %v3615
        %v3664 = vpack.c.b16 %v3632, %v3632
        %v3665 = vpack.c.b16 %v3633, %v3633
        %v3666 = vpack.c.b16 %v3634, %v3634
        %v3667 = vpack.c.b16 %v3635, %v3635
        %v3668 = vpack.c.b16 %v3636, %v3636
        %v3669 = vpack.c.b16 %v3637, %v3637
        %v3670 = vpack.c.b16 %v3638, %v3638
        %v3671 = vpack.c.b16 %v3639, %v3639
        %v3672 = vpack.c.b16 %v3640, %v3640
        %v3673 = vpack.c.b16 %v3641, %v3641
        %v3674 = vpack.c.b16 %v3642, %v3642
        %v3675 = vpack.c.b16 %v3643, %v3643
        %v3676 = vpack.c.b16 %v3644, %v3644
        %v3677 = vpack.c.b16 %v3645, %v3645
        %v3678 = vpack.c.b16 %v3646, %v3646
        %v3679 = vpack.c.b16 %v3647, %v3647
        %v3680 = vpack.c.b16 %v3648, %v3648
        %v3681 = vpack.c.b16 %v3649, %v3649
        %v3682 = vpack.c.b16 %v3650, %v3650
        %v3683 = vpack.c.b16 %v3651, %v3651
        %v3684 = vpack.c.b16 %v3652, %v3652
        %v3685 = vpack.c.b16 %v3653, %v3653
        %v3686 = vpack.c.b16 %v3654, %v3654
        %v3687 = vpack.c.b16 %v3655, %v3655
        %v3688 = vpack.c.b16 %v3656, %v3656
        %v3689 = vpack.c.b16 %v3657, %v3657
        %v3690 = vpack.c.b16 %v3658, %v3658
        %v3691 = vpack.c.b16 %v3659, %v3659
        %v3692 = vpack.c.b16 %v3660, %v3660
        %v3693 = vpack.c.b16 %v3661, %v3661
        %v3694 = vpack.c.b16 %v3662, %v3662
        %v3695 = vpack.c.b16 %v3663, %v3663
        %3696 = vrot.lane.b32.xlu0 %v3664, 64
        %v3697 = vpop.permute.xlu0 %3696
        %3698 = vrot.lane.b32.xlu0 %v3665, 64
        %v3699 = vpop.permute.xlu0 %3698
        %3700 = vrot.lane.b32.xlu0 %v3666, 64
        %v3701 = vpop.permute.xlu0 %3700
        %3702 = vrot.lane.b32.xlu0 %v3667, 64
        %v3703 = vpop.permute.xlu0 %3702
        %3704 = vrot.lane.b32.xlu0 %v3668, 64
        %v3705 = vpop.permute.xlu0 %3704
        %3706 = vrot.lane.b32.xlu0 %v3669, 64
        %v3707 = vpop.permute.xlu0 %3706
        %3708 = vrot.lane.b32.xlu0 %v3670, 64
        %v3709 = vpop.permute.xlu0 %3708
        %3710 = vrot.lane.b32.xlu0 %v3671, 64
        %v3711 = vpop.permute.xlu0 %3710
        %3712 = vrot.lane.b32.xlu0 %v3672, 64
        %v3713 = vpop.permute.xlu0 %3712
        %3714 = vrot.lane.b32.xlu0 %v3673, 64
        %v3715 = vpop.permute.xlu0 %3714
        %3716 = vrot.lane.b32.xlu0 %v3674, 64
        %v3717 = vpop.permute.xlu0 %3716
        %3718 = vrot.lane.b32.xlu0 %v3675, 64
        %v3719 = vpop.permute.xlu0 %3718
        %3720 = vrot.lane.b32.xlu0 %v3676, 64
        %v3721 = vpop.permute.xlu0 %3720
        %3722 = vrot.lane.b32.xlu0 %v3677, 64
        %v3723 = vpop.permute.xlu0 %3722
        %3724 = vrot.lane.b32.xlu0 %v3678, 64
        %v3725 = vpop.permute.xlu0 %3724
        %3726 = vrot.lane.b32.xlu0 %v3679, 64
        %v3727 = vpop.permute.xlu0 %3726
        %3728 = vrot.lane.b32.xlu0 %v3680, 64
        %v3729 = vpop.permute.xlu0 %3728
        %3730 = vrot.lane.b32.xlu0 %v3681, 64
        %v3731 = vpop.permute.xlu0 %3730
        %3732 = vrot.lane.b32.xlu0 %v3682, 64
        %v3733 = vpop.permute.xlu0 %3732
        %3734 = vrot.lane.b32.xlu0 %v3683, 64
        %v3735 = vpop.permute.xlu0 %3734
        %3736 = vrot.lane.b32.xlu0 %v3684, 64
        %v3737 = vpop.permute.xlu0 %3736
        %3738 = vrot.lane.b32.xlu0 %v3685, 64
        %v3739 = vpop.permute.xlu0 %3738
        %3740 = vrot.lane.b32.xlu0 %v3686, 64
        %v3741 = vpop.permute.xlu0 %3740
        %3742 = vrot.lane.b32.xlu0 %v3687, 64
        %v3743 = vpop.permute.xlu0 %3742
        %3744 = vrot.lane.b32.xlu0 %v3688, 64
        %v3745 = vpop.permute.xlu0 %3744
        %3746 = vrot.lane.b32.xlu0 %v3689, 64
        %v3747 = vpop.permute.xlu0 %3746
        %3748 = vrot.lane.b32.xlu0 %v3690, 64
        %v3749 = vpop.permute.xlu0 %3748
        %3750 = vrot.lane.b32.xlu0 %v3691, 64
        %v3751 = vpop.permute.xlu0 %3750
        %3752 = vrot.lane.b32.xlu0 %v3692, 64
        %v3753 = vpop.permute.xlu0 %3752
        %3754 = vrot.lane.b32.xlu0 %v3693, 64
        %v3755 = vpop.permute.xlu0 %3754
        %3756 = vrot.lane.b32.xlu0 %v3694, 64
        %v3757 = vpop.permute.xlu0 %3756
        %3758 = vrot.lane.b32.xlu0 %v3695, 64
        %v3759 = vpop.permute.xlu0 %3758
        %3792 = vst.msk [vmem:[#allocation3] sm:$0xf] %vm900, %v3697
        %3793 = vst.msk [vmem:[#allocation3 + $0x14] sm:$0xf] %vm900, %v3699
        %3794 = vst.msk [vmem:[#allocation3 + $0x28] sm:$0xf] %vm900, %v3701
        %3795 = vst.msk [vmem:[#allocation3 + $0x3c] sm:$0xf] %vm900, %v3703
        %3796 = vst.msk [vmem:[#allocation3 + $0x50] sm:$0xf] %vm900, %v3705
        %3797 = vst.msk [vmem:[#allocation3 + $0x64] sm:$0xf] %vm900, %v3707
        %3798 = vst.msk [vmem:[#allocation3 + $0x78] sm:$0xf] %vm900, %v3709
        %3799 = vst.msk [vmem:[#allocation3 + $0x8c] sm:$0xf] %vm900, %v3711
        %3800 = vst.msk [vmem:[#allocation3 + $0xa0] sm:$0xf] %vm900, %v3713
        %3801 = vst.msk [vmem:[#allocation3 + $0xb4] sm:$0xf] %vm900, %v3715
        %3802 = vst.msk [vmem:[#allocation3 + $0xc8] sm:$0xf] %vm900, %v3717
        %3803 = vst.msk [vmem:[#allocation3 + $0xdc] sm:$0xf] %vm900, %v3719
        %3804 = vst.msk [vmem:[#allocation3 + $0xf0] sm:$0xf] %vm900, %v3721
        %3805 = vst.msk [vmem:[#allocation3 + $0x104] sm:$0xf] %vm900, %v3723
        %3806 = vst.msk [vmem:[#allocation3 + $0x118] sm:$0xf] %vm900, %v3725
        %3807 = vst.msk [vmem:[#allocation3 + $0x12c] sm:$0xf] %vm900, %v3727
        %3808 = vst.msk [vmem:[#allocation3 + $0x140] sm:$0xf] %vm900, %v3729
        %3809 = vst.msk [vmem:[#allocation3 + $0x154] sm:$0xf] %vm900, %v3731
        %3810 = vst.msk [vmem:[#allocation3 + $0x168] sm:$0xf] %vm900, %v3733
        %3811 = vst.msk [vmem:[#allocation3 + $0x17c] sm:$0xf] %vm900, %v3735
        %3812 = vst.msk [vmem:[#allocation3 + $0x190] sm:$0xf] %vm900, %v3737
        %3813 = vst.msk [vmem:[#allocation3 + $0x1a4] sm:$0xf] %vm900, %v3739
        %3814 = vst.msk [vmem:[#allocation3 + $0x1b8] sm:$0xf] %vm900, %v3741
        %3815 = vst.msk [vmem:[#allocation3 + $0x1cc] sm:$0xf] %vm900, %v3743
        %3816 = vst.msk [vmem:[#allocation3 + $0x1e0] sm:$0xf] %vm900, %v3745
        %3817 = vst.msk [vmem:[#allocation3 + $0x1f4] sm:$0xf] %vm900, %v3747
        %3818 = vst.msk [vmem:[#allocation3 + $0x208] sm:$0xf] %vm900, %v3749
        %3819 = vst.msk [vmem:[#allocation3 + $0x21c] sm:$0xf] %vm900, %v3751
        %3820 = vst.msk [vmem:[#allocation3 + $0x230] sm:$0xf] %vm900, %v3753
        %3821 = vst.msk [vmem:[#allocation3 + $0x244] sm:$0xf] %vm900, %v3755
        %3822 = vst.msk [vmem:[#allocation3 + $0x258] sm:$0xf] %vm900, %v3757
        %3823 = vst.msk [vmem:[#allocation3 + $0x26c] sm:$0xf] %vm900, %v3759
        %v3824 = vrot.slane %v3226, 2
        %v3825 = vrot.slane %v3227, 2
        %v3826 = vsel %vm933, %v3824, %v3825
        %v3827 = vrot.slane %v3228, 2
        %v3828 = vsel %vm933, %v3825, %v3827
        %v3829 = vrot.slane %v3229, 2
        %v3830 = vrot.slane %v3230, 2
        %v3831 = vsel %vm933, %v3829, %v3830
        %v3832 = vrot.slane %v3231, 2
        %v3833 = vsel %vm933, %v3830, %v3832
        %v3834 = vrot.slane %v3232, 2
        %v3835 = vrot.slane %v3233, 2
        %v3836 = vsel %vm933, %v3834, %v3835
        %v3837 = vrot.slane %v3234, 2
        %v3838 = vsel %vm933, %v3835, %v3837
        %v3839 = vrot.slane %v3235, 2
        %v3840 = vrot.slane %v3236, 2
        %v3841 = vsel %vm933, %v3839, %v3840
        %v3842 = vrot.slane %v3237, 2
        %v3843 = vsel %vm933, %v3840, %v3842
        %v3844 = vrot.slane %v3238, 2
        %v3845 = vrot.slane %v3239, 2
        %v3846 = vsel %vm933, %v3844, %v3845
        %v3847 = vrot.slane %v3240, 2
        %v3848 = vsel %vm933, %v3845, %v3847
        %v3849 = vrot.slane %v3241, 2
        %v3850 = vrot.slane %v3242, 2
        %v3851 = vsel %vm933, %v3849, %v3850
        %v3852 = vrot.slane %v3243, 2
        %v3853 = vsel %vm933, %v3850, %v3852
        %v3854 = vrot.slane %v3244, 2
        %v3855 = vrot.slane %v3245, 2
        %v3856 = vsel %vm933, %v3854, %v3855
        %v3857 = vrot.slane %v3246, 2
        %v3858 = vsel %vm933, %v3855, %v3857
        %v3859 = vrot.slane %v3247, 2
        %v3860 = vrot.slane %v3248, 2
        %v3861 = vsel %vm933, %v3859, %v3860
        %v3862 = vrot.slane %v3249, 2
        %v3863 = vsel %vm933, %v3860, %v3862
        %v3864 = vrot.slane %v3250, 2
        %v3865 = vrot.slane %v3251, 2
        %v3866 = vsel %vm933, %v3864, %v3865
        %v3867 = vrot.slane %v3252, 2
        %v3868 = vsel %vm933, %v3865, %v3867
        %v3869 = vrot.slane %v3253, 2
        %v3870 = vrot.slane %v3254, 2
        %v3871 = vsel %vm933, %v3869, %v3870
        %v3872 = vrot.slane %v3255, 2
        %v3873 = vsel %vm933, %v3870, %v3872
        %v3874 = vrot.slane %v3256, 2
        %v3875 = vrot.slane %v3257, 2
        %v3876 = vsel %vm933, %v3874, %v3875
        %v3877 = vrot.slane %v3258, 2
        %v3878 = vsel %vm933, %v3875, %v3877
        %v3879 = vrot.slane %v3259, 2
        %v3880 = vrot.slane %v3260, 2
        %v3881 = vsel %vm933, %v3879, %v3880
        %v3882 = vrot.slane %v3261, 2
        %v3883 = vsel %vm933, %v3880, %v3882
        %v3884 = vrot.slane %v3262, 2
        %v3885 = vrot.slane %v3263, 2
        %v3886 = vsel %vm933, %v3884, %v3885
        %v3887 = vrot.slane %v3264, 2
        %v3888 = vsel %vm933, %v3885, %v3887
        %v3889 = vrot.slane %v3265, 2
        %v3890 = vrot.slane %v3266, 2
        %v3891 = vsel %vm933, %v3889, %v3890
        %v3892 = vrot.slane %v3267, 2
        %v3893 = vsel %vm933, %v3890, %v3892
        %v3894 = vrot.slane %v3268, 2
        %v3895 = vrot.slane %v3269, 2
        %v3896 = vsel %vm933, %v3894, %v3895
        %v3897 = vrot.slane %v3270, 2
        %v3898 = vsel %vm933, %v3895, %v3897
        %v3899 = vrot.slane %v3271, 2
        %v3900 = vrot.slane %v3272, 2
        %v3901 = vsel %vm933, %v3899, %v3900
        %v3902 = vrot.slane %v3273, 2
        %v3903 = vsel %vm933, %v3900, %v3902
        %v3936 = vpack.c.bf16 %v3828, %v3826
        %v3937 = vpack.c.bf16 %v3833, %v3831
        %v3938 = vpack.c.bf16 %v3838, %v3836
        %v3939 = vpack.c.bf16 %v3843, %v3841
        %v3940 = vpack.c.bf16 %v3848, %v3846
        %v3941 = vpack.c.bf16 %v3853, %v3851
        %v3942 = vpack.c.bf16 %v3858, %v3856
        %v3943 = vpack.c.bf16 %v3863, %v3861
        %v3944 = vpack.c.bf16 %v3868, %v3866
        %v3945 = vpack.c.bf16 %v3873, %v3871
        %v3946 = vpack.c.bf16 %v3878, %v3876
        %v3947 = vpack.c.bf16 %v3883, %v3881
        %v3948 = vpack.c.bf16 %v3888, %v3886
        %v3949 = vpack.c.bf16 %v3893, %v3891
        %v3950 = vpack.c.bf16 %v3898, %v3896
        %v3951 = vpack.c.bf16 %v3903, %v3901
        %v3968 = vunpack.c.l.b16 %v3936
        %v3969 = vunpack.c.h.b16 %v3936
        %v3970 = vunpack.c.l.b16 %v3937
        %v3971 = vunpack.c.h.b16 %v3937
        %v3972 = vunpack.c.l.b16 %v3938
        %v3973 = vunpack.c.h.b16 %v3938
        %v3974 = vunpack.c.l.b16 %v3939
        %v3975 = vunpack.c.h.b16 %v3939
        %v3976 = vunpack.c.l.b16 %v3940
        %v3977 = vunpack.c.h.b16 %v3940
        %v3978 = vunpack.c.l.b16 %v3941
        %v3979 = vunpack.c.h.b16 %v3941
        %v3980 = vunpack.c.l.b16 %v3942
        %v3981 = vunpack.c.h.b16 %v3942
        %v3982 = vunpack.c.l.b16 %v3943
        %v3983 = vunpack.c.h.b16 %v3943
        %v3984 = vunpack.c.l.b16 %v3944
        %v3985 = vunpack.c.h.b16 %v3944
        %v3986 = vunpack.c.l.b16 %v3945
        %v3987 = vunpack.c.h.b16 %v3945
        %v3988 = vunpack.c.l.b16 %v3946
        %v3989 = vunpack.c.h.b16 %v3946
        %v3990 = vunpack.c.l.b16 %v3947
        %v3991 = vunpack.c.h.b16 %v3947
        %v3992 = vunpack.c.l.b16 %v3948
        %v3993 = vunpack.c.h.b16 %v3948
        %v3994 = vunpack.c.l.b16 %v3949
        %v3995 = vunpack.c.h.b16 %v3949
        %v3996 = vunpack.c.l.b16 %v3950
        %v3997 = vunpack.c.h.b16 %v3950
        %v3998 = vunpack.c.l.b16 %v3951
        %v3999 = vunpack.c.h.b16 %v3951
        %v4000 = vpack.c.b16 %v3968, %v3968
        %v4001 = vpack.c.b16 %v3969, %v3969
        %v4002 = vpack.c.b16 %v3970, %v3970
        %v4003 = vpack.c.b16 %v3971, %v3971
        %v4004 = vpack.c.b16 %v3972, %v3972
        %v4005 = vpack.c.b16 %v3973, %v3973
        %v4006 = vpack.c.b16 %v3974, %v3974
        %v4007 = vpack.c.b16 %v3975, %v3975
        %v4008 = vpack.c.b16 %v3976, %v3976
        %v4009 = vpack.c.b16 %v3977, %v3977
        %v4010 = vpack.c.b16 %v3978, %v3978
        %v4011 = vpack.c.b16 %v3979, %v3979
        %v4012 = vpack.c.b16 %v3980, %v3980
        %v4013 = vpack.c.b16 %v3981, %v3981
        %v4014 = vpack.c.b16 %v3982, %v3982
        %v4015 = vpack.c.b16 %v3983, %v3983
        %v4016 = vpack.c.b16 %v3984, %v3984
        %v4017 = vpack.c.b16 %v3985, %v3985
        %v4018 = vpack.c.b16 %v3986, %v3986
        %v4019 = vpack.c.b16 %v3987, %v3987
        %v4020 = vpack.c.b16 %v3988, %v3988
        %v4021 = vpack.c.b16 %v3989, %v3989
        %v4022 = vpack.c.b16 %v3990, %v3990
        %v4023 = vpack.c.b16 %v3991, %v3991
        %v4024 = vpack.c.b16 %v3992, %v3992
        %v4025 = vpack.c.b16 %v3993, %v3993
        %v4026 = vpack.c.b16 %v3994, %v3994
        %v4027 = vpack.c.b16 %v3995, %v3995
        %v4028 = vpack.c.b16 %v3996, %v3996
        %v4029 = vpack.c.b16 %v3997, %v3997
        %v4030 = vpack.c.b16 %v3998, %v3998
        %v4031 = vpack.c.b16 %v3999, %v3999
        %4064 = vst.msk [vmem:[#allocation3 + $0x4] sm:$0xf] %vm514, %v4000
        %4065 = vst.msk [vmem:[#allocation3 + $0x18] sm:$0xf] %vm514, %v4001
        %4066 = vst.msk [vmem:[#allocation3 + $0x2c] sm:$0xf] %vm514, %v4002
        %4067 = vst.msk [vmem:[#allocation3 + $0x40] sm:$0xf] %vm514, %v4003
        %4068 = vst.msk [vmem:[#allocation3 + $0x54] sm:$0xf] %vm514, %v4004
        %4069 = vst.msk [vmem:[#allocation3 + $0x68] sm:$0xf] %vm514, %v4005
        %4070 = vst.msk [vmem:[#allocation3 + $0x7c] sm:$0xf] %vm514, %v4006
        %4071 = vst.msk [vmem:[#allocation3 + $0x90] sm:$0xf] %vm514, %v4007
        %4072 = vst.msk [vmem:[#allocation3 + $0xa4] sm:$0xf] %vm514, %v4008
        %4073 = vst.msk [vmem:[#allocation3 + $0xb8] sm:$0xf] %vm514, %v4009
        %4074 = vst.msk [vmem:[#allocation3 + $0xcc] sm:$0xf] %vm514, %v4010
        %4075 = vst.msk [vmem:[#allocation3 + $0xe0] sm:$0xf] %vm514, %v4011
        %4076 = vst.msk [vmem:[#allocation3 + $0xf4] sm:$0xf] %vm514, %v4012
        %4077 = vst.msk [vmem:[#allocation3 + $0x108] sm:$0xf] %vm514, %v4013
        %4078 = vst.msk [vmem:[#allocation3 + $0x11c] sm:$0xf] %vm514, %v4014
        %4079 = vst.msk [vmem:[#allocation3 + $0x130] sm:$0xf] %vm514, %v4015
        %4080 = vst.msk [vmem:[#allocation3 + $0x144] sm:$0xf] %vm514, %v4016
        %4081 = vst.msk [vmem:[#allocation3 + $0x158] sm:$0xf] %vm514, %v4017
        %4082 = vst.msk [vmem:[#allocation3 + $0x16c] sm:$0xf] %vm514, %v4018
        %4083 = vst.msk [vmem:[#allocation3 + $0x180] sm:$0xf] %vm514, %v4019
        %4084 = vst.msk [vmem:[#allocation3 + $0x194] sm:$0xf] %vm514, %v4020
        %4085 = vst.msk [vmem:[#allocation3 + $0x1a8] sm:$0xf] %vm514, %v4021
        %4086 = vst.msk [vmem:[#allocation3 + $0x1bc] sm:$0xf] %vm514, %v4022
        %4087 = vst.msk [vmem:[#allocation3 + $0x1d0] sm:$0xf] %vm514, %v4023
        %4088 = vst.msk [vmem:[#allocation3 + $0x1e4] sm:$0xf] %vm514, %v4024
        %4089 = vst.msk [vmem:[#allocation3 + $0x1f8] sm:$0xf] %vm514, %v4025
        %4090 = vst.msk [vmem:[#allocation3 + $0x20c] sm:$0xf] %vm514, %v4026
        %4091 = vst.msk [vmem:[#allocation3 + $0x220] sm:$0xf] %vm514, %v4027
        %4092 = vst.msk [vmem:[#allocation3 + $0x234] sm:$0xf] %vm514, %v4028
        %4093 = vst.msk [vmem:[#allocation3 + $0x248] sm:$0xf] %vm514, %v4029
        %4094 = vst.msk [vmem:[#allocation3 + $0x25c] sm:$0xf] %vm514, %v4030
        %4095 = vst.msk [vmem:[#allocation3 + $0x270] sm:$0xf] %vm514, %v4031
        %v4096 = vpack.c.bf16 %v3275, %v3274
        %v4098 = vunpack.c.l.b16 %v4096
        %v4099 = vunpack.c.h.b16 %v4096
        %v4100 = vpack.c.b16 %v4098, %v4098
        %v4101 = vpack.c.b16 %v4099, %v4099
        %4102 = vrot.lane.b32.xlu0 %v3346, 64
        %v4103 = vpop.permute.xlu0 %4102
        %4104 = vrot.lane.b32.xlu0 %v3347, 64
        %v4105 = vpop.permute.xlu0 %4104
        %4106 = vrot.lane.b32.xlu0 %v3348, 64
        %v4107 = vpop.permute.xlu0 %4106
        %4108 = vrot.lane.b32.xlu0 %v3349, 64
        %v4109 = vpop.permute.xlu0 %4108
        %4110 = vrot.lane.b32.xlu0 %v3350, 64
        %v4111 = vpop.permute.xlu0 %4110
        %4112 = vrot.lane.b32.xlu0 %v3351, 64
        %v4113 = vpop.permute.xlu0 %4112
        %4114 = vrot.lane.b32.xlu0 %v3352, 64
        %v4115 = vpop.permute.xlu0 %4114
        %4116 = vrot.lane.b32.xlu0 %v3353, 64
        %v4117 = vpop.permute.xlu0 %4116
        %4118 = vrot.lane.b32.xlu0 %v3354, 64
        %v4119 = vpop.permute.xlu0 %4118
        %4120 = vrot.lane.b32.xlu0 %v3355, 64
        %v4121 = vpop.permute.xlu0 %4120
        %4122 = vrot.lane.b32.xlu0 %v3356, 64
        %v4123 = vpop.permute.xlu0 %4122
        %4124 = vrot.lane.b32.xlu0 %v3357, 64
        %v4125 = vpop.permute.xlu0 %4124
        %4126 = vrot.lane.b32.xlu0 %v3358, 64
        %v4127 = vpop.permute.xlu0 %4126
        %4128 = vrot.lane.b32.xlu0 %v3359, 64
        %v4129 = vpop.permute.xlu0 %4128
        %4130 = vrot.lane.b32.xlu0 %v3360, 64
        %v4131 = vpop.permute.xlu0 %4130
        %4132 = vrot.lane.b32.xlu0 %v3361, 64
        %v4133 = vpop.permute.xlu0 %4132
        %4134 = vrot.lane.b32.xlu0 %v3362, 64
        %v4135 = vpop.permute.xlu0 %4134
        %4136 = vrot.lane.b32.xlu0 %v3363, 64
        %v4137 = vpop.permute.xlu0 %4136
        %4138 = vrot.lane.b32.xlu0 %v3364, 64
        %v4139 = vpop.permute.xlu0 %4138
        %4140 = vrot.lane.b32.xlu0 %v3365, 64
        %v4141 = vpop.permute.xlu0 %4140
        %4142 = vrot.lane.b32.xlu0 %v3366, 64
        %v4143 = vpop.permute.xlu0 %4142
        %4144 = vrot.lane.b32.xlu0 %v3367, 64
        %v4145 = vpop.permute.xlu0 %4144
        %4146 = vrot.lane.b32.xlu0 %v3368, 64
        %v4147 = vpop.permute.xlu0 %4146
        %4148 = vrot.lane.b32.xlu0 %v3369, 64
        %v4149 = vpop.permute.xlu0 %4148
        %4150 = vrot.lane.b32.xlu0 %v3370, 64
        %v4151 = vpop.permute.xlu0 %4150
        %4152 = vrot.lane.b32.xlu0 %v3371, 64
        %v4153 = vpop.permute.xlu0 %4152
        %4154 = vrot.lane.b32.xlu0 %v3372, 64
        %v4155 = vpop.permute.xlu0 %4154
        %4156 = vrot.lane.b32.xlu0 %v3373, 64
        %v4157 = vpop.permute.xlu0 %4156
        %4158 = vrot.lane.b32.xlu0 %v3374, 64
        %v4159 = vpop.permute.xlu0 %4158
        %4160 = vrot.lane.b32.xlu0 %v3375, 64
        %v4161 = vpop.permute.xlu0 %4160
        %4162 = vrot.lane.b32.xlu0 %v4100, 64
        %v4163 = vpop.permute.xlu0 %4162
        %4164 = vrot.lane.b32.xlu0 %v4101, 64
        %v4165 = vpop.permute.xlu0 %4164
        %4198 = vst.msk [vmem:[#allocation3 + $0x4] sm:$0xf] %vm900, %v4103
        %4199 = vst.msk [vmem:[#allocation3 + $0x18] sm:$0xf] %vm900, %v4105
        %4200 = vst.msk [vmem:[#allocation3 + $0x2c] sm:$0xf] %vm900, %v4107
        %4201 = vst.msk [vmem:[#allocation3 + $0x40] sm:$0xf] %vm900, %v4109
        %4202 = vst.msk [vmem:[#allocation3 + $0x54] sm:$0xf] %vm900, %v4111
        %4203 = vst.msk [vmem:[#allocation3 + $0x68] sm:$0xf] %vm900, %v4113
        %4204 = vst.msk [vmem:[#allocation3 + $0x7c] sm:$0xf] %vm900, %v4115
        %4205 = vst.msk [vmem:[#allocation3 + $0x90] sm:$0xf] %vm900, %v4117
        %4206 = vst.msk [vmem:[#allocation3 + $0xa4] sm:$0xf] %vm900, %v4119
        %4207 = vst.msk [vmem:[#allocation3 + $0xb8] sm:$0xf] %vm900, %v4121
        %4208 = vst.msk [vmem:[#allocation3 + $0xcc] sm:$0xf] %vm900, %v4123
        %4209 = vst.msk [vmem:[#allocation3 + $0xe0] sm:$0xf] %vm900, %v4125
        %4210 = vst.msk [vmem:[#allocation3 + $0xf4] sm:$0xf] %vm900, %v4127
        %4211 = vst.msk [vmem:[#allocation3 + $0x108] sm:$0xf] %vm900, %v4129
        %4212 = vst.msk [vmem:[#allocation3 + $0x11c] sm:$0xf] %vm900, %v4131
        %4213 = vst.msk [vmem:[#allocation3 + $0x130] sm:$0xf] %vm900, %v4133
        %4214 = vst.msk [vmem:[#allocation3 + $0x144] sm:$0xf] %vm900, %v4135
        %4215 = vst.msk [vmem:[#allocation3 + $0x158] sm:$0xf] %vm900, %v4137
        %4216 = vst.msk [vmem:[#allocation3 + $0x16c] sm:$0xf] %vm900, %v4139
        %4217 = vst.msk [vmem:[#allocation3 + $0x180] sm:$0xf] %vm900, %v4141
        %4218 = vst.msk [vmem:[#allocation3 + $0x194] sm:$0xf] %vm900, %v4143
        %4219 = vst.msk [vmem:[#allocation3 + $0x1a8] sm:$0xf] %vm900, %v4145
        %4220 = vst.msk [vmem:[#allocation3 + $0x1bc] sm:$0xf] %vm900, %v4147
        %4221 = vst.msk [vmem:[#allocation3 + $0x1d0] sm:$0xf] %vm900, %v4149
        %4222 = vst.msk [vmem:[#allocation3 + $0x1e4] sm:$0xf] %vm900, %v4151
        %4223 = vst.msk [vmem:[#allocation3 + $0x1f8] sm:$0xf] %vm900, %v4153
        %4224 = vst.msk [vmem:[#allocation3 + $0x20c] sm:$0xf] %vm900, %v4155
        %4225 = vst.msk [vmem:[#allocation3 + $0x220] sm:$0xf] %vm900, %v4157
        %4226 = vst.msk [vmem:[#allocation3 + $0x234] sm:$0xf] %vm900, %v4159
        %4227 = vst.msk [vmem:[#allocation3 + $0x248] sm:$0xf] %vm900, %v4161
        %4228 = vst.msk [vmem:[#allocation3 + $0x25c] sm:$0xf] %vm900, %v4163
        %4229 = vst.msk [vmem:[#allocation3 + $0x270] sm:$0xf] %vm900, %v4165
        %v4233 = vrot.slane %v3274, 1
        %v4234 = vrot.slane %v3275, 1
        %v4235 = vsel %vm595, %v4233, %v4234
        %v4236 = vrot.slane %v3276, 1
        %v4237 = vsel %vm595, %v4234, %v4236
        %v4240 = vpack.c.bf16 %v4237, %v4235
        %v4242 = vunpack.c.l.b16 %v4240
        %v4243 = vunpack.c.h.b16 %v4240
        %v4244 = vpack.c.b16 %v4242, %v4242
        %v4245 = vpack.c.b16 %v4243, %v4243
        %4278 = vst.msk [vmem:[#allocation3 + $0x8] sm:$0xf] %vm514, %v3666
        %4279 = vst.msk [vmem:[#allocation3 + $0x1c] sm:$0xf] %vm514, %v3667
        %4280 = vst.msk [vmem:[#allocation3 + $0x30] sm:$0xf] %vm514, %v3668
        %4281 = vst.msk [vmem:[#allocation3 + $0x44] sm:$0xf] %vm514, %v3669
        %4282 = vst.msk [vmem:[#allocation3 + $0x58] sm:$0xf] %vm514, %v3670
        %4283 = vst.msk [vmem:[#allocation3 + $0x6c] sm:$0xf] %vm514, %v3671
        %4284 = vst.msk [vmem:[#allocation3 + $0x80] sm:$0xf] %vm514, %v3672
        %4285 = vst.msk [vmem:[#allocation3 + $0x94] sm:$0xf] %vm514, %v3673
        %4286 = vst.msk [vmem:[#allocation3 + $0xa8] sm:$0xf] %vm514, %v3674
        %4287 = vst.msk [vmem:[#allocation3 + $0xbc] sm:$0xf] %vm514, %v3675
        %4288 = vst.msk [vmem:[#allocation3 + $0xd0] sm:$0xf] %vm514, %v3676
        %4289 = vst.msk [vmem:[#allocation3 + $0xe4] sm:$0xf] %vm514, %v3677
        %4290 = vst.msk [vmem:[#allocation3 + $0xf8] sm:$0xf] %vm514, %v3678
        %4291 = vst.msk [vmem:[#allocation3 + $0x10c] sm:$0xf] %vm514, %v3679
        %4292 = vst.msk [vmem:[#allocation3 + $0x120] sm:$0xf] %vm514, %v3680
        %4293 = vst.msk [vmem:[#allocation3 + $0x134] sm:$0xf] %vm514, %v3681
        %4294 = vst.msk [vmem:[#allocation3 + $0x148] sm:$0xf] %vm514, %v3682
        %4295 = vst.msk [vmem:[#allocation3 + $0x15c] sm:$0xf] %vm514, %v3683
        %4296 = vst.msk [vmem:[#allocation3 + $0x170] sm:$0xf] %vm514, %v3684
        %4297 = vst.msk [vmem:[#allocation3 + $0x184] sm:$0xf] %vm514, %v3685
        %4298 = vst.msk [vmem:[#allocation3 + $0x198] sm:$0xf] %vm514, %v3686
        %4299 = vst.msk [vmem:[#allocation3 + $0x1ac] sm:$0xf] %vm514, %v3687
        %4300 = vst.msk [vmem:[#allocation3 + $0x1c0] sm:$0xf] %vm514, %v3688
        %4301 = vst.msk [vmem:[#allocation3 + $0x1d4] sm:$0xf] %vm514, %v3689
        %4302 = vst.msk [vmem:[#allocation3 + $0x1e8] sm:$0xf] %vm514, %v3690
        %4303 = vst.msk [vmem:[#allocation3 + $0x1fc] sm:$0xf] %vm514, %v3691
        %4304 = vst.msk [vmem:[#allocation3 + $0x210] sm:$0xf] %vm514, %v3692
        %4305 = vst.msk [vmem:[#allocation3 + $0x224] sm:$0xf] %vm514, %v3693
        %4306 = vst.msk [vmem:[#allocation3 + $0x238] sm:$0xf] %vm514, %v3694
        %4307 = vst.msk [vmem:[#allocation3 + $0x24c] sm:$0xf] %vm514, %v3695
        %4308 = vst.msk [vmem:[#allocation3 + $0x260] sm:$0xf] %vm514, %v4244
        %4309 = vst.msk [vmem:[#allocation3 + $0x274] sm:$0xf] %vm514, %v4245
        %v4310 = vrot.slane %v3274, 2
        %v4311 = vrot.slane %v3275, 2
        %v4312 = vsel %vm933, %v4310, %v4311
        %v4313 = vrot.slane %v3276, 2
        %v4314 = vsel %vm933, %v4311, %v4313
        %v4317 = vpack.c.bf16 %v4314, %v4312
        %v4319 = vunpack.c.l.b16 %v4317
        %v4320 = vunpack.c.h.b16 %v4317
        %v4321 = vpack.c.b16 %v4319, %v4319
        %v4322 = vpack.c.b16 %v4320, %v4320
        %4323 = vrot.lane.b32.xlu0 %v4002, 64
        %v4324 = vpop.permute.xlu0 %4323
        %4325 = vrot.lane.b32.xlu0 %v4003, 64
        %v4326 = vpop.permute.xlu0 %4325
        %4327 = vrot.lane.b32.xlu0 %v4004, 64
        %v4328 = vpop.permute.xlu0 %4327
        %4329 = vrot.lane.b32.xlu0 %v4005, 64
        %v4330 = vpop.permute.xlu0 %4329
        %4331 = vrot.lane.b32.xlu0 %v4006, 64
        %v4332 = vpop.permute.xlu0 %4331
        %4333 = vrot.lane.b32.xlu0 %v4007, 64
        %v4334 = vpop.permute.xlu0 %4333
        %4335 = vrot.lane.b32.xlu0 %v4008, 64
        %v4336 = vpop.permute.xlu0 %4335
        %4337 = vrot.lane.b32.xlu0 %v4009, 64
        %v4338 = vpop.permute.xlu0 %4337
        %4339 = vrot.lane.b32.xlu0 %v4010, 64
        %v4340 = vpop.permute.xlu0 %4339
        %4341 = vrot.lane.b32.xlu0 %v4011, 64
        %v4342 = vpop.permute.xlu0 %4341
        %4343 = vrot.lane.b32.xlu0 %v4012, 64
        %v4344 = vpop.permute.xlu0 %4343
        %4345 = vrot.lane.b32.xlu0 %v4013, 64
        %v4346 = vpop.permute.xlu0 %4345
        %4347 = vrot.lane.b32.xlu0 %v4014, 64
        %v4348 = vpop.permute.xlu0 %4347
        %4349 = vrot.lane.b32.xlu0 %v4015, 64
        %v4350 = vpop.permute.xlu0 %4349
        %4351 = vrot.lane.b32.xlu0 %v4016, 64
        %v4352 = vpop.permute.xlu0 %4351
        %4353 = vrot.lane.b32.xlu0 %v4017, 64
        %v4354 = vpop.permute.xlu0 %4353
        %4355 = vrot.lane.b32.xlu0 %v4018, 64
        %v4356 = vpop.permute.xlu0 %4355
        %4357 = vrot.lane.b32.xlu0 %v4019, 64
        %v4358 = vpop.permute.xlu0 %4357
        %4359 = vrot.lane.b32.xlu0 %v4020, 64
        %v4360 = vpop.permute.xlu0 %4359
        %4361 = vrot.lane.b32.xlu0 %v4021, 64
        %v4362 = vpop.permute.xlu0 %4361
        %4363 = vrot.lane.b32.xlu0 %v4022, 64
        %v4364 = vpop.permute.xlu0 %4363
        %4365 = vrot.lane.b32.xlu0 %v4023, 64
        %v4366 = vpop.permute.xlu0 %4365
        %4367 = vrot.lane.b32.xlu0 %v4024, 64
        %v4368 = vpop.permute.xlu0 %4367
        %4369 = vrot.lane.b32.xlu0 %v4025, 64
        %v4370 = vpop.permute.xlu0 %4369
        %4371 = vrot.lane.b32.xlu0 %v4026, 64
        %v4372 = vpop.permute.xlu0 %4371
        %4373 = vrot.lane.b32.xlu0 %v4027, 64
        %v4374 = vpop.permute.xlu0 %4373
        %4375 = vrot.lane.b32.xlu0 %v4028, 64
        %v4376 = vpop.permute.xlu0 %4375
        %4377 = vrot.lane.b32.xlu0 %v4029, 64
        %v4378 = vpop.permute.xlu0 %4377
        %4379 = vrot.lane.b32.xlu0 %v4030, 64
        %v4380 = vpop.permute.xlu0 %4379
        %4381 = vrot.lane.b32.xlu0 %v4031, 64
        %v4382 = vpop.permute.xlu0 %4381
        %4383 = vrot.lane.b32.xlu0 %v4321, 64
        %v4384 = vpop.permute.xlu0 %4383
        %4385 = vrot.lane.b32.xlu0 %v4322, 64
        %v4386 = vpop.permute.xlu0 %4385
        %4419 = vst.msk [vmem:[#allocation3 + $0x8] sm:$0xf] %vm900, %v4324
        %4420 = vst.msk [vmem:[#allocation3 + $0x1c] sm:$0xf] %vm900, %v4326
        %4421 = vst.msk [vmem:[#allocation3 + $0x30] sm:$0xf] %vm900, %v4328
        %4422 = vst.msk [vmem:[#allocation3 + $0x44] sm:$0xf] %vm900, %v4330
        %4423 = vst.msk [vmem:[#allocation3 + $0x58] sm:$0xf] %vm900, %v4332
        %4424 = vst.msk [vmem:[#allocation3 + $0x6c] sm:$0xf] %vm900, %v4334
        %4425 = vst.msk [vmem:[#allocation3 + $0x80] sm:$0xf] %vm900, %v4336
        %4426 = vst.msk [vmem:[#allocation3 + $0x94] sm:$0xf] %vm900, %v4338
        %4427 = vst.msk [vmem:[#allocation3 + $0xa8] sm:$0xf] %vm900, %v4340
        %4428 = vst.msk [vmem:[#allocation3 + $0xbc] sm:$0xf] %vm900, %v4342
        %4429 = vst.msk [vmem:[#allocation3 + $0xd0] sm:$0xf] %vm900, %v4344
        %4430 = vst.msk [vmem:[#allocation3 + $0xe4] sm:$0xf] %vm900, %v4346
        %4431 = vst.msk [vmem:[#allocation3 + $0xf8] sm:$0xf] %vm900, %v4348
        %4432 = vst.msk [vmem:[#allocation3 + $0x10c] sm:$0xf] %vm900, %v4350
        %4433 = vst.msk [vmem:[#allocation3 + $0x120] sm:$0xf] %vm900, %v4352
        %4434 = vst.msk [vmem:[#allocation3 + $0x134] sm:$0xf] %vm900, %v4354
        %4435 = vst.msk [vmem:[#allocation3 + $0x148] sm:$0xf] %vm900, %v4356
        %4436 = vst.msk [vmem:[#allocation3 + $0x15c] sm:$0xf] %vm900, %v4358
        %4437 = vst.msk [vmem:[#allocation3 + $0x170] sm:$0xf] %vm900, %v4360
        %4438 = vst.msk [vmem:[#allocation3 + $0x184] sm:$0xf] %vm900, %v4362
        %4439 = vst.msk [vmem:[#allocation3 + $0x198] sm:$0xf] %vm900, %v4364
        %4440 = vst.msk [vmem:[#allocation3 + $0x1ac] sm:$0xf] %vm900, %v4366
        %4441 = vst.msk [vmem:[#allocation3 + $0x1c0] sm:$0xf] %vm900, %v4368
        %4442 = vst.msk [vmem:[#allocation3 + $0x1d4] sm:$0xf] %vm900, %v4370
        %4443 = vst.msk [vmem:[#allocation3 + $0x1e8] sm:$0xf] %vm900, %v4372
        %4444 = vst.msk [vmem:[#allocation3 + $0x1fc] sm:$0xf] %vm900, %v4374
        %4445 = vst.msk [vmem:[#allocation3 + $0x210] sm:$0xf] %vm900, %v4376
        %4446 = vst.msk [vmem:[#allocation3 + $0x224] sm:$0xf] %vm900, %v4378
        %4447 = vst.msk [vmem:[#allocation3 + $0x238] sm:$0xf] %vm900, %v4380
        %4448 = vst.msk [vmem:[#allocation3 + $0x24c] sm:$0xf] %vm900, %v4382
        %4449 = vst.msk [vmem:[#allocation3 + $0x260] sm:$0xf] %vm900, %v4384
        %4450 = vst.msk [vmem:[#allocation3 + $0x274] sm:$0xf] %vm900, %v4386
        %v4451 = vpack.c.bf16 %v3278, %v3277
        %v4453 = vunpack.c.l.b16 %v4451
        %v4454 = vunpack.c.h.b16 %v4451
        %v4455 = vpack.c.b16 %v4453, %v4453
        %v4456 = vpack.c.b16 %v4454, %v4454
        %4461 = vst.msk [vmem:[#allocation3 + $0xc] sm:$0xf] %vm514, %v3348
        %4462 = vst.msk [vmem:[#allocation3 + $0x20] sm:$0xf] %vm514, %v3349
        %4463 = vst.msk [vmem:[#allocation3 + $0x34] sm:$0xf] %vm514, %v3350
        %4464 = vst.msk [vmem:[#allocation3 + $0x48] sm:$0xf] %vm514, %v3351
        %4465 = vst.msk [vmem:[#allocation3 + $0x5c] sm:$0xf] %vm514, %v3352
        %4466 = vst.msk [vmem:[#allocation3 + $0x70] sm:$0xf] %vm514, %v3353
        %4467 = vst.msk [vmem:[#allocation3 + $0x84] sm:$0xf] %vm514, %v3354
        %4468 = vst.msk [vmem:[#allocation3 + $0x98] sm:$0xf] %vm514, %v3355
        %4469 = vst.msk [vmem:[#allocation3 + $0xac] sm:$0xf] %vm514, %v3356
        %4470 = vst.msk [vmem:[#allocation3 + $0xc0] sm:$0xf] %vm514, %v3357
        %4471 = vst.msk [vmem:[#allocation3 + $0xd4] sm:$0xf] %vm514, %v3358
        %4472 = vst.msk [vmem:[#allocation3 + $0xe8] sm:$0xf] %vm514, %v3359
        %4473 = vst.msk [vmem:[#allocation3 + $0xfc] sm:$0xf] %vm514, %v3360
        %4474 = vst.msk [vmem:[#allocation3 + $0x110] sm:$0xf] %vm514, %v3361
        %4475 = vst.msk [vmem:[#allocation3 + $0x124] sm:$0xf] %vm514, %v3362
        %4476 = vst.msk [vmem:[#allocation3 + $0x138] sm:$0xf] %vm514, %v3363
        %4477 = vst.msk [vmem:[#allocation3 + $0x14c] sm:$0xf] %vm514, %v3364
        %4478 = vst.msk [vmem:[#allocation3 + $0x160] sm:$0xf] %vm514, %v3365
        %4479 = vst.msk [vmem:[#allocation3 + $0x174] sm:$0xf] %vm514, %v3366
        %4480 = vst.msk [vmem:[#allocation3 + $0x188] sm:$0xf] %vm514, %v3367
        %4481 = vst.msk [vmem:[#allocation3 + $0x19c] sm:$0xf] %vm514, %v3368
        %4482 = vst.msk [vmem:[#allocation3 + $0x1b0] sm:$0xf] %vm514, %v3369
        %4483 = vst.msk [vmem:[#allocation3 + $0x1c4] sm:$0xf] %vm514, %v3370
        %4484 = vst.msk [vmem:[#allocation3 + $0x1d8] sm:$0xf] %vm514, %v3371
        %4485 = vst.msk [vmem:[#allocation3 + $0x1ec] sm:$0xf] %vm514, %v3372
        %4486 = vst.msk [vmem:[#allocation3 + $0x200] sm:$0xf] %vm514, %v3373
        %4487 = vst.msk [vmem:[#allocation3 + $0x214] sm:$0xf] %vm514, %v3374
        %4488 = vst.msk [vmem:[#allocation3 + $0x228] sm:$0xf] %vm514, %v3375
        %4489 = vst.msk [vmem:[#allocation3 + $0x23c] sm:$0xf] %vm514, %v4100
        %4490 = vst.msk [vmem:[#allocation3 + $0x250] sm:$0xf] %vm514, %v4101
        %4491 = vst.msk [vmem:[#allocation3 + $0x264] sm:$0xf] %vm514, %v4455
        %4492 = vst.msk [vmem:[#allocation3 + $0x278] sm:$0xf] %vm514, %v4456
        %v4496 = vrot.slane %v3277, 1
        %v4497 = vrot.slane %v3278, 1
        %v4498 = vsel %vm595, %v4496, %v4497
        %v4499 = vrot.slane %v3279, 1
        %v4500 = vsel %vm595, %v4497, %v4499
        %v4503 = vpack.c.bf16 %v4500, %v4498
        %v4505 = vunpack.c.l.b16 %v4503
        %v4506 = vunpack.c.h.b16 %v4503
        %v4507 = vpack.c.b16 %v4505, %v4505
        %v4508 = vpack.c.b16 %v4506, %v4506
        %4509 = vrot.lane.b32.xlu0 %v4244, 64
        %v4510 = vpop.permute.xlu0 %4509
        %4511 = vrot.lane.b32.xlu0 %v4245, 64
        %v4512 = vpop.permute.xlu0 %4511
        %4513 = vrot.lane.b32.xlu0 %v4507, 64
        %v4514 = vpop.permute.xlu0 %4513
        %4515 = vrot.lane.b32.xlu0 %v4508, 64
        %v4516 = vpop.permute.xlu0 %4515
        %4521 = vst.msk [vmem:[#allocation3 + $0xc] sm:$0xf] %vm900, %v3705
        %4522 = vst.msk [vmem:[#allocation3 + $0x20] sm:$0xf] %vm900, %v3707
        %4523 = vst.msk [vmem:[#allocation3 + $0x34] sm:$0xf] %vm900, %v3709
        %4524 = vst.msk [vmem:[#allocation3 + $0x48] sm:$0xf] %vm900, %v3711
        %4525 = vst.msk [vmem:[#allocation3 + $0x5c] sm:$0xf] %vm900, %v3713
        %4526 = vst.msk [vmem:[#allocation3 + $0x70] sm:$0xf] %vm900, %v3715
        %4527 = vst.msk [vmem:[#allocation3 + $0x84] sm:$0xf] %vm900, %v3717
        %4528 = vst.msk [vmem:[#allocation3 + $0x98] sm:$0xf] %vm900, %v3719
        %4529 = vst.msk [vmem:[#allocation3 + $0xac] sm:$0xf] %vm900, %v3721
        %4530 = vst.msk [vmem:[#allocation3 + $0xc0] sm:$0xf] %vm900, %v3723
        %4531 = vst.msk [vmem:[#allocation3 + $0xd4] sm:$0xf] %vm900, %v3725
        %4532 = vst.msk [vmem:[#allocation3 + $0xe8] sm:$0xf] %vm900, %v3727
        %4533 = vst.msk [vmem:[#allocation3 + $0xfc] sm:$0xf] %vm900, %v3729
        %4534 = vst.msk [vmem:[#allocation3 + $0x110] sm:$0xf] %vm900, %v3731
        %4535 = vst.msk [vmem:[#allocation3 + $0x124] sm:$0xf] %vm900, %v3733
        %4536 = vst.msk [vmem:[#allocation3 + $0x138] sm:$0xf] %vm900, %v3735
        %4537 = vst.msk [vmem:[#allocation3 + $0x14c] sm:$0xf] %vm900, %v3737
        %4538 = vst.msk [vmem:[#allocation3 + $0x160] sm:$0xf] %vm900, %v3739
        %4539 = vst.msk [vmem:[#allocation3 + $0x174] sm:$0xf] %vm900, %v3741
        %4540 = vst.msk [vmem:[#allocation3 + $0x188] sm:$0xf] %vm900, %v3743
        %4541 = vst.msk [vmem:[#allocation3 + $0x19c] sm:$0xf] %vm900, %v3745
        %4542 = vst.msk [vmem:[#allocation3 + $0x1b0] sm:$0xf] %vm900, %v3747
        %4543 = vst.msk [vmem:[#allocation3 + $0x1c4] sm:$0xf] %vm900, %v3749
        %4544 = vst.msk [vmem:[#allocation3 + $0x1d8] sm:$0xf] %vm900, %v3751
        %4545 = vst.msk [vmem:[#allocation3 + $0x1ec] sm:$0xf] %vm900, %v3753
        %4546 = vst.msk [vmem:[#allocation3 + $0x200] sm:$0xf] %vm900, %v3755
        %4547 = vst.msk [vmem:[#allocation3 + $0x214] sm:$0xf] %vm900, %v3757
        %4548 = vst.msk [vmem:[#allocation3 + $0x228] sm:$0xf] %vm900, %v3759
        %4549 = vst.msk [vmem:[#allocation3 + $0x23c] sm:$0xf] %vm900, %v4510
        %4550 = vst.msk [vmem:[#allocation3 + $0x250] sm:$0xf] %vm900, %v4512
        %4551 = vst.msk [vmem:[#allocation3 + $0x264] sm:$0xf] %vm900, %v4514
        %4552 = vst.msk [vmem:[#allocation3 + $0x278] sm:$0xf] %vm900, %v4516
        %v4553 = vrot.slane %v3277, 2
        %v4554 = vrot.slane %v3278, 2
        %v4555 = vsel %vm933, %v4553, %v4554
        %v4556 = vrot.slane %v3279, 2
        %v4557 = vsel %vm933, %v4554, %v4556
        %v4560 = vpack.c.bf16 %v4557, %v4555
        %v4562 = vunpack.c.l.b16 %v4560
        %v4563 = vunpack.c.h.b16 %v4560
        %v4564 = vpack.c.b16 %v4562, %v4562
        %v4565 = vpack.c.b16 %v4563, %v4563
        %4570 = vst.msk [vmem:[#allocation3 + $0x10] sm:$0xf] %vm514, %v4004
        %4571 = vst.msk [vmem:[#allocation3 + $0x24] sm:$0xf] %vm514, %v4005
        %4572 = vst.msk [vmem:[#allocation3 + $0x38] sm:$0xf] %vm514, %v4006
        %4573 = vst.msk [vmem:[#allocation3 + $0x4c] sm:$0xf] %vm514, %v4007
        %4574 = vst.msk [vmem:[#allocation3 + $0x60] sm:$0xf] %vm514, %v4008
        %4575 = vst.msk [vmem:[#allocation3 + $0x74] sm:$0xf] %vm514, %v4009
        %4576 = vst.msk [vmem:[#allocation3 + $0x88] sm:$0xf] %vm514, %v4010
        %4577 = vst.msk [vmem:[#allocation3 + $0x9c] sm:$0xf] %vm514, %v4011
        %4578 = vst.msk [vmem:[#allocation3 + $0xb0] sm:$0xf] %vm514, %v4012
        %4579 = vst.msk [vmem:[#allocation3 + $0xc4] sm:$0xf] %vm514, %v4013
        %4580 = vst.msk [vmem:[#allocation3 + $0xd8] sm:$0xf] %vm514, %v4014
        %4581 = vst.msk [vmem:[#allocation3 + $0xec] sm:$0xf] %vm514, %v4015
        %4582 = vst.msk [vmem:[#allocation3 + $0x100] sm:$0xf] %vm514, %v4016
        %4583 = vst.msk [vmem:[#allocation3 + $0x114] sm:$0xf] %vm514, %v4017
        %4584 = vst.msk [vmem:[#allocation3 + $0x128] sm:$0xf] %vm514, %v4018
        %4585 = vst.msk [vmem:[#allocation3 + $0x13c] sm:$0xf] %vm514, %v4019
        %4586 = vst.msk [vmem:[#allocation3 + $0x150] sm:$0xf] %vm514, %v4020
        %4587 = vst.msk [vmem:[#allocation3 + $0x164] sm:$0xf] %vm514, %v4021
        %4588 = vst.msk [vmem:[#allocation3 + $0x178] sm:$0xf] %vm514, %v4022
        %4589 = vst.msk [vmem:[#allocation3 + $0x18c] sm:$0xf] %vm514, %v4023
        %4590 = vst.msk [vmem:[#allocation3 + $0x1a0] sm:$0xf] %vm514, %v4024
        %4591 = vst.msk [vmem:[#allocation3 + $0x1b4] sm:$0xf] %vm514, %v4025
        %4592 = vst.msk [vmem:[#allocation3 + $0x1c8] sm:$0xf] %vm514, %v4026
        %4593 = vst.msk [vmem:[#allocation3 + $0x1dc] sm:$0xf] %vm514, %v4027
        %4594 = vst.msk [vmem:[#allocation3 + $0x1f0] sm:$0xf] %vm514, %v4028
        %4595 = vst.msk [vmem:[#allocation3 + $0x204] sm:$0xf] %vm514, %v4029
        %4596 = vst.msk [vmem:[#allocation3 + $0x218] sm:$0xf] %vm514, %v4030
        %4597 = vst.msk [vmem:[#allocation3 + $0x22c] sm:$0xf] %vm514, %v4031
        %4598 = vst.msk [vmem:[#allocation3 + $0x240] sm:$0xf] %vm514, %v4321
        %4599 = vst.msk [vmem:[#allocation3 + $0x254] sm:$0xf] %vm514, %v4322
        %4600 = vst.msk [vmem:[#allocation3 + $0x268] sm:$0xf] %vm514, %v4564
        %4601 = vst.msk [vmem:[#allocation3 + $0x27c] sm:$0xf] %vm514, %v4565
        %v4602 = vld [vmem:[#allocation3] sm:$0xff]
        %v4603 = vld [vmem:[#allocation3 + $0x8] sm:$0xff]
        %v4604 = vld [vmem:[#allocation3 + $0x10] sm:$0xf]
        %v4605 = vld [vmem:[#allocation3 + $0x14] sm:$0xff]
        %v4606 = vld [vmem:[#allocation3 + $0x1c] sm:$0xff]
        %v4607 = vld [vmem:[#allocation3 + $0x24] sm:$0xf]
        %v4608 = vld [vmem:[#allocation3 + $0x28] sm:$0xff]
        %v4609 = vld [vmem:[#allocation3 + $0x30] sm:$0xff]
        %v4610 = vld [vmem:[#allocation3 + $0x38] sm:$0xf]
        %v4611 = vld [vmem:[#allocation3 + $0x3c] sm:$0xff]
        %v4612 = vld [vmem:[#allocation3 + $0x44] sm:$0xff]
        %v4613 = vld [vmem:[#allocation3 + $0x4c] sm:$0xf]
        %v4614 = vld [vmem:[#allocation3 + $0x50] sm:$0xff]
        %v4615 = vld [vmem:[#allocation3 + $0x58] sm:$0xff]
        %v4616 = vld [vmem:[#allocation3 + $0x60] sm:$0xf]
        %v4617 = vld [vmem:[#allocation3 + $0x64] sm:$0xff]
        %v4618 = vld [vmem:[#allocation3 + $0x6c] sm:$0xff]
        %v4619 = vld [vmem:[#allocation3 + $0x74] sm:$0xf]
        %v4620 = vld [vmem:[#allocation3 + $0x78] sm:$0xff]
        %v4621 = vld [vmem:[#allocation3 + $0x80] sm:$0xff]
        %v4622 = vld [vmem:[#allocation3 + $0x88] sm:$0xf]
        %v4623 = vld [vmem:[#allocation3 + $0x8c] sm:$0xff]
        %v4624 = vld [vmem:[#allocation3 + $0x94] sm:$0xff]
        %v4625 = vld [vmem:[#allocation3 + $0x9c] sm:$0xf]
        %v4626 = vld [vmem:[#allocation3 + $0xa0] sm:$0xff]
        %v4627 = vld [vmem:[#allocation3 + $0xa8] sm:$0xff]
        %v4628 = vld [vmem:[#allocation3 + $0xb0] sm:$0xf]
        %v4629 = vld [vmem:[#allocation3 + $0xb4] sm:$0xff]
        %v4630 = vld [vmem:[#allocation3 + $0xbc] sm:$0xff]
        %v4631 = vld [vmem:[#allocation3 + $0xc4] sm:$0xf]
        %v4632 = vld [vmem:[#allocation3 + $0xc8] sm:$0xff]
        %v4633 = vld [vmem:[#allocation3 + $0xd0] sm:$0xff]
        %v4634 = vld [vmem:[#allocation3 + $0xd8] sm:$0xf]
        %v4635 = vld [vmem:[#allocation3 + $0xdc] sm:$0xff]
        %v4636 = vld [vmem:[#allocation3 + $0xe4] sm:$0xff]
        %v4637 = vld [vmem:[#allocation3 + $0xec] sm:$0xf]
        %v4638 = vld [vmem:[#allocation3 + $0xf0] sm:$0xff]
        %v4639 = vld [vmem:[#allocation3 + $0xf8] sm:$0xff]
        %v4640 = vld [vmem:[#allocation3 + $0x100] sm:$0xf]
        %v4641 = vld [vmem:[#allocation3 + $0x104] sm:$0xff]
        %v4642 = vld [vmem:[#allocation3 + $0x10c] sm:$0xff]
        %v4643 = vld [vmem:[#allocation3 + $0x114] sm:$0xf]
        %v4644 = vld [vmem:[#allocation3 + $0x118] sm:$0xff]
        %v4645 = vld [vmem:[#allocation3 + $0x120] sm:$0xff]
        %v4646 = vld [vmem:[#allocation3 + $0x128] sm:$0xf]
        %v4647 = vld [vmem:[#allocation3 + $0x12c] sm:$0xff]
        %v4648 = vld [vmem:[#allocation3 + $0x134] sm:$0xff]
        %v4649 = vld [vmem:[#allocation3 + $0x13c] sm:$0xf]
        %v4650 = vld [vmem:[#allocation3 + $0x140] sm:$0xff]
        %v4651 = vld [vmem:[#allocation3 + $0x148] sm:$0xff]
        %v4652 = vld [vmem:[#allocation3 + $0x150] sm:$0xf]
        %v4653 = vld [vmem:[#allocation3 + $0x154] sm:$0xff]
        %v4654 = vld [vmem:[#allocation3 + $0x15c] sm:$0xff]
        %v4655 = vld [vmem:[#allocation3 + $0x164] sm:$0xf]
        %v4656 = vld [vmem:[#allocation3 + $0x168] sm:$0xff]
        %v4657 = vld [vmem:[#allocation3 + $0x170] sm:$0xff]
        %v4658 = vld [vmem:[#allocation3 + $0x178] sm:$0xf]
        %v4659 = vld [vmem:[#allocation3 + $0x17c] sm:$0xff]
        %v4660 = vld [vmem:[#allocation3 + $0x184] sm:$0xff]
        %v4661 = vld [vmem:[#allocation3 + $0x18c] sm:$0xf]
        %v4662 = vld [vmem:[#allocation3 + $0x190] sm:$0xff]
        %v4663 = vld [vmem:[#allocation3 + $0x198] sm:$0xff]
        %v4664 = vld [vmem:[#allocation3 + $0x1a0] sm:$0xf]
        %v4665 = vld [vmem:[#allocation3 + $0x1a4] sm:$0xff]
        %v4666 = vld [vmem:[#allocation3 + $0x1ac] sm:$0xff]
        %v4667 = vld [vmem:[#allocation3 + $0x1b4] sm:$0xf]
        %v4668 = vld [vmem:[#allocation3 + $0x1b8] sm:$0xff]
        %v4669 = vld [vmem:[#allocation3 + $0x1c0] sm:$0xff]
        %v4670 = vld [vmem:[#allocation3 + $0x1c8] sm:$0xf]
        %v4671 = vld [vmem:[#allocation3 + $0x1cc] sm:$0xff]
        %v4672 = vld [vmem:[#allocation3 + $0x1d4] sm:$0xff]
        %v4673 = vld [vmem:[#allocation3 + $0x1dc] sm:$0xf]
        %v4674 = vld [vmem:[#allocation3 + $0x1e0] sm:$0xff]
        %v4675 = vld [vmem:[#allocation3 + $0x1e8] sm:$0xff]
        %v4676 = vld [vmem:[#allocation3 + $0x1f0] sm:$0xf]
        %v4677 = vld [vmem:[#allocation3 + $0x1f4] sm:$0xff]
        %v4678 = vld [vmem:[#allocation3 + $0x1fc] sm:$0xff]
        %v4679 = vld [vmem:[#allocation3 + $0x204] sm:$0xf]
        %v4680 = vld [vmem:[#allocation3 + $0x208] sm:$0xff]
        %v4681 = vld [vmem:[#allocation3 + $0x210] sm:$0xff]
        %v4682 = vld [vmem:[#allocation3 + $0x218] sm:$0xf]
        %v4683 = vld [vmem:[#allocation3 + $0x21c] sm:$0xff]
        %v4684 = vld [vmem:[#allocation3 + $0x224] sm:$0xff]
        %v4685 = vld [vmem:[#allocation3 + $0x22c] sm:$0xf]
        %v4686 = vld [vmem:[#allocation3 + $0x230] sm:$0xff]
        %v4687 = vld [vmem:[#allocation3 + $0x238] sm:$0xff]
        %v4688 = vld [vmem:[#allocation3 + $0x240] sm:$0xf]
        %v4689 = vld [vmem:[#allocation3 + $0x244] sm:$0xff]
        %v4690 = vld [vmem:[#allocation3 + $0x24c] sm:$0xff]
        %v4691 = vld [vmem:[#allocation3 + $0x254] sm:$0xf]
        %v4692 = vld [vmem:[#allocation3 + $0x258] sm:$0xff]
        %v4693 = vld [vmem:[#allocation3 + $0x260] sm:$0xff]
        %v4694 = vld [vmem:[#allocation3 + $0x268] sm:$0xf]
        %v4695 = vld [vmem:[#allocation3 + $0x26c] sm:$0xff]
        %v4696 = vld [vmem:[#allocation3 + $0x274] sm:$0xff]
        %v4697 = vld [vmem:[#allocation3 + $0x27c] sm:$0xf]
        %v4698 = vld [vmem:[%s2] sm:$0xf]
        %v4699 = vld [vmem:[%s2 + $0x4] sm:$0xf]
        %v4700 = vld [vmem:[%s2 + $0x8] sm:$0xf]
        %v4701 = vld [vmem:[%s2 + $0xc] sm:$0xf]
        %v4702 = vld [vmem:[%s2 + $0x10] sm:$0xf]
        %v4703 = vld [vmem:[%s2 + $0x14] sm:$0xf]
        %v4704 = vld [vmem:[%s2 + $0x18] sm:$0xf]
        %v4705 = vld [vmem:[%s2 + $0x1c] sm:$0xf]
        %v4706 = vld [vmem:[%s2 + $0x20] sm:$0xf]
        %v4707 = vld [vmem:[%s2 + $0x24] sm:$0xf]
        %v4708 = vld [vmem:[%s2 + $0x28] sm:$0xf]
        %v4709 = vld [vmem:[%s2 + $0x2c] sm:$0xf]
        %v4710 = vld [vmem:[%s2 + $0x30] sm:$0xf]
        %v4711 = vld [vmem:[%s2 + $0x34] sm:$0xf]
        %v4712 = vld [vmem:[%s2 + $0x38] sm:$0xf]
        %v4713 = vld [vmem:[%s2 + $0x3c] sm:$0xf]
        %v4714 = vld [vmem:[%s2 + $0x40] sm:$0xf]
        %v4715 = vld [vmem:[%s2 + $0x44] sm:$0xf]
        %v4716 = vld [vmem:[%s2 + $0x48] sm:$0xf]
        %v4717 = vld [vmem:[%s2 + $0x4c] sm:$0xf]
        %v4718 = vld [vmem:[%s2 + $0x50] sm:$0xf]
        %v4719 = vld [vmem:[%s2 + $0x54] sm:$0xf]
        %v4720 = vld [vmem:[%s2 + $0x58] sm:$0xf]
        %v4721 = vld [vmem:[%s2 + $0x5c] sm:$0xf]
        %v4722 = vld [vmem:[%s2 + $0x60] sm:$0xf]
        %v4723 = vld [vmem:[%s2 + $0x64] sm:$0xf]
        %v4724 = vld [vmem:[%s2 + $0x68] sm:$0xf]
        %v4725 = vld [vmem:[%s2 + $0x6c] sm:$0xf]
        %v4726 = vld [vmem:[%s2 + $0x70] sm:$0xf]
        %v4727 = vld [vmem:[%s2 + $0x74] sm:$0xf]
        %v4728 = vld [vmem:[%s2 + $0x78] sm:$0xf]
        %v4729 = vld [vmem:[%s2 + $0x7c] sm:$0xf]
        %v4730 = vld [vmem:[%s2 + $0x80] sm:$0xf]
        %v4731 = vld [vmem:[%s2 + $0x84] sm:$0xf]
        %v4732 = vld [vmem:[%s2 + $0x88] sm:$0xf]
        %v4733 = vld [vmem:[%s2 + $0x8c] sm:$0xf]
        %v4734 = vld [vmem:[%s2 + $0x90] sm:$0xf]
        %v4735 = vld [vmem:[%s2 + $0x94] sm:$0xf]
        %v4736 = vld [vmem:[%s2 + $0x98] sm:$0xf]
        %v4737 = vld [vmem:[%s2 + $0x9c] sm:$0xf]
        %v4738 = vld [vmem:[%s2 + $0xa0] sm:$0xf]
        %v4739 = vld [vmem:[%s2 + $0xa4] sm:$0xf]
        %v4740 = vld [vmem:[%s2 + $0xa8] sm:$0xf]
        %v4741 = vld [vmem:[%s2 + $0xac] sm:$0xf]
        %v4742 = vld [vmem:[%s2 + $0xb0] sm:$0xf]
        %v4743 = vld [vmem:[%s2 + $0xb4] sm:$0xf]
        %v4744 = vld [vmem:[%s2 + $0xb8] sm:$0xf]
        %v4745 = vld [vmem:[%s2 + $0xbc] sm:$0xf]
        %v4746 = vld [vmem:[%s2 + $0xc0] sm:$0xf]
        %v4747 = vld [vmem:[%s2 + $0xc4] sm:$0xf]
        %v4748 = vld [vmem:[%s2 + $0xc8] sm:$0xf]
        %v4749 = vld [vmem:[%s2 + $0xcc] sm:$0xf]
        %v4750 = vld [vmem:[%s2 + $0xd0] sm:$0xf]
        %v4751 = vld [vmem:[%s2 + $0xd4] sm:$0xf]
        %v4752 = vld [vmem:[%s2 + $0xd8] sm:$0xf]
        %v4753 = vld [vmem:[%s2 + $0xdc] sm:$0xf]
        %v4754 = vld [vmem:[%s2 + $0xe0] sm:$0xf]
        %v4755 = vld [vmem:[%s2 + $0xe4] sm:$0xf]
        %v4756 = vld [vmem:[%s2 + $0xe8] sm:$0xf]
        %v4757 = vld [vmem:[%s2 + $0xec] sm:$0xf]
        %v4758 = vld [vmem:[%s2 + $0xf0] sm:$0xf]
        %v4759 = vld [vmem:[%s2 + $0xf4] sm:$0xf]
        %v4760 = vld [vmem:[%s2 + $0xf8] sm:$0xf]
        %v4761 = vld [vmem:[%s2 + $0xfc] sm:$0xf]
        %v4762 = vld [vmem:[%s2 + $0x100] sm:$0xf]
        %v4763 = vld [vmem:[%s2 + $0x104] sm:$0xf]
        %v4764 = vld [vmem:[%s2 + $0x108] sm:$0xf]
        %v4765 = vld [vmem:[%s2 + $0x10c] sm:$0xf]
        %v4766 = vld [vmem:[%s2 + $0x110] sm:$0xf]
        %v4767 = vld [vmem:[%s2 + $0x114] sm:$0xf]
        %v4768 = vld [vmem:[%s2 + $0x118] sm:$0xf]
        %v4769 = vld [vmem:[%s2 + $0x11c] sm:$0xf]
        %v4866 = vunpack.c.l.b16 %v4602
        %v4867 = vunpack.c.h.b16 %v4602
        %v4868 = vunpack.c.l.b16 %v4603
        %v4869 = vunpack.c.h.b16 %v4603
        %v4870 = vunpack.c.l.b16 %v4604
        %v4871 = vunpack.c.l.b16 %v4605
        %v4872 = vunpack.c.h.b16 %v4605
        %v4873 = vunpack.c.l.b16 %v4606
        %v4874 = vunpack.c.h.b16 %v4606
        %v4875 = vunpack.c.l.b16 %v4607
        %v4876 = vunpack.c.l.b16 %v4608
        %v4877 = vunpack.c.h.b16 %v4608
        %v4878 = vunpack.c.l.b16 %v4609
        %v4879 = vunpack.c.h.b16 %v4609
        %v4880 = vunpack.c.l.b16 %v4610
        %v4881 = vunpack.c.l.b16 %v4611
        %v4882 = vunpack.c.h.b16 %v4611
        %v4883 = vunpack.c.l.b16 %v4612
        %v4884 = vunpack.c.h.b16 %v4612
        %v4885 = vunpack.c.l.b16 %v4613
        %v4886 = vunpack.c.l.b16 %v4614
        %v4887 = vunpack.c.h.b16 %v4614
        %v4888 = vunpack.c.l.b16 %v4615
        %v4889 = vunpack.c.h.b16 %v4615
        %v4890 = vunpack.c.l.b16 %v4616
        %v4891 = vunpack.c.l.b16 %v4617
        %v4892 = vunpack.c.h.b16 %v4617
        %v4893 = vunpack.c.l.b16 %v4618
        %v4894 = vunpack.c.h.b16 %v4618
        %v4895 = vunpack.c.l.b16 %v4619
        %v4896 = vunpack.c.l.b16 %v4620
        %v4897 = vunpack.c.h.b16 %v4620
        %v4898 = vunpack.c.l.b16 %v4621
        %v4899 = vunpack.c.h.b16 %v4621
        %v4900 = vunpack.c.l.b16 %v4622
        %v4901 = vunpack.c.l.b16 %v4623
        %v4902 = vunpack.c.h.b16 %v4623
        %v4903 = vunpack.c.l.b16 %v4624
        %v4904 = vunpack.c.h.b16 %v4624
        %v4905 = vunpack.c.l.b16 %v4625
        %v4906 = vunpack.c.l.b16 %v4626
        %v4907 = vunpack.c.h.b16 %v4626
        %v4908 = vunpack.c.l.b16 %v4627
        %v4909 = vunpack.c.h.b16 %v4627
        %v4910 = vunpack.c.l.b16 %v4628
        %v4911 = vunpack.c.l.b16 %v4629
        %v4912 = vunpack.c.h.b16 %v4629
        %v4913 = vunpack.c.l.b16 %v4630
        %v4914 = vunpack.c.h.b16 %v4630
        %v4915 = vunpack.c.l.b16 %v4631
        %v4916 = vunpack.c.l.b16 %v4632
        %v4917 = vunpack.c.h.b16 %v4632
        %v4918 = vunpack.c.l.b16 %v4633
        %v4919 = vunpack.c.h.b16 %v4633
        %v4920 = vunpack.c.l.b16 %v4634
        %v4921 = vunpack.c.l.b16 %v4635
        %v4922 = vunpack.c.h.b16 %v4635
        %v4923 = vunpack.c.l.b16 %v4636
        %v4924 = vunpack.c.h.b16 %v4636
        %v4925 = vunpack.c.l.b16 %v4637
        %v4926 = vunpack.c.l.b16 %v4638
        %v4927 = vunpack.c.h.b16 %v4638
        %v4928 = vunpack.c.l.b16 %v4639
        %v4929 = vunpack.c.h.b16 %v4639
        %v4930 = vunpack.c.l.b16 %v4640
        %v4931 = vunpack.c.l.b16 %v4641
        %v4932 = vunpack.c.h.b16 %v4641
        %v4933 = vunpack.c.l.b16 %v4642
        %v4934 = vunpack.c.h.b16 %v4642
        %v4935 = vunpack.c.l.b16 %v4643
        %v4936 = vunpack.c.l.b16 %v4644
        %v4937 = vunpack.c.h.b16 %v4644
        %v4938 = vunpack.c.l.b16 %v4645
        %v4939 = vunpack.c.h.b16 %v4645
        %v4940 = vunpack.c.l.b16 %v4646
        %v4941 = vunpack.c.l.b16 %v4647
        %v4942 = vunpack.c.h.b16 %v4647
        %v4943 = vunpack.c.l.b16 %v4648
        %v4944 = vunpack.c.h.b16 %v4648
        %v4945 = vunpack.c.l.b16 %v4649
        %v4946 = vunpack.c.l.b16 %v4650
        %v4947 = vunpack.c.h.b16 %v4650
        %v4948 = vunpack.c.l.b16 %v4651
        %v4949 = vunpack.c.h.b16 %v4651
        %v4950 = vunpack.c.l.b16 %v4652
        %v4951 = vunpack.c.l.b16 %v4653
        %v4952 = vunpack.c.h.b16 %v4653
        %v4953 = vunpack.c.l.b16 %v4654
        %v4954 = vunpack.c.h.b16 %v4654
        %v4955 = vunpack.c.l.b16 %v4655
        %v4956 = vunpack.c.l.b16 %v4656
        %v4957 = vunpack.c.h.b16 %v4656
        %v4958 = vunpack.c.l.b16 %v4657
        %v4959 = vunpack.c.h.b16 %v4657
        %v4960 = vunpack.c.l.b16 %v4658
        %v4961 = vunpack.c.l.b16 %v4659
        %v4962 = vunpack.c.h.b16 %v4659
        %v4963 = vunpack.c.l.b16 %v4660
        %v4964 = vunpack.c.h.b16 %v4660
        %v4965 = vunpack.c.l.b16 %v4661
        %v4966 = vunpack.c.l.b16 %v4662
        %v4967 = vunpack.c.h.b16 %v4662
        %v4968 = vunpack.c.l.b16 %v4663
        %v4969 = vunpack.c.h.b16 %v4663
        %v4970 = vunpack.c.l.b16 %v4664
        %v4971 = vunpack.c.l.b16 %v4665
        %v4972 = vunpack.c.h.b16 %v4665
        %v4973 = vunpack.c.l.b16 %v4666
        %v4974 = vunpack.c.h.b16 %v4666
        %v4975 = vunpack.c.l.b16 %v4667
        %v4976 = vunpack.c.l.b16 %v4668
        %v4977 = vunpack.c.h.b16 %v4668
        %v4978 = vunpack.c.l.b16 %v4669
        %v4979 = vunpack.c.h.b16 %v4669
        %v4980 = vunpack.c.l.b16 %v4670
        %v4981 = vunpack.c.l.b16 %v4671
        %v4982 = vunpack.c.h.b16 %v4671
        %v4983 = vunpack.c.l.b16 %v4672
        %v4984 = vunpack.c.h.b16 %v4672
        %v4985 = vunpack.c.l.b16 %v4673
        %v4986 = vunpack.c.l.b16 %v4674
        %v4987 = vunpack.c.h.b16 %v4674
        %v4988 = vunpack.c.l.b16 %v4675
        %v4989 = vunpack.c.h.b16 %v4675
        %v4990 = vunpack.c.l.b16 %v4676
        %v4991 = vunpack.c.l.b16 %v4677
        %v4992 = vunpack.c.h.b16 %v4677
        %v4993 = vunpack.c.l.b16 %v4678
        %v4994 = vunpack.c.h.b16 %v4678
        %v4995 = vunpack.c.l.b16 %v4679
        %v4996 = vunpack.c.l.b16 %v4680
        %v4997 = vunpack.c.h.b16 %v4680
        %v4998 = vunpack.c.l.b16 %v4681
        %v4999 = vunpack.c.h.b16 %v4681
        %v5000 = vunpack.c.l.b16 %v4682
        %v5001 = vunpack.c.l.b16 %v4683
        %v5002 = vunpack.c.h.b16 %v4683
        %v5003 = vunpack.c.l.b16 %v4684
        %v5004 = vunpack.c.h.b16 %v4684
        %v5005 = vunpack.c.l.b16 %v4685
        %v5006 = vunpack.c.l.b16 %v4686
        %v5007 = vunpack.c.h.b16 %v4686
        %v5008 = vunpack.c.l.b16 %v4687
        %v5009 = vunpack.c.h.b16 %v4687
        %v5010 = vunpack.c.l.b16 %v4688
        %v5011 = vunpack.c.l.b16 %v4689
        %v5012 = vunpack.c.h.b16 %v4689
        %v5013 = vunpack.c.l.b16 %v4690
        %v5014 = vunpack.c.h.b16 %v4690
        %v5015 = vunpack.c.l.b16 %v4691
        %v5016 = vunpack.c.l.b16 %v4692
        %v5017 = vunpack.c.h.b16 %v4692
        %v5018 = vunpack.c.l.b16 %v4693
        %v5019 = vunpack.c.h.b16 %v4693
        %v5020 = vunpack.c.l.b16 %v4694
        %v5021 = vunpack.c.l.b16 %v4695
        %v5022 = vunpack.c.h.b16 %v4695
        %v5023 = vunpack.c.l.b16 %v4696
        %v5024 = vunpack.c.h.b16 %v4696
        %v5025 = vunpack.c.l.b16 %v4697
        %v5026 = vpack.c.b16 %v4871, %v4866
        %v5027 = vpack.c.b16 %v4872, %v4867
        %v5028 = vpack.c.b16 %v4873, %v4868
        %v5029 = vpack.c.b16 %v4874, %v4869
        %v5030 = vpack.c.b16 %v4875, %v4870
        %v5031 = vpack.c.b16 %v4881, %v4876
        %v5032 = vpack.c.b16 %v4882, %v4877
        %v5033 = vpack.c.b16 %v4883, %v4878
        %v5034 = vpack.c.b16 %v4884, %v4879
        %v5035 = vpack.c.b16 %v4885, %v4880
        %v5036 = vpack.c.b16 %v4891, %v4886
        %v5037 = vpack.c.b16 %v4892, %v4887
        %v5038 = vpack.c.b16 %v4893, %v4888
        %v5039 = vpack.c.b16 %v4894, %v4889
        %v5040 = vpack.c.b16 %v4895, %v4890
        %v5041 = vpack.c.b16 %v4901, %v4896
        %v5042 = vpack.c.b16 %v4902, %v4897
        %v5043 = vpack.c.b16 %v4903, %v4898
        %v5044 = vpack.c.b16 %v4904, %v4899
        %v5045 = vpack.c.b16 %v4905, %v4900
        %v5046 = vpack.c.b16 %v4911, %v4906
        %v5047 = vpack.c.b16 %v4912, %v4907
        %v5048 = vpack.c.b16 %v4913, %v4908
        %v5049 = vpack.c.b16 %v4914, %v4909
        %v5050 = vpack.c.b16 %v4915, %v4910
        %v5051 = vpack.c.b16 %v4921, %v4916
        %v5052 = vpack.c.b16 %v4922, %v4917
        %v5053 = vpack.c.b16 %v4923, %v4918
        %v5054 = vpack.c.b16 %v4924, %v4919
        %v5055 = vpack.c.b16 %v4925, %v4920
        %v5056 = vpack.c.b16 %v4931, %v4926
        %v5057 = vpack.c.b16 %v4932, %v4927
        %v5058 = vpack.c.b16 %v4933, %v4928
        %v5059 = vpack.c.b16 %v4934, %v4929
        %v5060 = vpack.c.b16 %v4935, %v4930
        %v5061 = vpack.c.b16 %v4941, %v4936
        %v5062 = vpack.c.b16 %v4942, %v4937
        %v5063 = vpack.c.b16 %v4943, %v4938
        %v5064 = vpack.c.b16 %v4944, %v4939
        %v5065 = vpack.c.b16 %v4945, %v4940
        %v5066 = vpack.c.b16 %v4951, %v4946
        %v5067 = vpack.c.b16 %v4952, %v4947
        %v5068 = vpack.c.b16 %v4953, %v4948
        %v5069 = vpack.c.b16 %v4954, %v4949
        %v5070 = vpack.c.b16 %v4955, %v4950
        %v5071 = vpack.c.b16 %v4961, %v4956
        %v5072 = vpack.c.b16 %v4962, %v4957
        %v5073 = vpack.c.b16 %v4963, %v4958
        %v5074 = vpack.c.b16 %v4964, %v4959
        %v5075 = vpack.c.b16 %v4965, %v4960
        %v5076 = vpack.c.b16 %v4971, %v4966
        %v5077 = vpack.c.b16 %v4972, %v4967
        %v5078 = vpack.c.b16 %v4973, %v4968
        %v5079 = vpack.c.b16 %v4974, %v4969
        %v5080 = vpack.c.b16 %v4975, %v4970
        %v5081 = vpack.c.b16 %v4981, %v4976
        %v5082 = vpack.c.b16 %v4982, %v4977
        %v5083 = vpack.c.b16 %v4983, %v4978
        %v5084 = vpack.c.b16 %v4984, %v4979
        %v5085 = vpack.c.b16 %v4985, %v4980
        %v5086 = vpack.c.b16 %v4991, %v4986
        %v5087 = vpack.c.b16 %v4992, %v4987
        %v5088 = vpack.c.b16 %v4993, %v4988
        %v5089 = vpack.c.b16 %v4994, %v4989
        %v5090 = vpack.c.b16 %v4995, %v4990
        %v5091 = vpack.c.b16 %v5001, %v4996
        %v5092 = vpack.c.b16 %v5002, %v4997
        %v5093 = vpack.c.b16 %v5003, %v4998
        %v5094 = vpack.c.b16 %v5004, %v4999
        %v5095 = vpack.c.b16 %v5005, %v5000
        %v5096 = vpack.c.b16 %v5011, %v5006
        %v5097 = vpack.c.b16 %v5012, %v5007
        %v5098 = vpack.c.b16 %v5013, %v5008
        %v5099 = vpack.c.b16 %v5014, %v5009
        %v5100 = vpack.c.b16 %v5015, %v5010
        %v5101 = vpack.c.b16 %v5021, %v5016
        %v5102 = vpack.c.b16 %v5022, %v5017
        %v5103 = vpack.c.b16 %v5023, %v5018
        %v5104 = vpack.c.b16 %v5024, %v5019
        %v5105 = vpack.c.b16 %v5025, %v5020
        %v5242 = vunpack.c.l.b16 %v4698
        %v5243 = vunpack.c.l.b16 %v4699
        %v5244 = vunpack.c.l.b16 %v4700
        %v5245 = vunpack.c.l.b16 %v4701
        %v5246 = vunpack.c.l.b16 %v4702
        %v5247 = vunpack.c.l.b16 %v4703
        %v5248 = vunpack.c.l.b16 %v4704
        %v5249 = vunpack.c.l.b16 %v4705
        %v5250 = vunpack.c.l.b16 %v4706
        %v5251 = vunpack.c.l.b16 %v4707
        %v5252 = vunpack.c.l.b16 %v4708
        %v5253 = vunpack.c.l.b16 %v4709
        %v5254 = vunpack.c.l.b16 %v4710
        %v5255 = vunpack.c.l.b16 %v4711
        %v5256 = vunpack.c.l.b16 %v4712
        %v5257 = vunpack.c.l.b16 %v4713
        %v5258 = vunpack.c.l.b16 %v4714
        %v5259 = vunpack.c.l.b16 %v4715
        %v5260 = vunpack.c.l.b16 %v4716
        %v5261 = vunpack.c.l.b16 %v4717
        %v5262 = vunpack.c.l.b16 %v4718
        %v5263 = vunpack.c.l.b16 %v4719
        %v5264 = vunpack.c.l.b16 %v4720
        %v5265 = vunpack.c.l.b16 %v4721
        %v5266 = vunpack.c.l.b16 %v4722
        %v5267 = vunpack.c.l.b16 %v4723
        %v5268 = vunpack.c.l.b16 %v4724
        %v5269 = vunpack.c.l.b16 %v4725
        %v5270 = vunpack.c.l.b16 %v4726
        %v5271 = vunpack.c.l.b16 %v4727
        %v5272 = vunpack.c.l.b16 %v4728
        %v5273 = vunpack.c.l.b16 %v4729
        %v5274 = vunpack.c.l.b16 %v4730
        %v5275 = vunpack.c.l.b16 %v4731
        %v5276 = vunpack.c.l.b16 %v4732
        %v5277 = vunpack.c.l.b16 %v4733
        %v5278 = vunpack.c.l.b16 %v4734
        %v5279 = vunpack.c.l.b16 %v4735
        %v5280 = vunpack.c.l.b16 %v4736
        %v5281 = vunpack.c.l.b16 %v4737
        %v5282 = vunpack.c.l.b16 %v4738
        %v5283 = vunpack.c.l.b16 %v4739
        %v5284 = vunpack.c.l.b16 %v4740
        %v5285 = vunpack.c.l.b16 %v4741
        %v5286 = vunpack.c.l.b16 %v4742
        %v5287 = vunpack.c.l.b16 %v4743
        %v5288 = vunpack.c.l.b16 %v4744
        %v5289 = vunpack.c.l.b16 %v4745
        %v5290 = vunpack.c.l.b16 %v4746
        %v5291 = vunpack.c.l.b16 %v4747
        %v5292 = vunpack.c.l.b16 %v4748
        %v5293 = vunpack.c.l.b16 %v4749
        %v5294 = vunpack.c.l.b16 %v4750
        %v5295 = vunpack.c.l.b16 %v4751
        %v5296 = vunpack.c.l.b16 %v4752
        %v5297 = vunpack.c.l.b16 %v4753
        %v5298 = vunpack.c.l.b16 %v4754
        %v5299 = vunpack.c.l.b16 %v4755
        %v5300 = vunpack.c.l.b16 %v4756
        %v5301 = vunpack.c.l.b16 %v4757
        %v5302 = vunpack.c.l.b16 %v4758
        %v5303 = vunpack.c.l.b16 %v4759
        %v5304 = vunpack.c.l.b16 %v4760
        %v5305 = vunpack.c.l.b16 %v4761
        %v5306 = vunpack.c.l.b16 %v4762
        %v5307 = vunpack.c.l.b16 %v4763
        %v5308 = vunpack.c.l.b16 %v4764
        %v5309 = vunpack.c.l.b16 %v4765
        %v5310 = vunpack.c.l.b16 %v4766
        %v5311 = vunpack.c.l.b16 %v4767
        %v5312 = vunpack.c.l.b16 %v4768
        %v5313 = vunpack.c.l.b16 %v4769
        %v5314 = vpack.c.b16 %v5243, %v5242
        %v5315 = vpack.c.b16 %v5245, %v5244
        %v5316 = vpack.c.b16 %v5247, %v5246
        %v5317 = vpack.c.b16 %v5249, %v5248
        %v5318 = vpack.c.b16 %v5251, %v5250
        %v5319 = vpack.c.b16 %v5253, %v5252
        %v5320 = vpack.c.b16 %v5255, %v5254
        %v5321 = vpack.c.b16 %v5257, %v5256
        %v5322 = vpack.c.b16 %v5259, %v5258
        %v5323 = vpack.c.b16 %v5261, %v5260
        %v5324 = vpack.c.b16 %v5263, %v5262
        %v5325 = vpack.c.b16 %v5265, %v5264
        %v5326 = vpack.c.b16 %v5267, %v5266
        %v5327 = vpack.c.b16 %v5269, %v5268
        %v5328 = vpack.c.b16 %v5271, %v5270
        %v5329 = vpack.c.b16 %v5273, %v5272
        %v5330 = vpack.c.b16 %v5275, %v5274
        %v5331 = vpack.c.b16 %v5277, %v5276
        %v5332 = vpack.c.b16 %v5279, %v5278
        %v5333 = vpack.c.b16 %v5281, %v5280
        %v5334 = vpack.c.b16 %v5283, %v5282
        %v5335 = vpack.c.b16 %v5285, %v5284
        %v5336 = vpack.c.b16 %v5287, %v5286
        %v5337 = vpack.c.b16 %v5289, %v5288
        %v5338 = vpack.c.b16 %v5291, %v5290
        %v5339 = vpack.c.b16 %v5293, %v5292
        %v5340 = vpack.c.b16 %v5295, %v5294
        %v5341 = vpack.c.b16 %v5297, %v5296
        %v5342 = vpack.c.b16 %v5299, %v5298
        %v5343 = vpack.c.b16 %v5301, %v5300
        %v5344 = vpack.c.b16 %v5303, %v5302
        %v5345 = vpack.c.b16 %v5305, %v5304
        %v5346 = vpack.c.b16 %v5307, %v5306
        %v5347 = vpack.c.b16 %v5309, %v5308
        %v5348 = vpack.c.b16 %v5311, %v5310
        %v5349 = vpack.c.b16 %v5313, %v5312
        %v5387 = vsel %vm2496, %v5030, 0
        %v5390 = vsel %vm2496, %v5035, 0
        %v5393 = vsel %vm2496, %v5040, 0
        %v5396 = vsel %vm2496, %v5045, 0
        %v5399 = vsel %vm2496, %v5050, 0
        %v5402 = vsel %vm2496, %v5055, 0
        %v5405 = vsel %vm2496, %v5060, 0
        %v5408 = vsel %vm2496, %v5065, 0
        %v5411 = vsel %vm2496, %v5070, 0
        %v5414 = vsel %vm2496, %v5075, 0
        %v5417 = vsel %vm2496, %v5080, 0
        %v5420 = vsel %vm2496, %v5085, 0
        %v5423 = vsel %vm2496, %v5090, 0
        %v5426 = vsel %vm2496, %v5095, 0
        %v5429 = vsel %vm2496, %v5100, 0
        %v5432 = vsel %vm2496, %v5105, 0
        %5434 = vmatprep.subr.bf16.mxu0 0
        %5435 = vmatpush1.bf16.msra.mxu0 %v5321
        %5436 = vmatprep.subr.bf16.mxu0 0
        %5437 = vmatpush1.bf16.msra.mxu0 %v5320
        %5438 = vmatprep.subr.bf16.mxu0 0
        %5439 = vmatpush1.bf16.msra.mxu0 %v5319
        %5440 = vmatprep.subr.bf16.mxu0 0
        %5441 = vmatpush1.bf16.msra.mxu0 %v5318
        %5442 = vmatprep.subr.bf16.mxu0 0
        %5443 = vmatpush1.bf16.msra.mxu0 %v5317
        %5444 = vmatprep.subr.bf16.mxu0 0
        %5445 = vmatpush1.bf16.msra.mxu0 %v5316
        %5446 = vmatprep.subr.bf16.mxu0 0
        %5447 = vmatpush1.bf16.msra.mxu0 %v5315
        %5448 = vmatprep.subr.bf16.mxu0 0
        %5449 = vmatpush1.bf16.msra.mxu0 %v5314
        %5450 = vmatprep.subr.bf16.mxu0 0
        %5451 = vmatpush2.bf16.msra.mxu0 %v5329
        %5452 = vmatprep.subr.bf16.mxu0 0
        %5453 = vmatpush2.bf16.msra.mxu0 %v5328
        %5454 = vmatprep.subr.bf16.mxu0 0
        %5455 = vmatpush2.bf16.msra.mxu0 %v5327
        %5456 = vmatprep.subr.bf16.mxu0 0
        %5457 = vmatpush2.bf16.msra.mxu0 %v5326
        %5458 = vmatprep.subr.bf16.mxu0 0
        %5459 = vmatpush2.bf16.msra.mxu0 %v5325
        %5460 = vmatprep.subr.bf16.mxu0 0
        %5461 = vmatpush2.bf16.msra.mxu0 %v5324
        %5462 = vmatprep.subr.bf16.mxu0 0
        %5463 = vmatpush2.bf16.msra.mxu0 %v5323
        %5464 = vmatprep.subr.bf16.mxu0 0
        %5465 = vmatpush2.bf16.msra.mxu0 %v5322
        %5466 = vmatprep.mubr.bf16.mxu0 %v5027
        %5467 = vmatmul.mubr.bf16.gmra.mxu0 %v5026
        %v5468 = vpop.f32.mrf.mxu0
        %v5469 = vadd.f32 0.0, %v5468
        %v5470 = vpop.f32.mrf.mxu0
        %v5471 = vpop.f32.mrf.mxu0
        %v5472 = vadd.f32 0.0, %v5471
        %v5473 = vpop.f32.mrf.mxu0
        %5474 = vmatprep.mubr.bf16.mxu0 %v5032
        %5475 = vmatmul.mubr.bf16.gmra.mxu0 %v5031
        %v5476 = vpop.f32.mrf.mxu0
        %v5477 = vadd.f32 0.0, %v5476
        %v5478 = vpop.f32.mrf.mxu0
        %v5479 = vpop.f32.mrf.mxu0
        %v5480 = vadd.f32 0.0, %v5479
        %v5481 = vpop.f32.mrf.mxu0
        %5482 = vmatprep.mubr.bf16.mxu0 %v5037
        %5483 = vmatmul.mubr.bf16.gmra.mxu0 %v5036
        %v5484 = vpop.f32.mrf.mxu0
        %v5485 = vadd.f32 0.0, %v5484
        %v5486 = vpop.f32.mrf.mxu0
        %v5487 = vpop.f32.mrf.mxu0
        %v5488 = vadd.f32 0.0, %v5487
        %v5489 = vpop.f32.mrf.mxu0
        %5490 = vmatprep.mubr.bf16.mxu0 %v5042
        %5491 = vmatmul.mubr.bf16.gmra.mxu0 %v5041
        %v5492 = vpop.f32.mrf.mxu0
        %v5493 = vadd.f32 0.0, %v5492
        %v5494 = vpop.f32.mrf.mxu0
        %v5495 = vpop.f32.mrf.mxu0
        %v5496 = vadd.f32 0.0, %v5495
        %v5497 = vpop.f32.mrf.mxu0
        %5498 = vmatprep.mubr.bf16.mxu0 %v5047
        %5499 = vmatmul.mubr.bf16.gmra.mxu0 %v5046
        %v5500 = vpop.f32.mrf.mxu0
        %v5501 = vadd.f32 0.0, %v5500
        %v5502 = vpop.f32.mrf.mxu0
        %v5503 = vpop.f32.mrf.mxu0
        %v5504 = vadd.f32 0.0, %v5503
        %v5505 = vpop.f32.mrf.mxu0
        %5506 = vmatprep.mubr.bf16.mxu0 %v5052
        %5507 = vmatmul.mubr.bf16.gmra.mxu0 %v5051
        %v5508 = vpop.f32.mrf.mxu0
        %v5509 = vadd.f32 0.0, %v5508
        %v5510 = vpop.f32.mrf.mxu0
        %v5511 = vpop.f32.mrf.mxu0
        %v5512 = vadd.f32 0.0, %v5511
        %v5513 = vpop.f32.mrf.mxu0
        %5514 = vmatprep.mubr.bf16.mxu0 %v5057
        %5515 = vmatmul.mubr.bf16.gmra.mxu0 %v5056
        %v5516 = vpop.f32.mrf.mxu0
        %v5517 = vadd.f32 0.0, %v5516
        %v5518 = vpop.f32.mrf.mxu0
        %v5519 = vpop.f32.mrf.mxu0
        %v5520 = vadd.f32 0.0, %v5519
        %v5521 = vpop.f32.mrf.mxu0
        %5522 = vmatprep.mubr.bf16.mxu0 %v5062
        %5523 = vmatmul.mubr.bf16.gmra.mxu0 %v5061
        %v5524 = vpop.f32.mrf.mxu0
        %v5525 = vadd.f32 0.0, %v5524
        %v5526 = vpop.f32.mrf.mxu0
        %v5527 = vpop.f32.mrf.mxu0
        %v5528 = vadd.f32 0.0, %v5527
        %v5529 = vpop.f32.mrf.mxu0
        %5530 = vmatprep.mubr.bf16.mxu0 %v5067
        %5531 = vmatmul.mubr.bf16.gmra.mxu0 %v5066
        %v5532 = vpop.f32.mrf.mxu0
        %v5533 = vadd.f32 0.0, %v5532
        %v5534 = vpop.f32.mrf.mxu0
        %v5535 = vpop.f32.mrf.mxu0
        %v5536 = vadd.f32 0.0, %v5535
        %v5537 = vpop.f32.mrf.mxu0
        %5538 = vmatprep.mubr.bf16.mxu0 %v5072
        %5539 = vmatmul.mubr.bf16.gmra.mxu0 %v5071
        %v5540 = vpop.f32.mrf.mxu0
        %v5541 = vadd.f32 0.0, %v5540
        %v5542 = vpop.f32.mrf.mxu0
        %v5543 = vpop.f32.mrf.mxu0
        %v5544 = vadd.f32 0.0, %v5543
        %v5545 = vpop.f32.mrf.mxu0
        %5546 = vmatprep.mubr.bf16.mxu0 %v5077
        %5547 = vmatmul.mubr.bf16.gmra.mxu0 %v5076
        %v5548 = vpop.f32.mrf.mxu0
        %v5549 = vadd.f32 0.0, %v5548
        %v5550 = vpop.f32.mrf.mxu0
        %v5551 = vpop.f32.mrf.mxu0
        %v5552 = vadd.f32 0.0, %v5551
        %v5553 = vpop.f32.mrf.mxu0
        %5554 = vmatprep.mubr.bf16.mxu0 %v5082
        %5555 = vmatmul.mubr.bf16.gmra.mxu0 %v5081
        %v5556 = vpop.f32.mrf.mxu0
        %v5557 = vadd.f32 0.0, %v5556
        %v5558 = vpop.f32.mrf.mxu0
        %v5559 = vpop.f32.mrf.mxu0
        %v5560 = vadd.f32 0.0, %v5559
        %v5561 = vpop.f32.mrf.mxu0
        %5562 = vmatprep.mubr.bf16.mxu0 %v5087
        %5563 = vmatmul.mubr.bf16.gmra.mxu0 %v5086
        %v5564 = vpop.f32.mrf.mxu0
        %v5565 = vadd.f32 0.0, %v5564
        %v5566 = vpop.f32.mrf.mxu0
        %v5567 = vpop.f32.mrf.mxu0
        %v5568 = vadd.f32 0.0, %v5567
        %v5569 = vpop.f32.mrf.mxu0
        %5570 = vmatprep.mubr.bf16.mxu0 %v5092
        %5571 = vmatmul.mubr.bf16.gmra.mxu0 %v5091
        %v5572 = vpop.f32.mrf.mxu0
        %v5573 = vadd.f32 0.0, %v5572
        %v5574 = vpop.f32.mrf.mxu0
        %v5575 = vpop.f32.mrf.mxu0
        %v5576 = vadd.f32 0.0, %v5575
        %v5577 = vpop.f32.mrf.mxu0
        %5578 = vmatprep.mubr.bf16.mxu0 %v5097
        %5579 = vmatmul.mubr.bf16.gmra.mxu0 %v5096
        %v5580 = vpop.f32.mrf.mxu0
        %v5581 = vadd.f32 0.0, %v5580
        %v5582 = vpop.f32.mrf.mxu0
        %v5583 = vpop.f32.mrf.mxu0
        %v5584 = vadd.f32 0.0, %v5583
        %v5585 = vpop.f32.mrf.mxu0
        %5586 = vmatprep.mubr.bf16.mxu0 %v5102
        %5587 = vmatmul.mubr.bf16.gmra.mxu0 %v5101
        %v5588 = vpop.f32.mrf.mxu0
        %v5589 = vadd.f32 0.0, %v5588
        %v5590 = vpop.f32.mrf.mxu0
        %v5591 = vpop.f32.mrf.mxu0
        %v5592 = vadd.f32 0.0, %v5591
        %v5593 = vpop.f32.mrf.mxu0
        %5594 = vdwg.mxu0
        %5595 = vmatprep.subr.bf16.mxu0 0
        %5596 = vmatpush1.bf16.msra.mxu0 %v5337
        %5597 = vmatprep.subr.bf16.mxu0 0
        %5598 = vmatpush1.bf16.msra.mxu0 %v5336
        %5599 = vmatprep.subr.bf16.mxu0 0
        %5600 = vmatpush1.bf16.msra.mxu0 %v5335
        %5601 = vmatprep.subr.bf16.mxu0 0
        %5602 = vmatpush1.bf16.msra.mxu0 %v5334
        %5603 = vmatprep.subr.bf16.mxu0 0
        %5604 = vmatpush1.bf16.msra.mxu0 %v5333
        %5605 = vmatprep.subr.bf16.mxu0 0
        %5606 = vmatpush1.bf16.msra.mxu0 %v5332
        %5607 = vmatprep.subr.bf16.mxu0 0
        %5608 = vmatpush1.bf16.msra.mxu0 %v5331
        %5609 = vmatprep.subr.bf16.mxu0 0
        %5610 = vmatpush1.bf16.msra.mxu0 %v5330
        %5611 = vmatprep.subr.bf16.mxu0 0
        %5612 = vmatpush2.bf16.msra.mxu0 %v5345
        %5613 = vmatprep.subr.bf16.mxu0 0
        %5614 = vmatpush2.bf16.msra.mxu0 %v5344
        %5615 = vmatprep.subr.bf16.mxu0 0
        %5616 = vmatpush2.bf16.msra.mxu0 %v5343
        %5617 = vmatprep.subr.bf16.mxu0 0
        %5618 = vmatpush2.bf16.msra.mxu0 %v5342
        %5619 = vmatprep.subr.bf16.mxu0 0
        %5620 = vmatpush2.bf16.msra.mxu0 %v5341
        %5621 = vmatprep.subr.bf16.mxu0 0
        %5622 = vmatpush2.bf16.msra.mxu0 %v5340
        %5623 = vmatprep.subr.bf16.mxu0 0
        %5624 = vmatpush2.bf16.msra.mxu0 %v5339
        %5625 = vmatprep.subr.bf16.mxu0 0
        %5626 = vmatpush2.bf16.msra.mxu0 %v5338
        %5627 = vmatprep.mubr.bf16.mxu0 %v5029
        %5628 = vmatmul.mubr.bf16.gmra.mxu0 %v5028
        %v5629 = vpop.f32.mrf.mxu0
        %v5630 = vadd.f32 %v5469, %v5629
        %v5631 = vpop.f32.mrf.mxu0
        %v5632 = vpop.f32.mrf.mxu0
        %v5633 = vadd.f32 %v5472, %v5632
        %v5634 = vpop.f32.mrf.mxu0
        %5635 = vmatprep.mubr.bf16.mxu0 %v5034
        %5636 = vmatmul.mubr.bf16.gmra.mxu0 %v5033
        %v5637 = vpop.f32.mrf.mxu0
        %v5638 = vadd.f32 %v5477, %v5637
        %v5639 = vpop.f32.mrf.mxu0
        %v5640 = vpop.f32.mrf.mxu0
        %v5641 = vadd.f32 %v5480, %v5640
        %v5642 = vpop.f32.mrf.mxu0
        %5643 = vmatprep.mubr.bf16.mxu0 %v5039
        %5644 = vmatmul.mubr.bf16.gmra.mxu0 %v5038
        %v5645 = vpop.f32.mrf.mxu0
        %v5646 = vadd.f32 %v5485, %v5645
        %v5647 = vpop.f32.mrf.mxu0
        %v5648 = vpop.f32.mrf.mxu0
        %v5649 = vadd.f32 %v5488, %v5648
        %v5650 = vpop.f32.mrf.mxu0
        %5651 = vmatprep.mubr.bf16.mxu0 %v5044
        %5652 = vmatmul.mubr.bf16.gmra.mxu0 %v5043
        %v5653 = vpop.f32.mrf.mxu0
        %v5654 = vadd.f32 %v5493, %v5653
        %v5655 = vpop.f32.mrf.mxu0
        %v5656 = vpop.f32.mrf.mxu0
        %v5657 = vadd.f32 %v5496, %v5656
        %v5658 = vpop.f32.mrf.mxu0
        %5659 = vmatprep.mubr.bf16.mxu0 %v5049
        %5660 = vmatmul.mubr.bf16.gmra.mxu0 %v5048
        %v5661 = vpop.f32.mrf.mxu0
        %v5662 = vadd.f32 %v5501, %v5661
        %v5663 = vpop.f32.mrf.mxu0
        %v5664 = vpop.f32.mrf.mxu0
        %v5665 = vadd.f32 %v5504, %v5664
        %v5666 = vpop.f32.mrf.mxu0
        %5667 = vmatprep.mubr.bf16.mxu0 %v5054
        %5668 = vmatmul.mubr.bf16.gmra.mxu0 %v5053
        %v5669 = vpop.f32.mrf.mxu0
        %v5670 = vadd.f32 %v5509, %v5669
        %v5671 = vpop.f32.mrf.mxu0
        %v5672 = vpop.f32.mrf.mxu0
        %v5673 = vadd.f32 %v5512, %v5672
        %v5674 = vpop.f32.mrf.mxu0
        %5675 = vmatprep.mubr.bf16.mxu0 %v5059
        %5676 = vmatmul.mubr.bf16.gmra.mxu0 %v5058
        %v5677 = vpop.f32.mrf.mxu0
        %v5678 = vadd.f32 %v5517, %v5677
        %v5679 = vpop.f32.mrf.mxu0
        %v5680 = vpop.f32.mrf.mxu0
        %v5681 = vadd.f32 %v5520, %v5680
        %v5682 = vpop.f32.mrf.mxu0
        %5683 = vmatprep.mubr.bf16.mxu0 %v5064
        %5684 = vmatmul.mubr.bf16.gmra.mxu0 %v5063
        %v5685 = vpop.f32.mrf.mxu0
        %v5686 = vadd.f32 %v5525, %v5685
        %v5687 = vpop.f32.mrf.mxu0
        %v5688 = vpop.f32.mrf.mxu0
        %v5689 = vadd.f32 %v5528, %v5688
        %v5690 = vpop.f32.mrf.mxu0
        %5691 = vmatprep.mubr.bf16.mxu0 %v5069
        %5692 = vmatmul.mubr.bf16.gmra.mxu0 %v5068
        %v5693 = vpop.f32.mrf.mxu0
        %v5694 = vadd.f32 %v5533, %v5693
        %v5695 = vpop.f32.mrf.mxu0
        %v5696 = vpop.f32.mrf.mxu0
        %v5697 = vadd.f32 %v5536, %v5696
        %v5698 = vpop.f32.mrf.mxu0
        %5699 = vmatprep.mubr.bf16.mxu0 %v5074
        %5700 = vmatmul.mubr.bf16.gmra.mxu0 %v5073
        %v5701 = vpop.f32.mrf.mxu0
        %v5702 = vadd.f32 %v5541, %v5701
        %v5703 = vpop.f32.mrf.mxu0
        %v5704 = vpop.f32.mrf.mxu0
        %v5705 = vadd.f32 %v5544, %v5704
        %v5706 = vpop.f32.mrf.mxu0
        %5707 = vmatprep.mubr.bf16.mxu0 %v5079
        %5708 = vmatmul.mubr.bf16.gmra.mxu0 %v5078
        %v5709 = vpop.f32.mrf.mxu0
        %v5710 = vadd.f32 %v5549, %v5709
        %v5711 = vpop.f32.mrf.mxu0
        %v5712 = vpop.f32.mrf.mxu0
        %v5713 = vadd.f32 %v5552, %v5712
        %v5714 = vpop.f32.mrf.mxu0
        %5715 = vmatprep.mubr.bf16.mxu0 %v5084
        %5716 = vmatmul.mubr.bf16.gmra.mxu0 %v5083
        %v5717 = vpop.f32.mrf.mxu0
        %v5718 = vadd.f32 %v5557, %v5717
        %v5719 = vpop.f32.mrf.mxu0
        %v5720 = vpop.f32.mrf.mxu0
        %v5721 = vadd.f32 %v5560, %v5720
        %v5722 = vpop.f32.mrf.mxu0
        %5723 = vmatprep.mubr.bf16.mxu0 %v5089
        %5724 = vmatmul.mubr.bf16.gmra.mxu0 %v5088
        %v5725 = vpop.f32.mrf.mxu0
        %v5726 = vadd.f32 %v5565, %v5725
        %v5727 = vpop.f32.mrf.mxu0
        %v5728 = vpop.f32.mrf.mxu0
        %v5729 = vadd.f32 %v5568, %v5728
        %v5730 = vpop.f32.mrf.mxu0
        %5731 = vmatprep.mubr.bf16.mxu0 %v5094
        %5732 = vmatmul.mubr.bf16.gmra.mxu0 %v5093
        %v5733 = vpop.f32.mrf.mxu0
        %v5734 = vadd.f32 %v5573, %v5733
        %v5735 = vpop.f32.mrf.mxu0
        %v5736 = vpop.f32.mrf.mxu0
        %v5737 = vadd.f32 %v5576, %v5736
        %v5738 = vpop.f32.mrf.mxu0
        %5739 = vmatprep.mubr.bf16.mxu0 %v5099
        %5740 = vmatmul.mubr.bf16.gmra.mxu0 %v5098
        %v5741 = vpop.f32.mrf.mxu0
        %v5742 = vadd.f32 %v5581, %v5741
        %v5743 = vpop.f32.mrf.mxu0
        %v5744 = vpop.f32.mrf.mxu0
        %v5745 = vadd.f32 %v5584, %v5744
        %v5746 = vpop.f32.mrf.mxu0
        %5747 = vmatprep.mubr.bf16.mxu0 %v5104
        %5748 = vmatmul.mubr.bf16.gmra.mxu0 %v5103
        %v5749 = vpop.f32.mrf.mxu0
        %v5750 = vadd.f32 %v5589, %v5749
        %v5751 = vpop.f32.mrf.mxu0
        %v5752 = vpop.f32.mrf.mxu0
        %v5753 = vadd.f32 %v5592, %v5752
        %v5754 = vpop.f32.mrf.mxu0
        %5755 = vdwg.mxu0
        %5756 = vmatprep.subr.bf16.mxu0 0
        %5757 = vmatpush1.bf16.msra.mxu0 0
        %5758 = vmatprep.subr.bf16.mxu0 0
        %5759 = vmatpush1.bf16.msra.mxu0 0
        %5760 = vmatprep.subr.bf16.mxu0 0
        %5761 = vmatpush1.bf16.msra.mxu0 0
        %5762 = vmatprep.subr.bf16.mxu0 0
        %5763 = vmatpush1.bf16.msra.mxu0 0
        %5764 = vmatprep.subr.bf16.mxu0 0
        %5765 = vmatpush1.bf16.msra.mxu0 %v5349
        %5766 = vmatprep.subr.bf16.mxu0 0
        %5767 = vmatpush1.bf16.msra.mxu0 %v5348
        %5768 = vmatprep.subr.bf16.mxu0 0
        %5769 = vmatpush1.bf16.msra.mxu0 %v5347
        %5770 = vmatprep.subr.bf16.mxu0 0
        %5771 = vmatpush1.bf16.msra.mxu0 %v5346
        %5772 = vmatprep.subr.bf16.mxu0 0
        %5773 = vmatpush2.bf16.msra.mxu0 0
        %5774 = vmatprep.subr.bf16.mxu0 0
        %5775 = vmatpush2.bf16.msra.mxu0 0
        %5776 = vmatprep.subr.bf16.mxu0 0
        %5777 = vmatpush2.bf16.msra.mxu0 0
        %5778 = vmatprep.subr.bf16.mxu0 0
        %5779 = vmatpush2.bf16.msra.mxu0 0
        %5780 = vmatprep.subr.bf16.mxu0 0
        %5781 = vmatpush2.bf16.msra.mxu0 0
        %5782 = vmatprep.subr.bf16.mxu0 0
        %5783 = vmatpush2.bf16.msra.mxu0 0
        %5784 = vmatprep.subr.bf16.mxu0 0
        %5785 = vmatpush2.bf16.msra.mxu0 0
        %5786 = vmatprep.subr.bf16.mxu0 0
        %5787 = vmatpush2.bf16.msra.mxu0 0
        %5788 = vmatprep.mubr.bf16.mxu0 0
        %5789 = vmatmul.mubr.bf16.gmra.mxu0 %v5387
        %v5790 = vpop.f32.mrf.mxu0
        %v5791 = vadd.f32 %v5630, %v5790
        %v5792 = vpop.f32.mrf.mxu0
        %v5793 = vpop.f32.mrf.mxu0
        %v5794 = vadd.f32 %v5633, %v5793
        %v5795 = vpop.f32.mrf.mxu0
        %5796 = vmatprep.mubr.bf16.mxu0 0
        %5797 = vmatmul.mubr.bf16.gmra.mxu0 %v5390
        %v5798 = vpop.f32.mrf.mxu0
        %v5799 = vadd.f32 %v5638, %v5798
        %v5800 = vpop.f32.mrf.mxu0
        %v5801 = vpop.f32.mrf.mxu0
        %v5802 = vadd.f32 %v5641, %v5801
        %v5803 = vpop.f32.mrf.mxu0
        %5804 = vmatprep.mubr.bf16.mxu0 0
        %5805 = vmatmul.mubr.bf16.gmra.mxu0 %v5393
        %v5806 = vpop.f32.mrf.mxu0
        %v5807 = vadd.f32 %v5646, %v5806
        %v5808 = vpop.f32.mrf.mxu0
        %v5809 = vpop.f32.mrf.mxu0
        %v5810 = vadd.f32 %v5649, %v5809
        %v5811 = vpop.f32.mrf.mxu0
        %5812 = vmatprep.mubr.bf16.mxu0 0
        %5813 = vmatmul.mubr.bf16.gmra.mxu0 %v5396
        %v5814 = vpop.f32.mrf.mxu0
        %v5815 = vadd.f32 %v5654, %v5814
        %v5816 = vpop.f32.mrf.mxu0
        %v5817 = vpop.f32.mrf.mxu0
        %v5818 = vadd.f32 %v5657, %v5817
        %v5819 = vpop.f32.mrf.mxu0
        %5820 = vmatprep.mubr.bf16.mxu0 0
        %5821 = vmatmul.mubr.bf16.gmra.mxu0 %v5399
        %v5822 = vpop.f32.mrf.mxu0
        %v5823 = vadd.f32 %v5662, %v5822
        %v5824 = vpop.f32.mrf.mxu0
        %v5825 = vpop.f32.mrf.mxu0
        %v5826 = vadd.f32 %v5665, %v5825
        %v5827 = vpop.f32.mrf.mxu0
        %5828 = vmatprep.mubr.bf16.mxu0 0
        %5829 = vmatmul.mubr.bf16.gmra.mxu0 %v5402
        %v5830 = vpop.f32.mrf.mxu0
        %v5831 = vadd.f32 %v5670, %v5830
        %v5832 = vpop.f32.mrf.mxu0
        %v5833 = vpop.f32.mrf.mxu0
        %v5834 = vadd.f32 %v5673, %v5833
        %v5835 = vpop.f32.mrf.mxu0
        %5836 = vmatprep.mubr.bf16.mxu0 0
        %5837 = vmatmul.mubr.bf16.gmra.mxu0 %v5405
        %v5838 = vpop.f32.mrf.mxu0
        %v5839 = vadd.f32 %v5678, %v5838
        %v5840 = vpop.f32.mrf.mxu0
        %v5841 = vpop.f32.mrf.mxu0
        %v5842 = vadd.f32 %v5681, %v5841
        %v5843 = vpop.f32.mrf.mxu0
        %5844 = vmatprep.mubr.bf16.mxu0 0
        %5845 = vmatmul.mubr.bf16.gmra.mxu0 %v5408
        %v5846 = vpop.f32.mrf.mxu0
        %v5847 = vadd.f32 %v5686, %v5846
        %v5848 = vpop.f32.mrf.mxu0
        %v5849 = vpop.f32.mrf.mxu0
        %v5850 = vadd.f32 %v5689, %v5849
        %v5851 = vpop.f32.mrf.mxu0
        %5852 = vmatprep.mubr.bf16.mxu0 0
        %5853 = vmatmul.mubr.bf16.gmra.mxu0 %v5411
        %v5854 = vpop.f32.mrf.mxu0
        %v5855 = vadd.f32 %v5694, %v5854
        %v5856 = vpop.f32.mrf.mxu0
        %v5857 = vpop.f32.mrf.mxu0
        %v5858 = vadd.f32 %v5697, %v5857
        %v5859 = vpop.f32.mrf.mxu0
        %5860 = vmatprep.mubr.bf16.mxu0 0
        %5861 = vmatmul.mubr.bf16.gmra.mxu0 %v5414
        %v5862 = vpop.f32.mrf.mxu0
        %v5863 = vadd.f32 %v5702, %v5862
        %v5864 = vpop.f32.mrf.mxu0
        %v5865 = vpop.f32.mrf.mxu0
        %v5866 = vadd.f32 %v5705, %v5865
        %v5867 = vpop.f32.mrf.mxu0
        %5868 = vmatprep.mubr.bf16.mxu0 0
        %5869 = vmatmul.mubr.bf16.gmra.mxu0 %v5417
        %v5870 = vpop.f32.mrf.mxu0
        %v5871 = vadd.f32 %v5710, %v5870
        %v5872 = vpop.f32.mrf.mxu0
        %v5873 = vpop.f32.mrf.mxu0
        %v5874 = vadd.f32 %v5713, %v5873
        %v5875 = vpop.f32.mrf.mxu0
        %5876 = vmatprep.mubr.bf16.mxu0 0
        %5877 = vmatmul.mubr.bf16.gmra.mxu0 %v5420
        %v5878 = vpop.f32.mrf.mxu0
        %v5879 = vadd.f32 %v5718, %v5878
        %v5880 = vpop.f32.mrf.mxu0
        %v5881 = vpop.f32.mrf.mxu0
        %v5882 = vadd.f32 %v5721, %v5881
        %v5883 = vpop.f32.mrf.mxu0
        %5884 = vmatprep.mubr.bf16.mxu0 0
        %5885 = vmatmul.mubr.bf16.gmra.mxu0 %v5423
        %v5886 = vpop.f32.mrf.mxu0
        %v5887 = vadd.f32 %v5726, %v5886
        %v5888 = vpop.f32.mrf.mxu0
        %v5889 = vpop.f32.mrf.mxu0
        %v5890 = vadd.f32 %v5729, %v5889
        %v5891 = vpop.f32.mrf.mxu0
        %5892 = vmatprep.mubr.bf16.mxu0 0
        %5893 = vmatmul.mubr.bf16.gmra.mxu0 %v5426
        %v5894 = vpop.f32.mrf.mxu0
        %v5895 = vadd.f32 %v5734, %v5894
        %v5896 = vpop.f32.mrf.mxu0
        %v5897 = vpop.f32.mrf.mxu0
        %v5898 = vadd.f32 %v5737, %v5897
        %v5899 = vpop.f32.mrf.mxu0
        %5900 = vmatprep.mubr.bf16.mxu0 0
        %5901 = vmatmul.mubr.bf16.gmra.mxu0 %v5429
        %v5902 = vpop.f32.mrf.mxu0
        %v5903 = vadd.f32 %v5742, %v5902
        %v5904 = vpop.f32.mrf.mxu0
        %v5905 = vpop.f32.mrf.mxu0
        %v5906 = vadd.f32 %v5745, %v5905
        %v5907 = vpop.f32.mrf.mxu0
        %5908 = vmatprep.mubr.bf16.mxu0 0
        %5909 = vmatmul.mubr.bf16.gmra.mxu0 %v5432
        %v5910 = vpop.f32.mrf.mxu0
        %v5911 = vadd.f32 %v5750, %v5910
        %v5912 = vpop.f32.mrf.mxu0
        %v5913 = vpop.f32.mrf.mxu0
        %v5914 = vadd.f32 %v5753, %v5913
        %v5915 = vpop.f32.mrf.mxu0
        %5916 = vdwg.mxu0
        %v5917 = vld [vmem:[%s5] sm:$0x1]
        %v5919 = vlaneseq
        %v5920 = vshrl.u32 %v5919, 7
        %v5921 = vsub.s32 0, %v5920
        %v5922 = vrot.slane %v5917, %v5921
        %v5924 = vmul.f32 %v5791, %v5922
        %v5925 = vmul.f32 %v5794, %v5922
        %v5926 = vmul.f32 %v5799, %v5922
        %v5927 = vmul.f32 %v5802, %v5922
        %v5928 = vmul.f32 %v5807, %v5922
        %v5929 = vmul.f32 %v5810, %v5922
        %v5930 = vmul.f32 %v5815, %v5922
        %v5931 = vmul.f32 %v5818, %v5922
        %v5932 = vmul.f32 %v5823, %v5922
        %v5933 = vmul.f32 %v5826, %v5922
        %v5934 = vmul.f32 %v5831, %v5922
        %v5935 = vmul.f32 %v5834, %v5922
        %v5936 = vmul.f32 %v5839, %v5922
        %v5937 = vmul.f32 %v5842, %v5922
        %v5938 = vmul.f32 %v5847, %v5922
        %v5939 = vmul.f32 %v5850, %v5922
        %v5940 = vmul.f32 %v5855, %v5922
        %v5941 = vmul.f32 %v5858, %v5922
        %v5942 = vmul.f32 %v5863, %v5922
        %v5943 = vmul.f32 %v5866, %v5922
        %v5944 = vmul.f32 %v5871, %v5922
        %v5945 = vmul.f32 %v5874, %v5922
        %v5946 = vmul.f32 %v5879, %v5922
        %v5947 = vmul.f32 %v5882, %v5922
        %v5948 = vmul.f32 %v5887, %v5922
        %v5949 = vmul.f32 %v5890, %v5922
        %v5950 = vmul.f32 %v5895, %v5922
        %v5951 = vmul.f32 %v5898, %v5922
        %v5952 = vmul.f32 %v5903, %v5922
        %v5953 = vmul.f32 %v5906, %v5922
        %v5954 = vmul.f32 %v5911, %v5922
        %v5955 = vmul.f32 %v5914, %v5922
        %v5956 = vld [vmem:[%s6] sm:$0x1]
        %v5958 = vlaneseq
        %v5959 = vshrl.u32 %v5958, 7
        %v5960 = vsub.s32 0, %v5959
        %v5961 = vrot.slane %v5956, %v5960
        %v5963 = vadd.f32 %v5924, %v5961
        %v5964 = vadd.f32 %v5925, %v5961
        %v5965 = vadd.f32 %v5926, %v5961
        %v5966 = vadd.f32 %v5927, %v5961
        %v5967 = vadd.f32 %v5928, %v5961
        %v5968 = vadd.f32 %v5929, %v5961
        %v5969 = vadd.f32 %v5930, %v5961
        %v5970 = vadd.f32 %v5931, %v5961
        %v5971 = vadd.f32 %v5932, %v5961
        %v5972 = vadd.f32 %v5933, %v5961
        %v5973 = vadd.f32 %v5934, %v5961
        %v5974 = vadd.f32 %v5935, %v5961
        %v5975 = vadd.f32 %v5936, %v5961
        %v5976 = vadd.f32 %v5937, %v5961
        %v5977 = vadd.f32 %v5938, %v5961
        %v5978 = vadd.f32 %v5939, %v5961
        %v5979 = vadd.f32 %v5940, %v5961
        %v5980 = vadd.f32 %v5941, %v5961
        %v5981 = vadd.f32 %v5942, %v5961
        %v5982 = vadd.f32 %v5943, %v5961
        %v5983 = vadd.f32 %v5944, %v5961
        %v5984 = vadd.f32 %v5945, %v5961
        %v5985 = vadd.f32 %v5946, %v5961
        %v5986 = vadd.f32 %v5947, %v5961
        %v5987 = vadd.f32 %v5948, %v5961
        %v5988 = vadd.f32 %v5949, %v5961
        %v5989 = vadd.f32 %v5950, %v5961
        %v5990 = vadd.f32 %v5951, %v5961
        %v5991 = vadd.f32 %v5952, %v5961
        %v5992 = vadd.f32 %v5953, %v5961
        %v5993 = vadd.f32 %v5954, %v5961
        %v5994 = vadd.f32 %v5955, %v5961
        %v5995 = vadd.f32 %v5963, %v603
        %v5996 = vadd.f32 %v5964, %v605
        %v5997 = vadd.f32 %v5965, %v608
        %v5998 = vadd.f32 %v5966, %v610
        %v5999 = vadd.f32 %v5967, %v613
        %v6000 = vadd.f32 %v5968, %v615
        %v6001 = vadd.f32 %v5969, %v618
        %v6002 = vadd.f32 %v5970, %v620
        %v6003 = vadd.f32 %v5971, %v623
        %v6004 = vadd.f32 %v5972, %v625
        %v6005 = vadd.f32 %v5973, %v628
        %v6006 = vadd.f32 %v5974, %v630
        %v6007 = vadd.f32 %v5975, %v633
        %v6008 = vadd.f32 %v5976, %v635
        %v6009 = vadd.f32 %v5977, %v638
        %v6010 = vadd.f32 %v5978, %v640
        %v6011 = vadd.f32 %v5979, %v643
        %v6012 = vadd.f32 %v5980, %v645
        %v6013 = vadd.f32 %v5981, %v648
        %v6014 = vadd.f32 %v5982, %v650
        %v6015 = vadd.f32 %v5983, %v653
        %v6016 = vadd.f32 %v5984, %v655
        %v6017 = vadd.f32 %v5985, %v658
        %v6018 = vadd.f32 %v5986, %v660
        %v6019 = vadd.f32 %v5987, %v663
        %v6020 = vadd.f32 %v5988, %v665
        %v6021 = vadd.f32 %v5989, %v668
        %v6022 = vadd.f32 %v5990, %v670
        %v6023 = vadd.f32 %v5991, %v673
        %v6024 = vadd.f32 %v5992, %v675
        %v6025 = vadd.f32 %v5993, %v1345
        %v6026 = vadd.f32 %v5994, %v1347
        %v6027 = vmax.f32 %v5995, 0.0
        %v6028 = vmax.f32 %v5996, 0.0
        %v6029 = vmax.f32 %v5997, 0.0
        %v6030 = vmax.f32 %v5998, 0.0
        %v6031 = vmax.f32 %v5999, 0.0
        %v6032 = vmax.f32 %v6000, 0.0
        %v6033 = vmax.f32 %v6001, 0.0
        %v6034 = vmax.f32 %v6002, 0.0
        %v6035 = vmax.f32 %v6003, 0.0
        %v6036 = vmax.f32 %v6004, 0.0
        %v6037 = vmax.f32 %v6005, 0.0
        %v6038 = vmax.f32 %v6006, 0.0
        %v6039 = vmax.f32 %v6007, 0.0
        %v6040 = vmax.f32 %v6008, 0.0
        %v6041 = vmax.f32 %v6009, 0.0
        %v6042 = vmax.f32 %v6010, 0.0
        %v6043 = vmax.f32 %v6011, 0.0
        %v6044 = vmax.f32 %v6012, 0.0
        %v6045 = vmax.f32 %v6013, 0.0
        %v6046 = vmax.f32 %v6014, 0.0
        %v6047 = vmax.f32 %v6015, 0.0
        %v6048 = vmax.f32 %v6016, 0.0
        %v6049 = vmax.f32 %v6017, 0.0
        %v6050 = vmax.f32 %v6018, 0.0
        %v6051 = vmax.f32 %v6019, 0.0
        %v6052 = vmax.f32 %v6020, 0.0
        %v6053 = vmax.f32 %v6021, 0.0
        %v6054 = vmax.f32 %v6022, 0.0
        %v6055 = vmax.f32 %v6023, 0.0
        %v6056 = vmax.f32 %v6024, 0.0
        %v6057 = vmax.f32 %v6025, 0.0
        %v6058 = vmax.f32 %v6026, 0.0
        %6059 = vst.msk [vmem:[%s271] sm:$0xff] %vm2496, %v6027
        %6060 = vst.msk [vmem:[%s271 + $0x8] sm:$0xff] %vm2496, %v6028
        %6061 = vst.msk [vmem:[%s271 + $0x10] sm:$0xff] %vm2496, %v6029
        %6062 = vst.msk [vmem:[%s271 + $0x18] sm:$0xff] %vm2496, %v6030
        %6063 = vst.msk [vmem:[%s271 + $0x20] sm:$0xff] %vm2496, %v6031
        %6064 = vst.msk [vmem:[%s271 + $0x28] sm:$0xff] %vm2496, %v6032
        %6065 = vst.msk [vmem:[%s271 + $0x30] sm:$0xff] %vm2496, %v6033
        %6066 = vst.msk [vmem:[%s271 + $0x38] sm:$0xff] %vm2496, %v6034
        %6067 = vst.msk [vmem:[%s271 + $0x40] sm:$0xff] %vm2496, %v6035
        %6068 = vst.msk [vmem:[%s271 + $0x48] sm:$0xff] %vm2496, %v6036
        %6069 = vst.msk [vmem:[%s271 + $0x50] sm:$0xff] %vm2496, %v6037
        %6070 = vst.msk [vmem:[%s271 + $0x58] sm:$0xff] %vm2496, %v6038
        %6071 = vst.msk [vmem:[%s271 + $0x60] sm:$0xff] %vm2496, %v6039
        %6072 = vst.msk [vmem:[%s271 + $0x68] sm:$0xff] %vm2496, %v6040
        %6073 = vst.msk [vmem:[%s271 + $0x70] sm:$0xff] %vm2496, %v6041
        %6074 = vst.msk [vmem:[%s271 + $0x78] sm:$0xff] %vm2496, %v6042
        %6075 = vst.msk [vmem:[%s271 + $0x80] sm:$0xff] %vm2496, %v6043
        %6076 = vst.msk [vmem:[%s271 + $0x88] sm:$0xff] %vm2496, %v6044
        %6077 = vst.msk [vmem:[%s271 + $0x90] sm:$0xff] %vm2496, %v6045
        %6078 = vst.msk [vmem:[%s271 + $0x98] sm:$0xff] %vm2496, %v6046
        %6079 = vst.msk [vmem:[%s271 + $0xa0] sm:$0xff] %vm2496, %v6047
        %6080 = vst.msk [vmem:[%s271 + $0xa8] sm:$0xff] %vm2496, %v6048
        %6081 = vst.msk [vmem:[%s271 + $0xb0] sm:$0xff] %vm2496, %v6049
        %6082 = vst.msk [vmem:[%s271 + $0xb8] sm:$0xff] %vm2496, %v6050
        %6083 = vst.msk [vmem:[%s271 + $0xc0] sm:$0xff] %vm2496, %v6051
        %6084 = vst.msk [vmem:[%s271 + $0xc8] sm:$0xff] %vm2496, %v6052
        %6085 = vst.msk [vmem:[%s271 + $0xd0] sm:$0xff] %vm2496, %v6053
        %6086 = vst.msk [vmem:[%s271 + $0xd8] sm:$0xff] %vm2496, %v6054
        %6087 = vst.msk [vmem:[%s271 + $0xe0] sm:$0xff] %vm2496, %v6055
        %6088 = vst.msk [vmem:[%s271 + $0xe8] sm:$0xff] %vm2496, %v6056
        %6089 = vst.msk [vmem:[%s271 + $0xf0] sm:$0xff] %vm2496, %v6057
        %6090 = vst.msk [vmem:[%s271 + $0xf8] sm:$0xff] %vm2496, %v6058
        %s6091 = sand.u32 %s181, 1
        %s6092 = scalar_lea.sflag [#allocation5], %s6091
        %s6093 = sand.u32 %s181, 1
        %s6094 = smul.addr %s6093, 256
        %s6095 = scalar_lea.vmem [#allocation4], %s6094
        // Predicated region
        $region49: #{basic_block_forward.1} parent=47 // pred_check
          %p6096 = pneg %p191
        $region50: #{basic_block_forward.1} parent=47 // pred_check_branch
          %6098 = sbr.rel (%p6096) target = $region52
        $region51: #{basic_block_forward.1} parent=47 // pred_region
          %s6100 = ssub.s32 4096, 4096
          %6101 = vsyncadd %s6092, %s6100
          %s6102 = smul.addr %s21, 32
          %s6103 = smul.addr %s6102, 128
          %s6104 = scalar_lea.hbm %s7, %s6103
          %s6105 = sshll.u32 %s6095, 4
          %s6106 = int_to_ptr.vmem [resolvable:$true] %s6105
          %6111 = dma.vmem_to_hbm [thread:$0]  %s6106, 4096, %s6104, %s6092, 128, 128, 8
        $region52: #{basic_block_forward.1} parent=47 // pred_fallthru
          _
      $region48: #{basic_block_forward.1} parent=5 // pred_fallthru
        _
      %p6112 = scmp.le.s32.totalorder 2, %s16
      // Predicated region
      $region53: #{basic_block_forward.1} parent=5 // pred_check
        %p6113 = pneg %p6112
      $region54: #{basic_block_forward.1} parent=5 // pred_check_branch
        %6115 = sbr.rel (%p6113) target = $region56
      $region55: #{basic_block_forward.1} parent=5 // pred_region
        %s6116 = ssub.s32 %s16, 2
        // Predicated region
        $region57: #{basic_block_forward.1} parent=55 // pred_check
          %p6117 = pneg %p197
        $region58: #{basic_block_forward.1} parent=55 // pred_check_branch
          %6119 = sbr.rel (%p6117) target = $region60
        $region59: #{basic_block_forward.1} parent=55 // pred_region
          %s6120 = sand.u32 %s182, 1
          %s6121 = scalar_lea.sflag [#allocation5], %s6120
          %s6122 = sand.u32 %s182, 1
          %s6123 = smul.addr %s6122, 256
          %s6124 = scalar_lea.vmem [#allocation4], %s6123
          %6125 = dma.done %s6121, 4096
        $region60: #{basic_block_forward.1} parent=55 // pred_fallthru
          _
      $region56: #{basic_block_forward.1} parent=5 // pred_fallthru
        _
    $region6: #{basic_block_forward.1} parent=1 // loop_footer
      %s20 = sadd.s32 1, %s16
    $region7: #{basic_block_forward.1} parent=1 // loop_footer_branch
      %15 = sbr.rel target = $region3
    $region8: #{basic_block_forward.1} parent=1 // loop_exit
      _
    %6126 = vsyncpa [#allocation5], 1
    %s6127 = scalar_lea.sflag [#allocation5], 1
    %6128 = vsyncpa %s6127, 1

</llo_original>
